<compile_context>
chip_gen: v7x
topology: tpu7x:2x2x1
jax: 0.10.0
libtpu: 0.0.40
codegen_flags: <defaults>
</compile_context>

<pallas_src>
import functools

import jax
import jax.numpy as jnp
from jax.experimental import pallas as pl
from jax.experimental.pallas import tpu as pltpu


def _round_up(a, b):
    return (a + b - 1) // b * b


def _vmem_budget_bytes():
    """Per-generation VMEM budget (bytes) for one pallas_call."""
    cap = 64 * 1024 * 1024                      # conservative (v7x-class) fallback
    try:
        cap = int(getattr(pltpu.get_tpu_info(), "vmem_capacity_bytes", cap))
    except Exception:
        pass
    return (cap * 3) // 4                       # headroom for Mosaic internals


def _step_vmem_bytes(TH, Wf, C, k, K, Np, lhs_bytes, out_bytes):
    """Rough per-step VMEM estimate (padded layouts, double-buffered I/O)."""
    tm = TH * Wf
    # input block (1,C,TH,k,Wf,k): last two dims pad to (round_up(Wf,8), 128)
    in_block = C * TH * k * _round_up(Wf, 8) * 128 * 4
    out_block = _round_up(tm, 8) * Np * out_bytes
    lhs = _round_up(tm, 16) * K * lhs_bytes
    w = K * Np * lhs_bytes                      # resident weight (single buffer)
    b = 8 * Np * 4
    return 2 * in_block + 2 * out_block + lhs + w + b


def _choose_row_block(B, Hf, Wf, C, k, K, Np, lhs_bytes, out_bytes, budget):
    """Largest TH (divisor of Hf) s.t. M=TH*Wf is MXU-sized, the step fits the
    VMEM budget, the output block stays tileable (TM % 8 == 0 or full extent),
    and the parallel grid keeps >= 2 steps when possible (v7x has 2 cores)."""
    target_m = 512
    divisors = [d for d in range(1, Hf + 1) if Hf % d == 0]
    valid = [d for d in divisors if (d * Wf) % 8 == 0 or d == Hf]
    if not valid:
        valid = [Hf]
    best = valid[0]                             # best-effort floor
    for d in valid:
        tm = d * Wf
        if tm > max(target_m, Wf):
            break
        if _step_vmem_bytes(d, Wf, C, k, K, Np, lhs_bytes, out_bytes) > budget:
            break
        best = d
    while B * (Hf // best) < 2:                 # keep both v7x TCs busy
        smaller = [d for d in valid if d < best]
        if not smaller:
            break
        best = smaller[-1]
    return best


# ---------------------------------------------------------------------------
# Kernel: stride-k patchify conv for TH output rows per grid step.
# ---------------------------------------------------------------------------
def _patchify_conv_kernel(x_ref, w_ref, b_ref, o_ref, lhs_ref, *, C, k, TH, Wf):
    # x_ref  : (1, C, TH, k, Wf, k) f32   -- image slab for TH output rows
    # w_ref  : (K, Np) compute dtype      -- conv weight, grid-invariant/resident
    # b_ref  : (1, Np)  f32
    # o_ref  : (1, TH*Wf, Np) out dtype   -- flat lane-dense output block
    # lhs_ref: (TH*Wf, K) compute dtype   -- im2col'd patch matrix (VMEM scratch)
    #
    # Assemble im2col directly in the compute dtype.  K columns are ordered
    # (c, dy, dx); rows are (t, wo) flattened.  Static-offset slice stores; see
    # module TODO about moving this scatter to the DMA engine for large C*k.
    for t in range(TH):
        rows = slice(t * Wf, (t + 1) * Wf)
        for c in range(C):
            for dy in range(k):
                off = (c * k + dy) * k
                lhs_ref[rows, off:off + k] = (
                    x_ref[0, c, t, dy, :, :].astype(lhs_ref.dtype))
    acc = jnp.dot(lhs_ref[...], w_ref[...], preferred_element_type=jnp.float32)
    acc = acc + b_ref[...]                      # f32 bias on the f32 accumulator
    o_ref[0] = jnp.maximum(acc, 0.0).astype(o_ref.dtype)


def backbone_conv(x, weight, bias, *, stride,
                  compute_dtype=jnp.bfloat16, out_dtype=jnp.bfloat16,
                  single_buffer_weight=True):
    """Synthetic backbone body: stride-k patchify conv + bias + ReLU.

    x: (B, C, H, W) f32.
    weight: (C*k*k, N); the K axis MUST be ordered (c, dy, dx), i.e.
            weight[(c*k + dy)*k + dx, n] == torch_conv_weight[n, c, dy, dx].
    bias: (N,).
    Returns NHWC features (B, Hf, Wf, N) in out_dtype.
    """
    B, C, H, W = x.shape
    k = stride
    if H % k or W % k:
        raise ValueError("H and W must be divisible by the patchify stride")
    Hf, Wf = H // k, W // k
    S = Hf * Wf
    K, N = weight.shape
    if K != C * k * k:
        raise ValueError("weight K axis must have size C*k*k, ordered (c, dy, dx)")

    # Lane-align the output channel dim.  N > 128 rounds to a multiple of 256
    # (full 256-wide v6e/v7x MXU); 128 is a perfect fit on v5e / toy shapes.
    Np = 128 if N <= 128 else _round_up(N, 256)
    w = weight.astype(compute_dtype)
    b = bias.reshape(1, N).astype(jnp.float32)
    if Np != N:
        w = jnp.pad(w, ((0, 0), (0, Np - N)))
        b = jnp.pad(b, ((0, 0), (0, Np - N)))

    lhs_bytes = jnp.dtype(compute_dtype).itemsize
    out_bytes = jnp.dtype(out_dtype).itemsize
    budget = _vmem_budget_bytes()
    TH = _choose_row_block(B, Hf, Wf, C, k, K, Np, lhs_bytes, out_bytes, budget)
    TM = TH * Wf

    # Metadata-only split of H->(Hf,k), W->(Wf,k); the image is read from HBM
    # exactly once, by the kernel's own input DMA.
    x6 = x.reshape(B, C, Hf, k, Wf, k)

    def _const_spec(shape):
        if single_buffer_weight:
            # grid-invariant operand: one resident copy, no double buffering
            return pl.BlockSpec(shape, lambda bi, hi: (0, 0),
                                pipeline_mode=pl.Buffered(1))
        return pl.BlockSpec(shape, lambda bi, hi: (0, 0))

    kernel = functools.partial(_patchify_conv_kernel, C=C, k=k, TH=TH, Wf=Wf)
    feat = pl.pallas_call(
        kernel,
        out_shape=jax.ShapeDtypeStruct((B, S, Np), out_dtype),
        grid=(B, Hf // TH),
        in_specs=[
            pl.BlockSpec((1, C, TH, k, Wf, k),
                         lambda bi, hi: (bi, 0, hi, 0, 0, 0)),
            _const_spec((K, Np)),
            _const_spec((1, Np)),
        ],
        out_specs=pl.BlockSpec((1, TM, Np), lambda bi, hi: (bi, hi, 0)),
        scratch_shapes=[pltpu.VMEM((TM, K), compute_dtype)],
        compiler_params=pltpu.CompilerParams(
            dimension_semantics=("parallel", "parallel"),
            vmem_limit_bytes=budget,
        ),
    )(x6, w, b)

    feat = feat.reshape(B, Hf, Wf, Np)          # free metadata reshape
    if Np != N:
        # TODO(synk): fold this slice into the consumer (DETR's 1x1 input_proj)
        # to avoid an extra HBM pass when N is not lane-aligned.
        feat = feat[..., :N]
    return feat


# ---------------------------------------------------------------------------
# BackboneBase wrapper (return_interm_layers=False -> only key '0')
# ---------------------------------------------------------------------------
def backbone_base_forward(tensors, mask, weight, bias, *, stride,
                          compute_dtype=jnp.bfloat16, out_dtype=jnp.bfloat16,
                          single_buffer_weight=True):
    """tensors: [B,C,H,W] f32, mask: [B,H,W] bool -> {'0': (feat_NHWC, mask)}."""
    feat = backbone_conv(tensors, weight, bias, stride=stride,
                         compute_dtype=compute_dtype, out_dtype=out_dtype,
                         single_buffer_weight=single_buffer_weight)
    Hf, Wf = feat.shape[1], feat.shape[2]
    H, W = mask.shape[1], mask.shape[2]

    # F.interpolate(mask[None].float(), size=(Hf,Wf), mode='nearest').bool():
    # nearest on a 0/1 mask is a pure gather -> tiny XLA advanced-index (a
    # Pallas kernel here would be launch-overhead dominated).
    row_src = (jnp.arange(Hf) * H) // Hf        # PyTorch nearest convention
    col_src = (jnp.arange(Wf) * W) // Wf
    mask_small = mask[:, row_src[:, None], col_src[None, :]]

    return {"0": (feat, mask_small)}


if __name__ == "__main__":
    # small shapes consistent with the module's forward
    B, C, H, W = 2, 4, 16, 16
    num_channels = 128               # multiple of 128 -> lane-dense MXU output
    stride = 8                       # synthetic backbone downsample factor

    key = jax.random.PRNGKey(0)
    k_img, k_w, k_b = jax.random.split(key, 3)

    x = jax.random.normal(k_img, (B, C, H, W), dtype=jnp.float32)

    # deterministic padding mask: True marks padded pixels
    valid_h = jnp.array([16, 12])
    valid_w = jnp.array([16, 10])
    hh = jnp.arange(H)[None, :, None]
    ww = jnp.arange(W)[None, None, :]
    mask = (hh >= valid_h[:, None, None]) | (ww >= valid_w[:, None, None])

    K = C * stride * stride
    weight = jax.random.normal(k_w, (K, num_channels), jnp.float32) * 0.02
    bias = jax.random.normal(k_b, (num_channels,), jnp.float32) * 0.01

    fwd = jax.jit(functools.partial(backbone_base_forward, stride=stride))
    try:
        out = fwd(x, mask, weight, bias)
        jax.block_until_ready(out)
    except Exception:
        # portability fallback: retry with default (double) weight buffering if
        # this JAX build rejects pipeline_mode=pl.Buffered(1).
        fwd = jax.jit(functools.partial(backbone_base_forward, stride=stride,
                                        single_buffer_weight=False))
        out = fwd(x, mask, weight, bias)
        jax.block_until_ready(out)

    feat, m = out["0"]
    Hf, Wf = H // stride, W // stride
    assert feat.shape == (B, Hf, Wf, num_channels) and feat.dtype == jnp.bfloat16
    assert m.shape == (B, Hf, Wf) and m.dtype == jnp.bool_

    # pure-JAX reference with the same precision knobs (bf16 operands + output,
    # f32 accumulate) for a correctness check
    p = x.reshape(B, C, Hf, stride, Wf, stride).transpose(0, 2, 4, 1, 3, 5)
    p = p.reshape(B, Hf * Wf, K)
    ref = jnp.dot(p.astype(jnp.bfloat16), weight.astype(jnp.bfloat16),
                  preferred_element_type=jnp.float32) + bias
    ref = jnp.maximum(ref, 0.0).astype(jnp.bfloat16)
    ref = ref.reshape(B, Hf, Wf, num_channels)
    row_src = (jnp.arange(Hf) * H) // Hf
    col_src = (jnp.arange(Wf) * W) // Wf
    m_ref = mask[:, row_src[:, None], col_src[None, :]]

    assert jnp.allclose(feat.astype(jnp.float32), ref.astype(jnp.float32),
                        rtol=2e-2, atol=2e-2)
    assert bool(jnp.all(m == m_ref))
    print("KERNEL_OK")
</pallas_src>

<mosaic_0001>
module attributes {stable_mosaic.version = 11 : i64} {
  func.func @_patchify_conv_kernel(%arg0: i32, %arg1: i32, %arg2: memref<1x4x2x8x2x8xf32, #tpu.memory_space<vmem>>, %arg3: memref<256x128xbf16, #tpu.memory_space<vmem>>, %arg4: memref<1x128xf32, #tpu.memory_space<vmem>>, %arg5: memref<1x4x128xbf16, #tpu.memory_space<vmem>>, %arg6: memref<4x256xbf16, #tpu.memory_space<vmem>>) attributes {dimension_semantics = [#tpu.dimension_semantics<parallel>, #tpu.dimension_semantics<parallel>], iteration_bounds = array<i64: 2, 1>, scalar_prefetch = 0 : i64, scratch_operands = 1 : i64, tpu.core_type = #tpu.core_type<tc>, window_params = [{transform_indices = @transform_0, window_bounds = array<i64: 1, 4, 2, 8, 2, 8>}, {pipeline_mode = #tpu.pipeline_mode<synchronous>, transform_indices = @transform_1, window_bounds = array<i64: 256, 128>}, {pipeline_mode = #tpu.pipeline_mode<synchronous>, transform_indices = @transform_2, window_bounds = array<i64: 1, 128>}, {transform_indices = @transform_3, window_bounds = array<i64: 1, 4, 128>}]} {
    %c0 = arith.constant 0 : index
    %c0_0 = arith.constant 0 : index
    %c0_1 = arith.constant 0 : index
    %c0_2 = arith.constant 0 : index
    %c0_3 = arith.constant 0 : index
    %c0_4 = arith.constant 0 : index
    %0 = vector.load %arg2[%c0, %c0_0, %c0_1, %c0_2, %c0_3, %c0_4] : memref<1x4x2x8x2x8xf32, #tpu.memory_space<vmem>>, vector<1x1x1x1x2x8xf32>
    %1 = vector.shape_cast %0 : vector<1x1x1x1x2x8xf32> to vector<2x8xf32>
    %2 = arith.truncf %1 : vector<2x8xf32> to vector<2x8xbf16>
    %c0_5 = arith.constant 0 : index
    %c0_6 = arith.constant 0 : index
    %3 = vector.load %arg6[%c0_5, %c0_6] : memref<4x256xbf16, #tpu.memory_space<vmem>>, vector<2x8xbf16>
    tpu.vector_store %arg6[%c0_5, %c0_6], %2 {strides = array<i32>} : memref<4x256xbf16, #tpu.memory_space<vmem>>, vector<2x8xbf16>,
    %c0_7 = arith.constant 0 : index
    %c0_8 = arith.constant 0 : index
    %c0_9 = arith.constant 0 : index
    %c1 = arith.constant 1 : index
    %c0_10 = arith.constant 0 : index
    %c0_11 = arith.constant 0 : index
    %4 = vector.load %arg2[%c0_7, %c0_8, %c0_9, %c1, %c0_10, %c0_11] : memref<1x4x2x8x2x8xf32, #tpu.memory_space<vmem>>, vector<1x1x1x1x2x8xf32>
    %5 = vector.shape_cast %4 : vector<1x1x1x1x2x8xf32> to vector<2x8xf32>
    %6 = arith.truncf %5 : vector<2x8xf32> to vector<2x8xbf16>
    %c0_12 = arith.constant 0 : index
    %c8 = arith.constant 8 : index
    %7 = vector.load %arg6[%c0_12, %c8] : memref<4x256xbf16, #tpu.memory_space<vmem>>, vector<2x8xbf16>
    tpu.vector_store %arg6[%c0_12, %c8], %6 {strides = array<i32>} : memref<4x256xbf16, #tpu.memory_space<vmem>>, vector<2x8xbf16>,
    %c0_13 = arith.constant 0 : index
    %c0_14 = arith.constant 0 : index
    %c0_15 = arith.constant 0 : index
    %c2 = arith.constant 2 : index
    %c0_16 = arith.constant 0 : index
    %c0_17 = arith.constant 0 : index
    %8 = vector.load %arg2[%c0_13, %c0_14, %c0_15, %c2, %c0_16, %c0_17] : memref<1x4x2x8x2x8xf32, #tpu.memory_space<vmem>>, vector<1x1x1x1x2x8xf32>
    %9 = vector.shape_cast %8 : vector<1x1x1x1x2x8xf32> to vector<2x8xf32>
    %10 = arith.truncf %9 : vector<2x8xf32> to vector<2x8xbf16>
    %c0_18 = arith.constant 0 : index
    %c16 = arith.constant 16 : index
    %11 = vector.load %arg6[%c0_18, %c16] : memref<4x256xbf16, #tpu.memory_space<vmem>>, vector<2x8xbf16>
    tpu.vector_store %arg6[%c0_18, %c16], %10 {strides = array<i32>} : memref<4x256xbf16, #tpu.memory_space<vmem>>, vector<2x8xbf16>,
    %c0_19 = arith.constant 0 : index
    %c0_20 = arith.constant 0 : index
    %c0_21 = arith.constant 0 : index
    %c3 = arith.constant 3 : index
    %c0_22 = arith.constant 0 : index
    %c0_23 = arith.constant 0 : index
    %12 = vector.load %arg2[%c0_19, %c0_20, %c0_21, %c3, %c0_22, %c0_23] : memref<1x4x2x8x2x8xf32, #tpu.memory_space<vmem>>, vector<1x1x1x1x2x8xf32>
    %13 = vector.shape_cast %12 : vector<1x1x1x1x2x8xf32> to vector<2x8xf32>
    %14 = arith.truncf %13 : vector<2x8xf32> to vector<2x8xbf16>
    %c0_24 = arith.constant 0 : index
    %c24 = arith.constant 24 : index
    %15 = vector.load %arg6[%c0_24, %c24] : memref<4x256xbf16, #tpu.memory_space<vmem>>, vector<2x8xbf16>
    tpu.vector_store %arg6[%c0_24, %c24], %14 {strides = array<i32>} : memref<4x256xbf16, #tpu.memory_space<vmem>>, vector<2x8xbf16>,
    %c0_25 = arith.constant 0 : index
    %c0_26 = arith.constant 0 : index
    %c0_27 = arith.constant 0 : index
    %c4 = arith.constant 4 : index
    %c0_28 = arith.constant 0 : index
    %c0_29 = arith.constant 0 : index
    %16 = vector.load %arg2[%c0_25, %c0_26, %c0_27, %c4, %c0_28, %c0_29] : memref<1x4x2x8x2x8xf32, #tpu.memory_space<vmem>>, vector<1x1x1x1x2x8xf32>
    %17 = vector.shape_cast %16 : vector<1x1x1x1x2x8xf32> to vector<2x8xf32>
    %18 = arith.truncf %17 : vector<2x8xf32> to vector<2x8xbf16>
    %c0_30 = arith.constant 0 : index
    %c32 = arith.constant 32 : index
    %19 = vector.load %arg6[%c0_30, %c32] : memref<4x256xbf16, #tpu.memory_space<vmem>>, vector<2x8xbf16>
    tpu.vector_store %arg6[%c0_30, %c32], %18 {strides = array<i32>} : memref<4x256xbf16, #tpu.memory_space<vmem>>, vector<2x8xbf16>,
    %c0_31 = arith.constant 0 : index
    %c0_32 = arith.constant 0 : index
    %c0_33 = arith.constant 0 : index
    %c5 = arith.constant 5 : index
    %c0_34 = arith.constant 0 : index
    %c0_35 = arith.constant 0 : index
    %20 = vector.load %arg2[%c0_31, %c0_32, %c0_33, %c5, %c0_34, %c0_35] : memref<1x4x2x8x2x8xf32, #tpu.memory_space<vmem>>, vector<1x1x1x1x2x8xf32>
    %21 = vector.shape_cast %20 : vector<1x1x1x1x2x8xf32> to vector<2x8xf32>
    %22 = arith.truncf %21 : vector<2x8xf32> to vector<2x8xbf16>
    %c0_36 = arith.constant 0 : index
    %c40 = arith.constant 40 : index
    %23 = vector.load %arg6[%c0_36, %c40] : memref<4x256xbf16, #tpu.memory_space<vmem>>, vector<2x8xbf16>
    tpu.vector_store %arg6[%c0_36, %c40], %22 {strides = array<i32>} : memref<4x256xbf16, #tpu.memory_space<vmem>>, vector<2x8xbf16>,
    %c0_37 = arith.constant 0 : index
    %c0_38 = arith.constant 0 : index
    %c0_39 = arith.constant 0 : index
    %c6 = arith.constant 6 : index
    %c0_40 = arith.constant 0 : index
    %c0_41 = arith.constant 0 : index
    %24 = vector.load %arg2[%c0_37, %c0_38, %c0_39, %c6, %c0_40, %c0_41] : memref<1x4x2x8x2x8xf32, #tpu.memory_space<vmem>>, vector<1x1x1x1x2x8xf32>
    %25 = vector.shape_cast %24 : vector<1x1x1x1x2x8xf32> to vector<2x8xf32>
    %26 = arith.truncf %25 : vector<2x8xf32> to vector<2x8xbf16>
    %c0_42 = arith.constant 0 : index
    %c48 = arith.constant 48 : index
    %27 = vector.load %arg6[%c0_42, %c48] : memref<4x256xbf16, #tpu.memory_space<vmem>>, vector<2x8xbf16>
    tpu.vector_store %arg6[%c0_42, %c48], %26 {strides = array<i32>} : memref<4x256xbf16, #tpu.memory_space<vmem>>, vector<2x8xbf16>,
    %c0_43 = arith.constant 0 : index
    %c0_44 = arith.constant 0 : index
    %c0_45 = arith.constant 0 : index
    %c7 = arith.constant 7 : index
    %c0_46 = arith.constant 0 : index
    %c0_47 = arith.constant 0 : index
    %28 = vector.load %arg2[%c0_43, %c0_44, %c0_45, %c7, %c0_46, %c0_47] : memref<1x4x2x8x2x8xf32, #tpu.memory_space<vmem>>, vector<1x1x1x1x2x8xf32>
    %29 = vector.shape_cast %28 : vector<1x1x1x1x2x8xf32> to vector<2x8xf32>
    %30 = arith.truncf %29 : vector<2x8xf32> to vector<2x8xbf16>
    %c0_48 = arith.constant 0 : index
    %c56 = arith.constant 56 : index
    %31 = vector.load %arg6[%c0_48, %c56] : memref<4x256xbf16, #tpu.memory_space<vmem>>, vector<2x8xbf16>
    tpu.vector_store %arg6[%c0_48, %c56], %30 {strides = array<i32>} : memref<4x256xbf16, #tpu.memory_space<vmem>>, vector<2x8xbf16>,
    %c0_49 = arith.constant 0 : index
    %c1_50 = arith.constant 1 : index
    %c0_51 = arith.constant 0 : index
    %c0_52 = arith.constant 0 : index
    %c0_53 = arith.constant 0 : index
    %c0_54 = arith.constant 0 : index
    %32 = vector.load %arg2[%c0_49, %c1_50, %c0_51, %c0_52, %c0_53, %c0_54] : memref<1x4x2x8x2x8xf32, #tpu.memory_space<vmem>>, vector<1x1x1x1x2x8xf32>
    %33 = vector.shape_cast %32 : vector<1x1x1x1x2x8xf32> to vector<2x8xf32>
    %34 = arith.truncf %33 : vector<2x8xf32> to vector<2x8xbf16>
    %c0_55 = arith.constant 0 : index
    %c64 = arith.constant 64 : index
    %35 = vector.load %arg6[%c0_55, %c64] : memref<4x256xbf16, #tpu.memory_space<vmem>>, vector<2x8xbf16>
    tpu.vector_store %arg6[%c0_55, %c64], %34 {strides = array<i32>} : memref<4x256xbf16, #tpu.memory_space<vmem>>, vector<2x8xbf16>,
    %c0_56 = arith.constant 0 : index
    %c1_57 = arith.constant 1 : index
    %c0_58 = arith.constant 0 : index
    %c1_59 = arith.constant 1 : index
    %c0_60 = arith.constant 0 : index
    %c0_61 = arith.constant 0 : index
    %36 = vector.load %arg2[%c0_56, %c1_57, %c0_58, %c1_59, %c0_60, %c0_61] : memref<1x4x2x8x2x8xf32, #tpu.memory_space<vmem>>, vector<1x1x1x1x2x8xf32>
    %37 = vector.shape_cast %36 : vector<1x1x1x1x2x8xf32> to vector<2x8xf32>
    %38 = arith.truncf %37 : vector<2x8xf32> to vector<2x8xbf16>
    %c0_62 = arith.constant 0 : index
    %c72 = arith.constant 72 : index
    %39 = vector.load %arg6[%c0_62, %c72] : memref<4x256xbf16, #tpu.memory_space<vmem>>, vector<2x8xbf16>
    tpu.vector_store %arg6[%c0_62, %c72], %38 {strides = array<i32>} : memref<4x256xbf16, #tpu.memory_space<vmem>>, vector<2x8xbf16>,
    %c0_63 = arith.constant 0 : index
    %c1_64 = arith.constant 1 : index
    %c0_65 = arith.constant 0 : index
    %c2_66 = arith.constant 2 : index
    %c0_67 = arith.constant 0 : index
    %c0_68 = arith.constant 0 : index
    %40 = vector.load %arg2[%c0_63, %c1_64, %c0_65, %c2_66, %c0_67, %c0_68] : memref<1x4x2x8x2x8xf32, #tpu.memory_space<vmem>>, vector<1x1x1x1x2x8xf32>
    %41 = vector.shape_cast %40 : vector<1x1x1x1x2x8xf32> to vector<2x8xf32>
    %42 = arith.truncf %41 : vector<2x8xf32> to vector<2x8xbf16>
    %c0_69 = arith.constant 0 : index
    %c80 = arith.constant 80 : index
    %43 = vector.load %arg6[%c0_69, %c80] : memref<4x256xbf16, #tpu.memory_space<vmem>>, vector<2x8xbf16>
    tpu.vector_store %arg6[%c0_69, %c80], %42 {strides = array<i32>} : memref<4x256xbf16, #tpu.memory_space<vmem>>, vector<2x8xbf16>,
    %c0_70 = arith.constant 0 : index
    %c1_71 = arith.constant 1 : index
    %c0_72 = arith.constant 0 : index
    %c3_73 = arith.constant 3 : index
    %c0_74 = arith.constant 0 : index
    %c0_75 = arith.constant 0 : index
    %44 = vector.load %arg2[%c0_70, %c1_71, %c0_72, %c3_73, %c0_74, %c0_75] : memref<1x4x2x8x2x8xf32, #tpu.memory_space<vmem>>, vector<1x1x1x1x2x8xf32>
    %45 = vector.shape_cast %44 : vector<1x1x1x1x2x8xf32> to vector<2x8xf32>
    %46 = arith.truncf %45 : vector<2x8xf32> to vector<2x8xbf16>
    %c0_76 = arith.constant 0 : index
    %c88 = arith.constant 88 : index
    %47 = vector.load %arg6[%c0_76, %c88] : memref<4x256xbf16, #tpu.memory_space<vmem>>, vector<2x8xbf16>
    tpu.vector_store %arg6[%c0_76, %c88], %46 {strides = array<i32>} : memref<4x256xbf16, #tpu.memory_space<vmem>>, vector<2x8xbf16>,
    %c0_77 = arith.constant 0 : index
    %c1_78 = arith.constant 1 : index
    %c0_79 = arith.constant 0 : index
    %c4_80 = arith.constant 4 : index
    %c0_81 = arith.constant 0 : index
    %c0_82 = arith.constant 0 : index
    %48 = vector.load %arg2[%c0_77, %c1_78, %c0_79, %c4_80, %c0_81, %c0_82] : memref<1x4x2x8x2x8xf32, #tpu.memory_space<vmem>>, vector<1x1x1x1x2x8xf32>
    %49 = vector.shape_cast %48 : vector<1x1x1x1x2x8xf32> to vector<2x8xf32>
    %50 = arith.truncf %49 : vector<2x8xf32> to vector<2x8xbf16>
    %c0_83 = arith.constant 0 : index
    %c96 = arith.constant 96 : index
    %51 = vector.load %arg6[%c0_83, %c96] : memref<4x256xbf16, #tpu.memory_space<vmem>>, vector<2x8xbf16>
    tpu.vector_store %arg6[%c0_83, %c96], %50 {strides = array<i32>} : memref<4x256xbf16, #tpu.memory_space<vmem>>, vector<2x8xbf16>,
    %c0_84 = arith.constant 0 : index
    %c1_85 = arith.constant 1 : index
    %c0_86 = arith.constant 0 : index
    %c5_87 = arith.constant 5 : index
    %c0_88 = arith.constant 0 : index
    %c0_89 = arith.constant 0 : index
    %52 = vector.load %arg2[%c0_84, %c1_85, %c0_86, %c5_87, %c0_88, %c0_89] : memref<1x4x2x8x2x8xf32, #tpu.memory_space<vmem>>, vector<1x1x1x1x2x8xf32>
    %53 = vector.shape_cast %52 : vector<1x1x1x1x2x8xf32> to vector<2x8xf32>
    %54 = arith.truncf %53 : vector<2x8xf32> to vector<2x8xbf16>
    %c0_90 = arith.constant 0 : index
    %c104 = arith.constant 104 : index
    %55 = vector.load %arg6[%c0_90, %c104] : memref<4x256xbf16, #tpu.memory_space<vmem>>, vector<2x8xbf16>
    tpu.vector_store %arg6[%c0_90, %c104], %54 {strides = array<i32>} : memref<4x256xbf16, #tpu.memory_space<vmem>>, vector<2x8xbf16>,
    %c0_91 = arith.constant 0 : index
    %c1_92 = arith.constant 1 : index
    %c0_93 = arith.constant 0 : index
    %c6_94 = arith.constant 6 : index
    %c0_95 = arith.constant 0 : index
    %c0_96 = arith.constant 0 : index
    %56 = vector.load %arg2[%c0_91, %c1_92, %c0_93, %c6_94, %c0_95, %c0_96] : memref<1x4x2x8x2x8xf32, #tpu.memory_space<vmem>>, vector<1x1x1x1x2x8xf32>
    %57 = vector.shape_cast %56 : vector<1x1x1x1x2x8xf32> to vector<2x8xf32>
    %58 = arith.truncf %57 : vector<2x8xf32> to vector<2x8xbf16>
    %c0_97 = arith.constant 0 : index
    %c112 = arith.constant 112 : index
    %59 = vector.load %arg6[%c0_97, %c112] : memref<4x256xbf16, #tpu.memory_space<vmem>>, vector<2x8xbf16>
    tpu.vector_store %arg6[%c0_97, %c112], %58 {strides = array<i32>} : memref<4x256xbf16, #tpu.memory_space<vmem>>, vector<2x8xbf16>,
    %c0_98 = arith.constant 0 : index
    %c1_99 = arith.constant 1 : index
    %c0_100 = arith.constant 0 : index
    %c7_101 = arith.constant 7 : index
    %c0_102 = arith.constant 0 : index
    %c0_103 = arith.constant 0 : index
    %60 = vector.load %arg2[%c0_98, %c1_99, %c0_100, %c7_101, %c0_102, %c0_103] : memref<1x4x2x8x2x8xf32, #tpu.memory_space<vmem>>, vector<1x1x1x1x2x8xf32>
    %61 = vector.shape_cast %60 : vector<1x1x1x1x2x8xf32> to vector<2x8xf32>
    %62 = arith.truncf %61 : vector<2x8xf32> to vector<2x8xbf16>
    %c0_104 = arith.constant 0 : index
    %c120 = arith.constant 120 : index
    %63 = vector.load %arg6[%c0_104, %c120] : memref<4x256xbf16, #tpu.memory_space<vmem>>, vector<2x8xbf16>
    tpu.vector_store %arg6[%c0_104, %c120], %62 {strides = array<i32>} : memref<4x256xbf16, #tpu.memory_space<vmem>>, vector<2x8xbf16>,
    %c0_105 = arith.constant 0 : index
    %c2_106 = arith.constant 2 : index
    %c0_107 = arith.constant 0 : index
    %c0_108 = arith.constant 0 : index
    %c0_109 = arith.constant 0 : index
    %c0_110 = arith.constant 0 : index
    %64 = vector.load %arg2[%c0_105, %c2_106, %c0_107, %c0_108, %c0_109, %c0_110] : memref<1x4x2x8x2x8xf32, #tpu.memory_space<vmem>>, vector<1x1x1x1x2x8xf32>
    %65 = vector.shape_cast %64 : vector<1x1x1x1x2x8xf32> to vector<2x8xf32>
    %66 = arith.truncf %65 : vector<2x8xf32> to vector<2x8xbf16>
    %c0_111 = arith.constant 0 : index
    %c128 = arith.constant 128 : index
    %67 = vector.load %arg6[%c0_111, %c128] : memref<4x256xbf16, #tpu.memory_space<vmem>>, vector<2x8xbf16>
    tpu.vector_store %arg6[%c0_111, %c128], %66 {strides = array<i32>} : memref<4x256xbf16, #tpu.memory_space<vmem>>, vector<2x8xbf16>,
    %c0_112 = arith.constant 0 : index
    %c2_113 = arith.constant 2 : index
    %c0_114 = arith.constant 0 : index
    %c1_115 = arith.constant 1 : index
    %c0_116 = arith.constant 0 : index
    %c0_117 = arith.constant 0 : index
    %68 = vector.load %arg2[%c0_112, %c2_113, %c0_114, %c1_115, %c0_116, %c0_117] : memref<1x4x2x8x2x8xf32, #tpu.memory_space<vmem>>, vector<1x1x1x1x2x8xf32>
    %69 = vector.shape_cast %68 : vector<1x1x1x1x2x8xf32> to vector<2x8xf32>
    %70 = arith.truncf %69 : vector<2x8xf32> to vector<2x8xbf16>
    %c0_118 = arith.constant 0 : index
    %c136 = arith.constant 136 : index
    %71 = vector.load %arg6[%c0_118, %c136] : memref<4x256xbf16, #tpu.memory_space<vmem>>, vector<2x8xbf16>
    tpu.vector_store %arg6[%c0_118, %c136], %70 {strides = array<i32>} : memref<4x256xbf16, #tpu.memory_space<vmem>>, vector<2x8xbf16>,
    %c0_119 = arith.constant 0 : index
    %c2_120 = arith.constant 2 : index
    %c0_121 = arith.constant 0 : index
    %c2_122 = arith.constant 2 : index
    %c0_123 = arith.constant 0 : index
    %c0_124 = arith.constant 0 : index
    %72 = vector.load %arg2[%c0_119, %c2_120, %c0_121, %c2_122, %c0_123, %c0_124] : memref<1x4x2x8x2x8xf32, #tpu.memory_space<vmem>>, vector<1x1x1x1x2x8xf32>
    %73 = vector.shape_cast %72 : vector<1x1x1x1x2x8xf32> to vector<2x8xf32>
    %74 = arith.truncf %73 : vector<2x8xf32> to vector<2x8xbf16>
    %c0_125 = arith.constant 0 : index
    %c144 = arith.constant 144 : index
    %75 = vector.load %arg6[%c0_125, %c144] : memref<4x256xbf16, #tpu.memory_space<vmem>>, vector<2x8xbf16>
    tpu.vector_store %arg6[%c0_125, %c144], %74 {strides = array<i32>} : memref<4x256xbf16, #tpu.memory_space<vmem>>, vector<2x8xbf16>,
    %c0_126 = arith.constant 0 : index
    %c2_127 = arith.constant 2 : index
    %c0_128 = arith.constant 0 : index
    %c3_129 = arith.constant 3 : index
    %c0_130 = arith.constant 0 : index
    %c0_131 = arith.constant 0 : index
    %76 = vector.load %arg2[%c0_126, %c2_127, %c0_128, %c3_129, %c0_130, %c0_131] : memref<1x4x2x8x2x8xf32, #tpu.memory_space<vmem>>, vector<1x1x1x1x2x8xf32>
    %77 = vector.shape_cast %76 : vector<1x1x1x1x2x8xf32> to vector<2x8xf32>
    %78 = arith.truncf %77 : vector<2x8xf32> to vector<2x8xbf16>
    %c0_132 = arith.constant 0 : index
    %c152 = arith.constant 152 : index
    %79 = vector.load %arg6[%c0_132, %c152] : memref<4x256xbf16, #tpu.memory_space<vmem>>, vector<2x8xbf16>
    tpu.vector_store %arg6[%c0_132, %c152], %78 {strides = array<i32>} : memref<4x256xbf16, #tpu.memory_space<vmem>>, vector<2x8xbf16>,
    %c0_133 = arith.constant 0 : index
    %c2_134 = arith.constant 2 : index
    %c0_135 = arith.constant 0 : index
    %c4_136 = arith.constant 4 : index
    %c0_137 = arith.constant 0 : index
    %c0_138 = arith.constant 0 : index
    %80 = vector.load %arg2[%c0_133, %c2_134, %c0_135, %c4_136, %c0_137, %c0_138] : memref<1x4x2x8x2x8xf32, #tpu.memory_space<vmem>>, vector<1x1x1x1x2x8xf32>
    %81 = vector.shape_cast %80 : vector<1x1x1x1x2x8xf32> to vector<2x8xf32>
    %82 = arith.truncf %81 : vector<2x8xf32> to vector<2x8xbf16>
    %c0_139 = arith.constant 0 : index
    %c160 = arith.constant 160 : index
    %83 = vector.load %arg6[%c0_139, %c160] : memref<4x256xbf16, #tpu.memory_space<vmem>>, vector<2x8xbf16>
    tpu.vector_store %arg6[%c0_139, %c160], %82 {strides = array<i32>} : memref<4x256xbf16, #tpu.memory_space<vmem>>, vector<2x8xbf16>,
    %c0_140 = arith.constant 0 : index
    %c2_141 = arith.constant 2 : index
    %c0_142 = arith.constant 0 : index
    %c5_143 = arith.constant 5 : index
    %c0_144 = arith.constant 0 : index
    %c0_145 = arith.constant 0 : index
    %84 = vector.load %arg2[%c0_140, %c2_141, %c0_142, %c5_143, %c0_144, %c0_145] : memref<1x4x2x8x2x8xf32, #tpu.memory_space<vmem>>, vector<1x1x1x1x2x8xf32>
    %85 = vector.shape_cast %84 : vector<1x1x1x1x2x8xf32> to vector<2x8xf32>
    %86 = arith.truncf %85 : vector<2x8xf32> to vector<2x8xbf16>
    %c0_146 = arith.constant 0 : index
    %c168 = arith.constant 168 : index
    %87 = vector.load %arg6[%c0_146, %c168] : memref<4x256xbf16, #tpu.memory_space<vmem>>, vector<2x8xbf16>
    tpu.vector_store %arg6[%c0_146, %c168], %86 {strides = array<i32>} : memref<4x256xbf16, #tpu.memory_space<vmem>>, vector<2x8xbf16>,
    %c0_147 = arith.constant 0 : index
    %c2_148 = arith.constant 2 : index
    %c0_149 = arith.constant 0 : index
    %c6_150 = arith.constant 6 : index
    %c0_151 = arith.constant 0 : index
    %c0_152 = arith.constant 0 : index
    %88 = vector.load %arg2[%c0_147, %c2_148, %c0_149, %c6_150, %c0_151, %c0_152] : memref<1x4x2x8x2x8xf32, #tpu.memory_space<vmem>>, vector<1x1x1x1x2x8xf32>
    %89 = vector.shape_cast %88 : vector<1x1x1x1x2x8xf32> to vector<2x8xf32>
    %90 = arith.truncf %89 : vector<2x8xf32> to vector<2x8xbf16>
    %c0_153 = arith.constant 0 : index
    %c176 = arith.constant 176 : index
    %91 = vector.load %arg6[%c0_153, %c176] : memref<4x256xbf16, #tpu.memory_space<vmem>>, vector<2x8xbf16>
    tpu.vector_store %arg6[%c0_153, %c176], %90 {strides = array<i32>} : memref<4x256xbf16, #tpu.memory_space<vmem>>, vector<2x8xbf16>,
    %c0_154 = arith.constant 0 : index
    %c2_155 = arith.constant 2 : index
    %c0_156 = arith.constant 0 : index
    %c7_157 = arith.constant 7 : index
    %c0_158 = arith.constant 0 : index
    %c0_159 = arith.constant 0 : index
    %92 = vector.load %arg2[%c0_154, %c2_155, %c0_156, %c7_157, %c0_158, %c0_159] : memref<1x4x2x8x2x8xf32, #tpu.memory_space<vmem>>, vector<1x1x1x1x2x8xf32>
    %93 = vector.shape_cast %92 : vector<1x1x1x1x2x8xf32> to vector<2x8xf32>
    %94 = arith.truncf %93 : vector<2x8xf32> to vector<2x8xbf16>
    %c0_160 = arith.constant 0 : index
    %c184 = arith.constant 184 : index
    %95 = vector.load %arg6[%c0_160, %c184] : memref<4x256xbf16, #tpu.memory_space<vmem>>, vector<2x8xbf16>
    tpu.vector_store %arg6[%c0_160, %c184], %94 {strides = array<i32>} : memref<4x256xbf16, #tpu.memory_space<vmem>>, vector<2x8xbf16>,
    %c0_161 = arith.constant 0 : index
    %c3_162 = arith.constant 3 : index
    %c0_163 = arith.constant 0 : index
    %c0_164 = arith.constant 0 : index
    %c0_165 = arith.constant 0 : index
    %c0_166 = arith.constant 0 : index
    %96 = vector.load %arg2[%c0_161, %c3_162, %c0_163, %c0_164, %c0_165, %c0_166] : memref<1x4x2x8x2x8xf32, #tpu.memory_space<vmem>>, vector<1x1x1x1x2x8xf32>
    %97 = vector.shape_cast %96 : vector<1x1x1x1x2x8xf32> to vector<2x8xf32>
    %98 = arith.truncf %97 : vector<2x8xf32> to vector<2x8xbf16>
    %c0_167 = arith.constant 0 : index
    %c192 = arith.constant 192 : index
    %99 = vector.load %arg6[%c0_167, %c192] : memref<4x256xbf16, #tpu.memory_space<vmem>>, vector<2x8xbf16>
    tpu.vector_store %arg6[%c0_167, %c192], %98 {strides = array<i32>} : memref<4x256xbf16, #tpu.memory_space<vmem>>, vector<2x8xbf16>,
    %c0_168 = arith.constant 0 : index
    %c3_169 = arith.constant 3 : index
    %c0_170 = arith.constant 0 : index
    %c1_171 = arith.constant 1 : index
    %c0_172 = arith.constant 0 : index
    %c0_173 = arith.constant 0 : index
    %100 = vector.load %arg2[%c0_168, %c3_169, %c0_170, %c1_171, %c0_172, %c0_173] : memref<1x4x2x8x2x8xf32, #tpu.memory_space<vmem>>, vector<1x1x1x1x2x8xf32>
    %101 = vector.shape_cast %100 : vector<1x1x1x1x2x8xf32> to vector<2x8xf32>
    %102 = arith.truncf %101 : vector<2x8xf32> to vector<2x8xbf16>
    %c0_174 = arith.constant 0 : index
    %c200 = arith.constant 200 : index
    %103 = vector.load %arg6[%c0_174, %c200] : memref<4x256xbf16, #tpu.memory_space<vmem>>, vector<2x8xbf16>
    tpu.vector_store %arg6[%c0_174, %c200], %102 {strides = array<i32>} : memref<4x256xbf16, #tpu.memory_space<vmem>>, vector<2x8xbf16>,
    %c0_175 = arith.constant 0 : index
    %c3_176 = arith.constant 3 : index
    %c0_177 = arith.constant 0 : index
    %c2_178 = arith.constant 2 : index
    %c0_179 = arith.constant 0 : index
    %c0_180 = arith.constant 0 : index
    %104 = vector.load %arg2[%c0_175, %c3_176, %c0_177, %c2_178, %c0_179, %c0_180] : memref<1x4x2x8x2x8xf32, #tpu.memory_space<vmem>>, vector<1x1x1x1x2x8xf32>
    %105 = vector.shape_cast %104 : vector<1x1x1x1x2x8xf32> to vector<2x8xf32>
    %106 = arith.truncf %105 : vector<2x8xf32> to vector<2x8xbf16>
    %c0_181 = arith.constant 0 : index
    %c208 = arith.constant 208 : index
    %107 = vector.load %arg6[%c0_181, %c208] : memref<4x256xbf16, #tpu.memory_space<vmem>>, vector<2x8xbf16>
    tpu.vector_store %arg6[%c0_181, %c208], %106 {strides = array<i32>} : memref<4x256xbf16, #tpu.memory_space<vmem>>, vector<2x8xbf16>,
    %c0_182 = arith.constant 0 : index
    %c3_183 = arith.constant 3 : index
    %c0_184 = arith.constant 0 : index
    %c3_185 = arith.constant 3 : index
    %c0_186 = arith.constant 0 : index
    %c0_187 = arith.constant 0 : index
    %108 = vector.load %arg2[%c0_182, %c3_183, %c0_184, %c3_185, %c0_186, %c0_187] : memref<1x4x2x8x2x8xf32, #tpu.memory_space<vmem>>, vector<1x1x1x1x2x8xf32>
    %109 = vector.shape_cast %108 : vector<1x1x1x1x2x8xf32> to vector<2x8xf32>
    %110 = arith.truncf %109 : vector<2x8xf32> to vector<2x8xbf16>
    %c0_188 = arith.constant 0 : index
    %c216 = arith.constant 216 : index
    %111 = vector.load %arg6[%c0_188, %c216] : memref<4x256xbf16, #tpu.memory_space<vmem>>, vector<2x8xbf16>
    tpu.vector_store %arg6[%c0_188, %c216], %110 {strides = array<i32>} : memref<4x256xbf16, #tpu.memory_space<vmem>>, vector<2x8xbf16>,
    %c0_189 = arith.constant 0 : index
    %c3_190 = arith.constant 3 : index
    %c0_191 = arith.constant 0 : index
    %c4_192 = arith.constant 4 : index
    %c0_193 = arith.constant 0 : index
    %c0_194 = arith.constant 0 : index
    %112 = vector.load %arg2[%c0_189, %c3_190, %c0_191, %c4_192, %c0_193, %c0_194] : memref<1x4x2x8x2x8xf32, #tpu.memory_space<vmem>>, vector<1x1x1x1x2x8xf32>
    %113 = vector.shape_cast %112 : vector<1x1x1x1x2x8xf32> to vector<2x8xf32>
    %114 = arith.truncf %113 : vector<2x8xf32> to vector<2x8xbf16>
    %c0_195 = arith.constant 0 : index
    %c224 = arith.constant 224 : index
    %115 = vector.load %arg6[%c0_195, %c224] : memref<4x256xbf16, #tpu.memory_space<vmem>>, vector<2x8xbf16>
    tpu.vector_store %arg6[%c0_195, %c224], %114 {strides = array<i32>} : memref<4x256xbf16, #tpu.memory_space<vmem>>, vector<2x8xbf16>,
    %c0_196 = arith.constant 0 : index
    %c3_197 = arith.constant 3 : index
    %c0_198 = arith.constant 0 : index
    %c5_199 = arith.constant 5 : index
    %c0_200 = arith.constant 0 : index
    %c0_201 = arith.constant 0 : index
    %116 = vector.load %arg2[%c0_196, %c3_197, %c0_198, %c5_199, %c0_200, %c0_201] : memref<1x4x2x8x2x8xf32, #tpu.memory_space<vmem>>, vector<1x1x1x1x2x8xf32>
    %117 = vector.shape_cast %116 : vector<1x1x1x1x2x8xf32> to vector<2x8xf32>
    %118 = arith.truncf %117 : vector<2x8xf32> to vector<2x8xbf16>
    %c0_202 = arith.constant 0 : index
    %c232 = arith.constant 232 : index
    %119 = vector.load %arg6[%c0_202, %c232] : memref<4x256xbf16, #tpu.memory_space<vmem>>, vector<2x8xbf16>
    tpu.vector_store %arg6[%c0_202, %c232], %118 {strides = array<i32>} : memref<4x256xbf16, #tpu.memory_space<vmem>>, vector<2x8xbf16>,
    %c0_203 = arith.constant 0 : index
    %c3_204 = arith.constant 3 : index
    %c0_205 = arith.constant 0 : index
    %c6_206 = arith.constant 6 : index
    %c0_207 = arith.constant 0 : index
    %c0_208 = arith.constant 0 : index
    %120 = vector.load %arg2[%c0_203, %c3_204, %c0_205, %c6_206, %c0_207, %c0_208] : memref<1x4x2x8x2x8xf32, #tpu.memory_space<vmem>>, vector<1x1x1x1x2x8xf32>
    %121 = vector.shape_cast %120 : vector<1x1x1x1x2x8xf32> to vector<2x8xf32>
    %122 = arith.truncf %121 : vector<2x8xf32> to vector<2x8xbf16>
    %c0_209 = arith.constant 0 : index
    %c240 = arith.constant 240 : index
    %123 = vector.load %arg6[%c0_209, %c240] : memref<4x256xbf16, #tpu.memory_space<vmem>>, vector<2x8xbf16>
    tpu.vector_store %arg6[%c0_209, %c240], %122 {strides = array<i32>} : memref<4x256xbf16, #tpu.memory_space<vmem>>, vector<2x8xbf16>,
    %c0_210 = arith.constant 0 : index
    %c3_211 = arith.constant 3 : index
    %c0_212 = arith.constant 0 : index
    %c7_213 = arith.constant 7 : index
    %c0_214 = arith.constant 0 : index
    %c0_215 = arith.constant 0 : index
    %124 = vector.load %arg2[%c0_210, %c3_211, %c0_212, %c7_213, %c0_214, %c0_215] : memref<1x4x2x8x2x8xf32, #tpu.memory_space<vmem>>, vector<1x1x1x1x2x8xf32>
    %125 = vector.shape_cast %124 : vector<1x1x1x1x2x8xf32> to vector<2x8xf32>
    %126 = arith.truncf %125 : vector<2x8xf32> to vector<2x8xbf16>
    %c0_216 = arith.constant 0 : index
    %c248 = arith.constant 248 : index
    %127 = vector.load %arg6[%c0_216, %c248] : memref<4x256xbf16, #tpu.memory_space<vmem>>, vector<2x8xbf16>
    tpu.vector_store %arg6[%c0_216, %c248], %126 {strides = array<i32>} : memref<4x256xbf16, #tpu.memory_space<vmem>>, vector<2x8xbf16>,
    %c0_217 = arith.constant 0 : index
    %c0_218 = arith.constant 0 : index
    %c1_219 = arith.constant 1 : index
    %c0_220 = arith.constant 0 : index
    %c0_221 = arith.constant 0 : index
    %c0_222 = arith.constant 0 : index
    %128 = vector.load %arg2[%c0_217, %c0_218, %c1_219, %c0_220, %c0_221, %c0_222] : memref<1x4x2x8x2x8xf32, #tpu.memory_space<vmem>>, vector<1x1x1x1x2x8xf32>
    %129 = vector.shape_cast %128 : vector<1x1x1x1x2x8xf32> to vector<2x8xf32>
    %130 = arith.truncf %129 : vector<2x8xf32> to vector<2x8xbf16>
    %c2_223 = arith.constant 2 : index
    %c0_224 = arith.constant 0 : index
    %131 = vector.load %arg6[%c2_223, %c0_224] : memref<4x256xbf16, #tpu.memory_space<vmem>>, vector<2x8xbf16>
    tpu.vector_store %arg6[%c2_223, %c0_224], %130 {strides = array<i32>} : memref<4x256xbf16, #tpu.memory_space<vmem>>, vector<2x8xbf16>,
    %c0_225 = arith.constant 0 : index
    %c0_226 = arith.constant 0 : index
    %c1_227 = arith.constant 1 : index
    %c1_228 = arith.constant 1 : index
    %c0_229 = arith.constant 0 : index
    %c0_230 = arith.constant 0 : index
    %132 = vector.load %arg2[%c0_225, %c0_226, %c1_227, %c1_228, %c0_229, %c0_230] : memref<1x4x2x8x2x8xf32, #tpu.memory_space<vmem>>, vector<1x1x1x1x2x8xf32>
    %133 = vector.shape_cast %132 : vector<1x1x1x1x2x8xf32> to vector<2x8xf32>
    %134 = arith.truncf %133 : vector<2x8xf32> to vector<2x8xbf16>
    %c2_231 = arith.constant 2 : index
    %c8_232 = arith.constant 8 : index
    %135 = vector.load %arg6[%c2_231, %c8_232] : memref<4x256xbf16, #tpu.memory_space<vmem>>, vector<2x8xbf16>
    tpu.vector_store %arg6[%c2_231, %c8_232], %134 {strides = array<i32>} : memref<4x256xbf16, #tpu.memory_space<vmem>>, vector<2x8xbf16>,
    %c0_233 = arith.constant 0 : index
    %c0_234 = arith.constant 0 : index
    %c1_235 = arith.constant 1 : index
    %c2_236 = arith.constant 2 : index
    %c0_237 = arith.constant 0 : index
    %c0_238 = arith.constant 0 : index
    %136 = vector.load %arg2[%c0_233, %c0_234, %c1_235, %c2_236, %c0_237, %c0_238] : memref<1x4x2x8x2x8xf32, #tpu.memory_space<vmem>>, vector<1x1x1x1x2x8xf32>
    %137 = vector.shape_cast %136 : vector<1x1x1x1x2x8xf32> to vector<2x8xf32>
    %138 = arith.truncf %137 : vector<2x8xf32> to vector<2x8xbf16>
    %c2_239 = arith.constant 2 : index
    %c16_240 = arith.constant 16 : index
    %139 = vector.load %arg6[%c2_239, %c16_240] : memref<4x256xbf16, #tpu.memory_space<vmem>>, vector<2x8xbf16>
    tpu.vector_store %arg6[%c2_239, %c16_240], %138 {strides = array<i32>} : memref<4x256xbf16, #tpu.memory_space<vmem>>, vector<2x8xbf16>,
    %c0_241 = arith.constant 0 : index
    %c0_242 = arith.constant 0 : index
    %c1_243 = arith.constant 1 : index
    %c3_244 = arith.constant 3 : index
    %c0_245 = arith.constant 0 : index
    %c0_246 = arith.constant 0 : index
    %140 = vector.load %arg2[%c0_241, %c0_242, %c1_243, %c3_244, %c0_245, %c0_246] : memref<1x4x2x8x2x8xf32, #tpu.memory_space<vmem>>, vector<1x1x1x1x2x8xf32>
    %141 = vector.shape_cast %140 : vector<1x1x1x1x2x8xf32> to vector<2x8xf32>
    %142 = arith.truncf %141 : vector<2x8xf32> to vector<2x8xbf16>
    %c2_247 = arith.constant 2 : index
    %c24_248 = arith.constant 24 : index
    %143 = vector.load %arg6[%c2_247, %c24_248] : memref<4x256xbf16, #tpu.memory_space<vmem>>, vector<2x8xbf16>
    tpu.vector_store %arg6[%c2_247, %c24_248], %142 {strides = array<i32>} : memref<4x256xbf16, #tpu.memory_space<vmem>>, vector<2x8xbf16>,
    %c0_249 = arith.constant 0 : index
    %c0_250 = arith.constant 0 : index
    %c1_251 = arith.constant 1 : index
    %c4_252 = arith.constant 4 : index
    %c0_253 = arith.constant 0 : index
    %c0_254 = arith.constant 0 : index
    %144 = vector.load %arg2[%c0_249, %c0_250, %c1_251, %c4_252, %c0_253, %c0_254] : memref<1x4x2x8x2x8xf32, #tpu.memory_space<vmem>>, vector<1x1x1x1x2x8xf32>
    %145 = vector.shape_cast %144 : vector<1x1x1x1x2x8xf32> to vector<2x8xf32>
    %146 = arith.truncf %145 : vector<2x8xf32> to vector<2x8xbf16>
    %c2_255 = arith.constant 2 : index
    %c32_256 = arith.constant 32 : index
    %147 = vector.load %arg6[%c2_255, %c32_256] : memref<4x256xbf16, #tpu.memory_space<vmem>>, vector<2x8xbf16>
    tpu.vector_store %arg6[%c2_255, %c32_256], %146 {strides = array<i32>} : memref<4x256xbf16, #tpu.memory_space<vmem>>, vector<2x8xbf16>,
    %c0_257 = arith.constant 0 : index
    %c0_258 = arith.constant 0 : index
    %c1_259 = arith.constant 1 : index
    %c5_260 = arith.constant 5 : index
    %c0_261 = arith.constant 0 : index
    %c0_262 = arith.constant 0 : index
    %148 = vector.load %arg2[%c0_257, %c0_258, %c1_259, %c5_260, %c0_261, %c0_262] : memref<1x4x2x8x2x8xf32, #tpu.memory_space<vmem>>, vector<1x1x1x1x2x8xf32>
    %149 = vector.shape_cast %148 : vector<1x1x1x1x2x8xf32> to vector<2x8xf32>
    %150 = arith.truncf %149 : vector<2x8xf32> to vector<2x8xbf16>
    %c2_263 = arith.constant 2 : index
    %c40_264 = arith.constant 40 : index
    %151 = vector.load %arg6[%c2_263, %c40_264] : memref<4x256xbf16, #tpu.memory_space<vmem>>, vector<2x8xbf16>
    tpu.vector_store %arg6[%c2_263, %c40_264], %150 {strides = array<i32>} : memref<4x256xbf16, #tpu.memory_space<vmem>>, vector<2x8xbf16>,
    %c0_265 = arith.constant 0 : index
    %c0_266 = arith.constant 0 : index
    %c1_267 = arith.constant 1 : index
    %c6_268 = arith.constant 6 : index
    %c0_269 = arith.constant 0 : index
    %c0_270 = arith.constant 0 : index
    %152 = vector.load %arg2[%c0_265, %c0_266, %c1_267, %c6_268, %c0_269, %c0_270] : memref<1x4x2x8x2x8xf32, #tpu.memory_space<vmem>>, vector<1x1x1x1x2x8xf32>
    %153 = vector.shape_cast %152 : vector<1x1x1x1x2x8xf32> to vector<2x8xf32>
    %154 = arith.truncf %153 : vector<2x8xf32> to vector<2x8xbf16>
    %c2_271 = arith.constant 2 : index
    %c48_272 = arith.constant 48 : index
    %155 = vector.load %arg6[%c2_271, %c48_272] : memref<4x256xbf16, #tpu.memory_space<vmem>>, vector<2x8xbf16>
    tpu.vector_store %arg6[%c2_271, %c48_272], %154 {strides = array<i32>} : memref<4x256xbf16, #tpu.memory_space<vmem>>, vector<2x8xbf16>,
    %c0_273 = arith.constant 0 : index
    %c0_274 = arith.constant 0 : index
    %c1_275 = arith.constant 1 : index
    %c7_276 = arith.constant 7 : index
    %c0_277 = arith.constant 0 : index
    %c0_278 = arith.constant 0 : index
    %156 = vector.load %arg2[%c0_273, %c0_274, %c1_275, %c7_276, %c0_277, %c0_278] : memref<1x4x2x8x2x8xf32, #tpu.memory_space<vmem>>, vector<1x1x1x1x2x8xf32>
    %157 = vector.shape_cast %156 : vector<1x1x1x1x2x8xf32> to vector<2x8xf32>
    %158 = arith.truncf %157 : vector<2x8xf32> to vector<2x8xbf16>
    %c2_279 = arith.constant 2 : index
    %c56_280 = arith.constant 56 : index
    %159 = vector.load %arg6[%c2_279, %c56_280] : memref<4x256xbf16, #tpu.memory_space<vmem>>, vector<2x8xbf16>
    tpu.vector_store %arg6[%c2_279, %c56_280], %158 {strides = array<i32>} : memref<4x256xbf16, #tpu.memory_space<vmem>>, vector<2x8xbf16>,
    %c0_281 = arith.constant 0 : index
    %c1_282 = arith.constant 1 : index
    %c1_283 = arith.constant 1 : index
    %c0_284 = arith.constant 0 : index
    %c0_285 = arith.constant 0 : index
    %c0_286 = arith.constant 0 : index
    %160 = vector.load %arg2[%c0_281, %c1_282, %c1_283, %c0_284, %c0_285, %c0_286] : memref<1x4x2x8x2x8xf32, #tpu.memory_space<vmem>>, vector<1x1x1x1x2x8xf32>
    %161 = vector.shape_cast %160 : vector<1x1x1x1x2x8xf32> to vector<2x8xf32>
    %162 = arith.truncf %161 : vector<2x8xf32> to vector<2x8xbf16>
    %c2_287 = arith.constant 2 : index
    %c64_288 = arith.constant 64 : index
    %163 = vector.load %arg6[%c2_287, %c64_288] : memref<4x256xbf16, #tpu.memory_space<vmem>>, vector<2x8xbf16>
    tpu.vector_store %arg6[%c2_287, %c64_288], %162 {strides = array<i32>} : memref<4x256xbf16, #tpu.memory_space<vmem>>, vector<2x8xbf16>,
    %c0_289 = arith.constant 0 : index
    %c1_290 = arith.constant 1 : index
    %c1_291 = arith.constant 1 : index
    %c1_292 = arith.constant 1 : index
    %c0_293 = arith.constant 0 : index
    %c0_294 = arith.constant 0 : index
    %164 = vector.load %arg2[%c0_289, %c1_290, %c1_291, %c1_292, %c0_293, %c0_294] : memref<1x4x2x8x2x8xf32, #tpu.memory_space<vmem>>, vector<1x1x1x1x2x8xf32>
    %165 = vector.shape_cast %164 : vector<1x1x1x1x2x8xf32> to vector<2x8xf32>
    %166 = arith.truncf %165 : vector<2x8xf32> to vector<2x8xbf16>
    %c2_295 = arith.constant 2 : index
    %c72_296 = arith.constant 72 : index
    %167 = vector.load %arg6[%c2_295, %c72_296] : memref<4x256xbf16, #tpu.memory_space<vmem>>, vector<2x8xbf16>
    tpu.vector_store %arg6[%c2_295, %c72_296], %166 {strides = array<i32>} : memref<4x256xbf16, #tpu.memory_space<vmem>>, vector<2x8xbf16>,
    %c0_297 = arith.constant 0 : index
    %c1_298 = arith.constant 1 : index
    %c1_299 = arith.constant 1 : index
    %c2_300 = arith.constant 2 : index
    %c0_301 = arith.constant 0 : index
    %c0_302 = arith.constant 0 : index
    %168 = vector.load %arg2[%c0_297, %c1_298, %c1_299, %c2_300, %c0_301, %c0_302] : memref<1x4x2x8x2x8xf32, #tpu.memory_space<vmem>>, vector<1x1x1x1x2x8xf32>
    %169 = vector.shape_cast %168 : vector<1x1x1x1x2x8xf32> to vector<2x8xf32>
    %170 = arith.truncf %169 : vector<2x8xf32> to vector<2x8xbf16>
    %c2_303 = arith.constant 2 : index
    %c80_304 = arith.constant 80 : index
    %171 = vector.load %arg6[%c2_303, %c80_304] : memref<4x256xbf16, #tpu.memory_space<vmem>>, vector<2x8xbf16>
    tpu.vector_store %arg6[%c2_303, %c80_304], %170 {strides = array<i32>} : memref<4x256xbf16, #tpu.memory_space<vmem>>, vector<2x8xbf16>,
    %c0_305 = arith.constant 0 : index
    %c1_306 = arith.constant 1 : index
    %c1_307 = arith.constant 1 : index
    %c3_308 = arith.constant 3 : index
    %c0_309 = arith.constant 0 : index
    %c0_310 = arith.constant 0 : index
    %172 = vector.load %arg2[%c0_305, %c1_306, %c1_307, %c3_308, %c0_309, %c0_310] : memref<1x4x2x8x2x8xf32, #tpu.memory_space<vmem>>, vector<1x1x1x1x2x8xf32>
    %173 = vector.shape_cast %172 : vector<1x1x1x1x2x8xf32> to vector<2x8xf32>
    %174 = arith.truncf %173 : vector<2x8xf32> to vector<2x8xbf16>
    %c2_311 = arith.constant 2 : index
    %c88_312 = arith.constant 88 : index
    %175 = vector.load %arg6[%c2_311, %c88_312] : memref<4x256xbf16, #tpu.memory_space<vmem>>, vector<2x8xbf16>
    tpu.vector_store %arg6[%c2_311, %c88_312], %174 {strides = array<i32>} : memref<4x256xbf16, #tpu.memory_space<vmem>>, vector<2x8xbf16>,
    %c0_313 = arith.constant 0 : index
    %c1_314 = arith.constant 1 : index
    %c1_315 = arith.constant 1 : index
    %c4_316 = arith.constant 4 : index
    %c0_317 = arith.constant 0 : index
    %c0_318 = arith.constant 0 : index
    %176 = vector.load %arg2[%c0_313, %c1_314, %c1_315, %c4_316, %c0_317, %c0_318] : memref<1x4x2x8x2x8xf32, #tpu.memory_space<vmem>>, vector<1x1x1x1x2x8xf32>
    %177 = vector.shape_cast %176 : vector<1x1x1x1x2x8xf32> to vector<2x8xf32>
    %178 = arith.truncf %177 : vector<2x8xf32> to vector<2x8xbf16>
    %c2_319 = arith.constant 2 : index
    %c96_320 = arith.constant 96 : index
    %179 = vector.load %arg6[%c2_319, %c96_320] : memref<4x256xbf16, #tpu.memory_space<vmem>>, vector<2x8xbf16>
    tpu.vector_store %arg6[%c2_319, %c96_320], %178 {strides = array<i32>} : memref<4x256xbf16, #tpu.memory_space<vmem>>, vector<2x8xbf16>,
    %c0_321 = arith.constant 0 : index
    %c1_322 = arith.constant 1 : index
    %c1_323 = arith.constant 1 : index
    %c5_324 = arith.constant 5 : index
    %c0_325 = arith.constant 0 : index
    %c0_326 = arith.constant 0 : index
    %180 = vector.load %arg2[%c0_321, %c1_322, %c1_323, %c5_324, %c0_325, %c0_326] : memref<1x4x2x8x2x8xf32, #tpu.memory_space<vmem>>, vector<1x1x1x1x2x8xf32>
    %181 = vector.shape_cast %180 : vector<1x1x1x1x2x8xf32> to vector<2x8xf32>
    %182 = arith.truncf %181 : vector<2x8xf32> to vector<2x8xbf16>
    %c2_327 = arith.constant 2 : index
    %c104_328 = arith.constant 104 : index
    %183 = vector.load %arg6[%c2_327, %c104_328] : memref<4x256xbf16, #tpu.memory_space<vmem>>, vector<2x8xbf16>
    tpu.vector_store %arg6[%c2_327, %c104_328], %182 {strides = array<i32>} : memref<4x256xbf16, #tpu.memory_space<vmem>>, vector<2x8xbf16>,
    %c0_329 = arith.constant 0 : index
    %c1_330 = arith.constant 1 : index
    %c1_331 = arith.constant 1 : index
    %c6_332 = arith.constant 6 : index
    %c0_333 = arith.constant 0 : index
    %c0_334 = arith.constant 0 : index
    %184 = vector.load %arg2[%c0_329, %c1_330, %c1_331, %c6_332, %c0_333, %c0_334] : memref<1x4x2x8x2x8xf32, #tpu.memory_space<vmem>>, vector<1x1x1x1x2x8xf32>
    %185 = vector.shape_cast %184 : vector<1x1x1x1x2x8xf32> to vector<2x8xf32>
    %186 = arith.truncf %185 : vector<2x8xf32> to vector<2x8xbf16>
    %c2_335 = arith.constant 2 : index
    %c112_336 = arith.constant 112 : index
    %187 = vector.load %arg6[%c2_335, %c112_336] : memref<4x256xbf16, #tpu.memory_space<vmem>>, vector<2x8xbf16>
    tpu.vector_store %arg6[%c2_335, %c112_336], %186 {strides = array<i32>} : memref<4x256xbf16, #tpu.memory_space<vmem>>, vector<2x8xbf16>,
    %c0_337 = arith.constant 0 : index
    %c1_338 = arith.constant 1 : index
    %c1_339 = arith.constant 1 : index
    %c7_340 = arith.constant 7 : index
    %c0_341 = arith.constant 0 : index
    %c0_342 = arith.constant 0 : index
    %188 = vector.load %arg2[%c0_337, %c1_338, %c1_339, %c7_340, %c0_341, %c0_342] : memref<1x4x2x8x2x8xf32, #tpu.memory_space<vmem>>, vector<1x1x1x1x2x8xf32>
    %189 = vector.shape_cast %188 : vector<1x1x1x1x2x8xf32> to vector<2x8xf32>
    %190 = arith.truncf %189 : vector<2x8xf32> to vector<2x8xbf16>
    %c2_343 = arith.constant 2 : index
    %c120_344 = arith.constant 120 : index
    %191 = vector.load %arg6[%c2_343, %c120_344] : memref<4x256xbf16, #tpu.memory_space<vmem>>, vector<2x8xbf16>
    tpu.vector_store %arg6[%c2_343, %c120_344], %190 {strides = array<i32>} : memref<4x256xbf16, #tpu.memory_space<vmem>>, vector<2x8xbf16>,
    %c0_345 = arith.constant 0 : index
    %c2_346 = arith.constant 2 : index
    %c1_347 = arith.constant 1 : index
    %c0_348 = arith.constant 0 : index
    %c0_349 = arith.constant 0 : index
    %c0_350 = arith.constant 0 : index
    %192 = vector.load %arg2[%c0_345, %c2_346, %c1_347, %c0_348, %c0_349, %c0_350] : memref<1x4x2x8x2x8xf32, #tpu.memory_space<vmem>>, vector<1x1x1x1x2x8xf32>
    %193 = vector.shape_cast %192 : vector<1x1x1x1x2x8xf32> to vector<2x8xf32>
    %194 = arith.truncf %193 : vector<2x8xf32> to vector<2x8xbf16>
    %c2_351 = arith.constant 2 : index
    %c128_352 = arith.constant 128 : index
    %195 = vector.load %arg6[%c2_351, %c128_352] : memref<4x256xbf16, #tpu.memory_space<vmem>>, vector<2x8xbf16>
    tpu.vector_store %arg6[%c2_351, %c128_352], %194 {strides = array<i32>} : memref<4x256xbf16, #tpu.memory_space<vmem>>, vector<2x8xbf16>,
    %c0_353 = arith.constant 0 : index
    %c2_354 = arith.constant 2 : index
    %c1_355 = arith.constant 1 : index
    %c1_356 = arith.constant 1 : index
    %c0_357 = arith.constant 0 : index
    %c0_358 = arith.constant 0 : index
    %196 = vector.load %arg2[%c0_353, %c2_354, %c1_355, %c1_356, %c0_357, %c0_358] : memref<1x4x2x8x2x8xf32, #tpu.memory_space<vmem>>, vector<1x1x1x1x2x8xf32>
    %197 = vector.shape_cast %196 : vector<1x1x1x1x2x8xf32> to vector<2x8xf32>
    %198 = arith.truncf %197 : vector<2x8xf32> to vector<2x8xbf16>
    %c2_359 = arith.constant 2 : index
    %c136_360 = arith.constant 136 : index
    %199 = vector.load %arg6[%c2_359, %c136_360] : memref<4x256xbf16, #tpu.memory_space<vmem>>, vector<2x8xbf16>
    tpu.vector_store %arg6[%c2_359, %c136_360], %198 {strides = array<i32>} : memref<4x256xbf16, #tpu.memory_space<vmem>>, vector<2x8xbf16>,
    %c0_361 = arith.constant 0 : index
    %c2_362 = arith.constant 2 : index
    %c1_363 = arith.constant 1 : index
    %c2_364 = arith.constant 2 : index
    %c0_365 = arith.constant 0 : index
    %c0_366 = arith.constant 0 : index
    %200 = vector.load %arg2[%c0_361, %c2_362, %c1_363, %c2_364, %c0_365, %c0_366] : memref<1x4x2x8x2x8xf32, #tpu.memory_space<vmem>>, vector<1x1x1x1x2x8xf32>
    %201 = vector.shape_cast %200 : vector<1x1x1x1x2x8xf32> to vector<2x8xf32>
    %202 = arith.truncf %201 : vector<2x8xf32> to vector<2x8xbf16>
    %c2_367 = arith.constant 2 : index
    %c144_368 = arith.constant 144 : index
    %203 = vector.load %arg6[%c2_367, %c144_368] : memref<4x256xbf16, #tpu.memory_space<vmem>>, vector<2x8xbf16>
    tpu.vector_store %arg6[%c2_367, %c144_368], %202 {strides = array<i32>} : memref<4x256xbf16, #tpu.memory_space<vmem>>, vector<2x8xbf16>,
    %c0_369 = arith.constant 0 : index
    %c2_370 = arith.constant 2 : index
    %c1_371 = arith.constant 1 : index
    %c3_372 = arith.constant 3 : index
    %c0_373 = arith.constant 0 : index
    %c0_374 = arith.constant 0 : index
    %204 = vector.load %arg2[%c0_369, %c2_370, %c1_371, %c3_372, %c0_373, %c0_374] : memref<1x4x2x8x2x8xf32, #tpu.memory_space<vmem>>, vector<1x1x1x1x2x8xf32>
    %205 = vector.shape_cast %204 : vector<1x1x1x1x2x8xf32> to vector<2x8xf32>
    %206 = arith.truncf %205 : vector<2x8xf32> to vector<2x8xbf16>
    %c2_375 = arith.constant 2 : index
    %c152_376 = arith.constant 152 : index
    %207 = vector.load %arg6[%c2_375, %c152_376] : memref<4x256xbf16, #tpu.memory_space<vmem>>, vector<2x8xbf16>
    tpu.vector_store %arg6[%c2_375, %c152_376], %206 {strides = array<i32>} : memref<4x256xbf16, #tpu.memory_space<vmem>>, vector<2x8xbf16>,
    %c0_377 = arith.constant 0 : index
    %c2_378 = arith.constant 2 : index
    %c1_379 = arith.constant 1 : index
    %c4_380 = arith.constant 4 : index
    %c0_381 = arith.constant 0 : index
    %c0_382 = arith.constant 0 : index
    %208 = vector.load %arg2[%c0_377, %c2_378, %c1_379, %c4_380, %c0_381, %c0_382] : memref<1x4x2x8x2x8xf32, #tpu.memory_space<vmem>>, vector<1x1x1x1x2x8xf32>
    %209 = vector.shape_cast %208 : vector<1x1x1x1x2x8xf32> to vector<2x8xf32>
    %210 = arith.truncf %209 : vector<2x8xf32> to vector<2x8xbf16>
    %c2_383 = arith.constant 2 : index
    %c160_384 = arith.constant 160 : index
    %211 = vector.load %arg6[%c2_383, %c160_384] : memref<4x256xbf16, #tpu.memory_space<vmem>>, vector<2x8xbf16>
    tpu.vector_store %arg6[%c2_383, %c160_384], %210 {strides = array<i32>} : memref<4x256xbf16, #tpu.memory_space<vmem>>, vector<2x8xbf16>,
    %c0_385 = arith.constant 0 : index
    %c2_386 = arith.constant 2 : index
    %c1_387 = arith.constant 1 : index
    %c5_388 = arith.constant 5 : index
    %c0_389 = arith.constant 0 : index
    %c0_390 = arith.constant 0 : index
    %212 = vector.load %arg2[%c0_385, %c2_386, %c1_387, %c5_388, %c0_389, %c0_390] : memref<1x4x2x8x2x8xf32, #tpu.memory_space<vmem>>, vector<1x1x1x1x2x8xf32>
    %213 = vector.shape_cast %212 : vector<1x1x1x1x2x8xf32> to vector<2x8xf32>
    %214 = arith.truncf %213 : vector<2x8xf32> to vector<2x8xbf16>
    %c2_391 = arith.constant 2 : index
    %c168_392 = arith.constant 168 : index
    %215 = vector.load %arg6[%c2_391, %c168_392] : memref<4x256xbf16, #tpu.memory_space<vmem>>, vector<2x8xbf16>
    tpu.vector_store %arg6[%c2_391, %c168_392], %214 {strides = array<i32>} : memref<4x256xbf16, #tpu.memory_space<vmem>>, vector<2x8xbf16>,
    %c0_393 = arith.constant 0 : index
    %c2_394 = arith.constant 2 : index
    %c1_395 = arith.constant 1 : index
    %c6_396 = arith.constant 6 : index
    %c0_397 = arith.constant 0 : index
    %c0_398 = arith.constant 0 : index
    %216 = vector.load %arg2[%c0_393, %c2_394, %c1_395, %c6_396, %c0_397, %c0_398] : memref<1x4x2x8x2x8xf32, #tpu.memory_space<vmem>>, vector<1x1x1x1x2x8xf32>
    %217 = vector.shape_cast %216 : vector<1x1x1x1x2x8xf32> to vector<2x8xf32>
    %218 = arith.truncf %217 : vector<2x8xf32> to vector<2x8xbf16>
    %c2_399 = arith.constant 2 : index
    %c176_400 = arith.constant 176 : index
    %219 = vector.load %arg6[%c2_399, %c176_400] : memref<4x256xbf16, #tpu.memory_space<vmem>>, vector<2x8xbf16>
    tpu.vector_store %arg6[%c2_399, %c176_400], %218 {strides = array<i32>} : memref<4x256xbf16, #tpu.memory_space<vmem>>, vector<2x8xbf16>,
    %c0_401 = arith.constant 0 : index
    %c2_402 = arith.constant 2 : index
    %c1_403 = arith.constant 1 : index
    %c7_404 = arith.constant 7 : index
    %c0_405 = arith.constant 0 : index
    %c0_406 = arith.constant 0 : index
    %220 = vector.load %arg2[%c0_401, %c2_402, %c1_403, %c7_404, %c0_405, %c0_406] : memref<1x4x2x8x2x8xf32, #tpu.memory_space<vmem>>, vector<1x1x1x1x2x8xf32>
    %221 = vector.shape_cast %220 : vector<1x1x1x1x2x8xf32> to vector<2x8xf32>
    %222 = arith.truncf %221 : vector<2x8xf32> to vector<2x8xbf16>
    %c2_407 = arith.constant 2 : index
    %c184_408 = arith.constant 184 : index
    %223 = vector.load %arg6[%c2_407, %c184_408] : memref<4x256xbf16, #tpu.memory_space<vmem>>, vector<2x8xbf16>
    tpu.vector_store %arg6[%c2_407, %c184_408], %222 {strides = array<i32>} : memref<4x256xbf16, #tpu.memory_space<vmem>>, vector<2x8xbf16>,
    %c0_409 = arith.constant 0 : index
    %c3_410 = arith.constant 3 : index
    %c1_411 = arith.constant 1 : index
    %c0_412 = arith.constant 0 : index
    %c0_413 = arith.constant 0 : index
    %c0_414 = arith.constant 0 : index
    %224 = vector.load %arg2[%c0_409, %c3_410, %c1_411, %c0_412, %c0_413, %c0_414] : memref<1x4x2x8x2x8xf32, #tpu.memory_space<vmem>>, vector<1x1x1x1x2x8xf32>
    %225 = vector.shape_cast %224 : vector<1x1x1x1x2x8xf32> to vector<2x8xf32>
    %226 = arith.truncf %225 : vector<2x8xf32> to vector<2x8xbf16>
    %c2_415 = arith.constant 2 : index
    %c192_416 = arith.constant 192 : index
    %227 = vector.load %arg6[%c2_415, %c192_416] : memref<4x256xbf16, #tpu.memory_space<vmem>>, vector<2x8xbf16>
    tpu.vector_store %arg6[%c2_415, %c192_416], %226 {strides = array<i32>} : memref<4x256xbf16, #tpu.memory_space<vmem>>, vector<2x8xbf16>,
    %c0_417 = arith.constant 0 : index
    %c3_418 = arith.constant 3 : index
    %c1_419 = arith.constant 1 : index
    %c1_420 = arith.constant 1 : index
    %c0_421 = arith.constant 0 : index
    %c0_422 = arith.constant 0 : index
    %228 = vector.load %arg2[%c0_417, %c3_418, %c1_419, %c1_420, %c0_421, %c0_422] : memref<1x4x2x8x2x8xf32, #tpu.memory_space<vmem>>, vector<1x1x1x1x2x8xf32>
    %229 = vector.shape_cast %228 : vector<1x1x1x1x2x8xf32> to vector<2x8xf32>
    %230 = arith.truncf %229 : vector<2x8xf32> to vector<2x8xbf16>
    %c2_423 = arith.constant 2 : index
    %c200_424 = arith.constant 200 : index
    %231 = vector.load %arg6[%c2_423, %c200_424] : memref<4x256xbf16, #tpu.memory_space<vmem>>, vector<2x8xbf16>
    tpu.vector_store %arg6[%c2_423, %c200_424], %230 {strides = array<i32>} : memref<4x256xbf16, #tpu.memory_space<vmem>>, vector<2x8xbf16>,
    %c0_425 = arith.constant 0 : index
    %c3_426 = arith.constant 3 : index
    %c1_427 = arith.constant 1 : index
    %c2_428 = arith.constant 2 : index
    %c0_429 = arith.constant 0 : index
    %c0_430 = arith.constant 0 : index
    %232 = vector.load %arg2[%c0_425, %c3_426, %c1_427, %c2_428, %c0_429, %c0_430] : memref<1x4x2x8x2x8xf32, #tpu.memory_space<vmem>>, vector<1x1x1x1x2x8xf32>
    %233 = vector.shape_cast %232 : vector<1x1x1x1x2x8xf32> to vector<2x8xf32>
    %234 = arith.truncf %233 : vector<2x8xf32> to vector<2x8xbf16>
    %c2_431 = arith.constant 2 : index
    %c208_432 = arith.constant 208 : index
    %235 = vector.load %arg6[%c2_431, %c208_432] : memref<4x256xbf16, #tpu.memory_space<vmem>>, vector<2x8xbf16>
    tpu.vector_store %arg6[%c2_431, %c208_432], %234 {strides = array<i32>} : memref<4x256xbf16, #tpu.memory_space<vmem>>, vector<2x8xbf16>,
    %c0_433 = arith.constant 0 : index
    %c3_434 = arith.constant 3 : index
    %c1_435 = arith.constant 1 : index
    %c3_436 = arith.constant 3 : index
    %c0_437 = arith.constant 0 : index
    %c0_438 = arith.constant 0 : index
    %236 = vector.load %arg2[%c0_433, %c3_434, %c1_435, %c3_436, %c0_437, %c0_438] : memref<1x4x2x8x2x8xf32, #tpu.memory_space<vmem>>, vector<1x1x1x1x2x8xf32>
    %237 = vector.shape_cast %236 : vector<1x1x1x1x2x8xf32> to vector<2x8xf32>
    %238 = arith.truncf %237 : vector<2x8xf32> to vector<2x8xbf16>
    %c2_439 = arith.constant 2 : index
    %c216_440 = arith.constant 216 : index
    %239 = vector.load %arg6[%c2_439, %c216_440] : memref<4x256xbf16, #tpu.memory_space<vmem>>, vector<2x8xbf16>
    tpu.vector_store %arg6[%c2_439, %c216_440], %238 {strides = array<i32>} : memref<4x256xbf16, #tpu.memory_space<vmem>>, vector<2x8xbf16>,
    %c0_441 = arith.constant 0 : index
    %c3_442 = arith.constant 3 : index
    %c1_443 = arith.constant 1 : index
    %c4_444 = arith.constant 4 : index
    %c0_445 = arith.constant 0 : index
    %c0_446 = arith.constant 0 : index
    %240 = vector.load %arg2[%c0_441, %c3_442, %c1_443, %c4_444, %c0_445, %c0_446] : memref<1x4x2x8x2x8xf32, #tpu.memory_space<vmem>>, vector<1x1x1x1x2x8xf32>
    %241 = vector.shape_cast %240 : vector<1x1x1x1x2x8xf32> to vector<2x8xf32>
    %242 = arith.truncf %241 : vector<2x8xf32> to vector<2x8xbf16>
    %c2_447 = arith.constant 2 : index
    %c224_448 = arith.constant 224 : index
    %243 = vector.load %arg6[%c2_447, %c224_448] : memref<4x256xbf16, #tpu.memory_space<vmem>>, vector<2x8xbf16>
    tpu.vector_store %arg6[%c2_447, %c224_448], %242 {strides = array<i32>} : memref<4x256xbf16, #tpu.memory_space<vmem>>, vector<2x8xbf16>,
    %c0_449 = arith.constant 0 : index
    %c3_450 = arith.constant 3 : index
    %c1_451 = arith.constant 1 : index
    %c5_452 = arith.constant 5 : index
    %c0_453 = arith.constant 0 : index
    %c0_454 = arith.constant 0 : index
    %244 = vector.load %arg2[%c0_449, %c3_450, %c1_451, %c5_452, %c0_453, %c0_454] : memref<1x4x2x8x2x8xf32, #tpu.memory_space<vmem>>, vector<1x1x1x1x2x8xf32>
    %245 = vector.shape_cast %244 : vector<1x1x1x1x2x8xf32> to vector<2x8xf32>
    %246 = arith.truncf %245 : vector<2x8xf32> to vector<2x8xbf16>
    %c2_455 = arith.constant 2 : index
    %c232_456 = arith.constant 232 : index
    %247 = vector.load %arg6[%c2_455, %c232_456] : memref<4x256xbf16, #tpu.memory_space<vmem>>, vector<2x8xbf16>
    tpu.vector_store %arg6[%c2_455, %c232_456], %246 {strides = array<i32>} : memref<4x256xbf16, #tpu.memory_space<vmem>>, vector<2x8xbf16>,
    %c0_457 = arith.constant 0 : index
    %c3_458 = arith.constant 3 : index
    %c1_459 = arith.constant 1 : index
    %c6_460 = arith.constant 6 : index
    %c0_461 = arith.constant 0 : index
    %c0_462 = arith.constant 0 : index
    %248 = vector.load %arg2[%c0_457, %c3_458, %c1_459, %c6_460, %c0_461, %c0_462] : memref<1x4x2x8x2x8xf32, #tpu.memory_space<vmem>>, vector<1x1x1x1x2x8xf32>
    %249 = vector.shape_cast %248 : vector<1x1x1x1x2x8xf32> to vector<2x8xf32>
    %250 = arith.truncf %249 : vector<2x8xf32> to vector<2x8xbf16>
    %c2_463 = arith.constant 2 : index
    %c240_464 = arith.constant 240 : index
    %251 = vector.load %arg6[%c2_463, %c240_464] : memref<4x256xbf16, #tpu.memory_space<vmem>>, vector<2x8xbf16>
    tpu.vector_store %arg6[%c2_463, %c240_464], %250 {strides = array<i32>} : memref<4x256xbf16, #tpu.memory_space<vmem>>, vector<2x8xbf16>,
    %c0_465 = arith.constant 0 : index
    %c3_466 = arith.constant 3 : index
    %c1_467 = arith.constant 1 : index
    %c7_468 = arith.constant 7 : index
    %c0_469 = arith.constant 0 : index
    %c0_470 = arith.constant 0 : index
    %252 = vector.load %arg2[%c0_465, %c3_466, %c1_467, %c7_468, %c0_469, %c0_470] : memref<1x4x2x8x2x8xf32, #tpu.memory_space<vmem>>, vector<1x1x1x1x2x8xf32>
    %253 = vector.shape_cast %252 : vector<1x1x1x1x2x8xf32> to vector<2x8xf32>
    %254 = arith.truncf %253 : vector<2x8xf32> to vector<2x8xbf16>
    %c2_471 = arith.constant 2 : index
    %c248_472 = arith.constant 248 : index
    %255 = vector.load %arg6[%c2_471, %c248_472] : memref<4x256xbf16, #tpu.memory_space<vmem>>, vector<2x8xbf16>
    tpu.vector_store %arg6[%c2_471, %c248_472], %254 {strides = array<i32>} : memref<4x256xbf16, #tpu.memory_space<vmem>>, vector<2x8xbf16>,
    %c0_473 = arith.constant 0 : index
    %c0_474 = arith.constant 0 : index
    %256 = vector.load %arg6[%c0_473, %c0_474] : memref<4x256xbf16, #tpu.memory_space<vmem>>, vector<4x256xbf16>
    %c0_475 = arith.constant 0 : index
    %c0_476 = arith.constant 0 : index
    %257 = vector.load %arg3[%c0_475, %c0_476] : memref<256x128xbf16, #tpu.memory_space<vmem>>, vector<256x128xbf16>
    %cst = arith.constant dense<0.000000e+00> : vector<4x128xf32>
    %258 = tpu.matmul %256, %257, %cst {dimension_numbers = #tpu.dot_dimension_numbers<[1], [0], [0], [1], [0, 0, 1, 1], [], []>} : vector<4x256xbf16>, vector<256x128xbf16>, vector<4x128xf32> -> vector<4x128xf32>
    %c0_477 = arith.constant 0 : index
    %c0_478 = arith.constant 0 : index
    %259 = vector.load %arg4[%c0_477, %c0_478] : memref<1x128xf32, #tpu.memory_space<vmem>>, vector<1x128xf32>
    %260 = vector.broadcast %259 : vector<1x128xf32> to vector<4x128xf32>
    %261 = arith.addf %258, %260 : vector<4x128xf32>
    %cst_479 = arith.constant 0.000000e+00 : f32
    %262 = vector.broadcast %cst_479 : f32 to vector<4x128xf32>
    %263 = arith.maximumf %261, %262 : vector<4x128xf32>
    %264 = arith.truncf %263 : vector<4x128xf32> to vector<4x128xbf16>
    %c0_480 = arith.constant 0 : index
    %c0_481 = arith.constant 0 : index
    %c0_482 = arith.constant 0 : index
    %265 = vector.load %arg5[%c0_480, %c0_481, %c0_482] : memref<1x4x128xbf16, #tpu.memory_space<vmem>>, vector<1x4x128xbf16>
    %266 = vector.shape_cast %265 : vector<1x4x128xbf16> to vector<4x128xbf16>
    %267 = vector.shape_cast %264 : vector<4x128xbf16> to vector<1x4x128xbf16>
    tpu.vector_store %arg5[%c0_480, %c0_481, %c0_482], %267 {strides = array<i32>} : memref<1x4x128xbf16, #tpu.memory_space<vmem>>, vector<1x4x128xbf16>,
    return
  }
  func.func @transform_0(%arg0: i32, %arg1: i32) -> (i32, i32, i32, i32, i32, i32) {
    %c0_i32 = arith.constant 0 : i32
    %c0_i32_0 = arith.constant 0 : i32
    %c0_i32_1 = arith.constant 0 : i32
    %c0_i32_2 = arith.constant 0 : i32
    %c0_i32_3 = arith.constant 0 : i32
    return %arg0, %c0_i32, %arg1, %c0_i32_0, %c0_i32_1, %c0_i32_2 : i32, i32, i32, i32, i32, i32
  }
  func.func @transform_1(%arg0: i32, %arg1: i32) -> (i32, i32) {
    %c0_i32 = arith.constant 0 : i32
    %c0_i32_0 = arith.constant 0 : i32
    %c0_i32_1 = arith.constant 0 : i32
    return %c0_i32, %c0_i32_0 : i32, i32
  }
  func.func @transform_2(%arg0: i32, %arg1: i32) -> (i32, i32) {
    %c0_i32 = arith.constant 0 : i32
    %c0_i32_0 = arith.constant 0 : i32
    %c0_i32_1 = arith.constant 0 : i32
    return %c0_i32, %c0_i32_0 : i32, i32
  }
  func.func @transform_3(%arg0: i32, %arg1: i32) -> (i32, i32, i32) {
    %c0_i32 = arith.constant 0 : i32
    %c0_i32_0 = arith.constant 0 : i32
    return %arg0, %arg1, %c0_i32 : i32, i32, i32
  }
}

module attributes {stable_mosaic.version = 11 : i64} {
  func.func @_patchify_conv_kernel(%arg0: i32, %arg1: i32, %arg2: memref<1x4x2x8x2x8xf32, #tpu.memory_space<vmem>>, %arg3: memref<256x128xbf16, #tpu.memory_space<vmem>>, %arg4: memref<1x128xf32, #tpu.memory_space<vmem>>, %arg5: memref<1x4x128xbf16, #tpu.memory_space<vmem>>, %arg6: memref<4x256xbf16, #tpu.memory_space<vmem>>) attributes {dimension_semantics = [#tpu.dimension_semantics<parallel>, #tpu.dimension_semantics<parallel>], iteration_bounds = array<i64: 2, 1>, scalar_prefetch = 0 : i64, scratch_operands = 1 : i64, tpu.core_type = #tpu.core_type<tc>, window_params = [{transform_indices = @transform_0, window_bounds = array<i64: 1, 4, 2, 8, 2, 8>}, {pipeline_mode = #tpu.pipeline_mode<synchronous>, transform_indices = @transform_1, window_bounds = array<i64: 256, 128>}, {pipeline_mode = #tpu.pipeline_mode<synchronous>, transform_indices = @transform_2, window_bounds = array<i64: 1, 128>}, {transform_indices = @transform_3, window_bounds = array<i64: 1, 4, 128>}]} {
    %c0 = arith.constant 0 : index
    %c0_0 = arith.constant 0 : index
    %c0_1 = arith.constant 0 : index
    %c0_2 = arith.constant 0 : index
    %c0_3 = arith.constant 0 : index
    %c0_4 = arith.constant 0 : index
    %0 = vector.load %arg2[%c0, %c0_0, %c0_1, %c0_2, %c0_3, %c0_4] : memref<1x4x2x8x2x8xf32, #tpu.memory_space<vmem>>, vector<1x1x1x1x2x8xf32>
    %1 = vector.shape_cast %0 : vector<1x1x1x1x2x8xf32> to vector<2x8xf32>
    %2 = arith.truncf %1 : vector<2x8xf32> to vector<2x8xbf16>
    %c0_5 = arith.constant 0 : index
    %c0_6 = arith.constant 0 : index
    %3 = vector.load %arg6[%c0_5, %c0_6] : memref<4x256xbf16, #tpu.memory_space<vmem>>, vector<2x8xbf16>
    tpu.vector_store %arg6[%c0_5, %c0_6], %2 {strides = array<i32>} : memref<4x256xbf16, #tpu.memory_space<vmem>>, vector<2x8xbf16>,
    %c0_7 = arith.constant 0 : index
    %c0_8 = arith.constant 0 : index
    %c0_9 = arith.constant 0 : index
    %c1 = arith.constant 1 : index
    %c0_10 = arith.constant 0 : index
    %c0_11 = arith.constant 0 : index
    %4 = vector.load %arg2[%c0_7, %c0_8, %c0_9, %c1, %c0_10, %c0_11] : memref<1x4x2x8x2x8xf32, #tpu.memory_space<vmem>>, vector<1x1x1x1x2x8xf32>
    %5 = vector.shape_cast %4 : vector<1x1x1x1x2x8xf32> to vector<2x8xf32>
    %6 = arith.truncf %5 : vector<2x8xf32> to vector<2x8xbf16>
    %c0_12 = arith.constant 0 : index
    %c8 = arith.constant 8 : index
    %7 = vector.load %arg6[%c0_12, %c8] : memref<4x256xbf16, #tpu.memory_space<vmem>>, vector<2x8xbf16>
    tpu.vector_store %arg6[%c0_12, %c8], %6 {strides = array<i32>} : memref<4x256xbf16, #tpu.memory_space<vmem>>, vector<2x8xbf16>,
    %c0_13 = arith.constant 0 : index
    %c0_14 = arith.constant 0 : index
    %c0_15 = arith.constant 0 : index
    %c2 = arith.constant 2 : index
    %c0_16 = arith.constant 0 : index
    %c0_17 = arith.constant 0 : index
    %8 = vector.load %arg2[%c0_13, %c0_14, %c0_15, %c2, %c0_16, %c0_17] : memref<1x4x2x8x2x8xf32, #tpu.memory_space<vmem>>, vector<1x1x1x1x2x8xf32>
    %9 = vector.shape_cast %8 : vector<1x1x1x1x2x8xf32> to vector<2x8xf32>
    %10 = arith.truncf %9 : vector<2x8xf32> to vector<2x8xbf16>
    %c0_18 = arith.constant 0 : index
    %c16 = arith.constant 16 : index
    %11 = vector.load %arg6[%c0_18, %c16] : memref<4x256xbf16, #tpu.memory_space<vmem>>, vector<2x8xbf16>
    tpu.vector_store %arg6[%c0_18, %c16], %10 {strides = array<i32>} : memref<4x256xbf16, #tpu.memory_space<vmem>>, vector<2x8xbf16>,
    %c0_19 = arith.constant 0 : index
    %c0_20 = arith.constant 0 : index
    %c0_21 = arith.constant 0 : index
    %c3 = arith.constant 3 : index
    %c0_22 = arith.constant 0 : index
    %c0_23 = arith.constant 0 : index
    %12 = vector.load %arg2[%c0_19, %c0_20, %c0_21, %c3, %c0_22, %c0_23] : memref<1x4x2x8x2x8xf32, #tpu.memory_space<vmem>>, vector<1x1x1x1x2x8xf32>
    %13 = vector.shape_cast %12 : vector<1x1x1x1x2x8xf32> to vector<2x8xf32>
    %14 = arith.truncf %13 : vector<2x8xf32> to vector<2x8xbf16>
    %c0_24 = arith.constant 0 : index
    %c24 = arith.constant 24 : index
    %15 = vector.load %arg6[%c0_24, %c24] : memref<4x256xbf16, #tpu.memory_space<vmem>>, vector<2x8xbf16>
    tpu.vector_store %arg6[%c0_24, %c24], %14 {strides = array<i32>} : memref<4x256xbf16, #tpu.memory_space<vmem>>, vector<2x8xbf16>,
    %c0_25 = arith.constant 0 : index
    %c0_26 = arith.constant 0 : index
    %c0_27 = arith.constant 0 : index
    %c4 = arith.constant 4 : index
    %c0_28 = arith.constant 0 : index
    %c0_29 = arith.constant 0 : index
    %16 = vector.load %arg2[%c0_25, %c0_26, %c0_27, %c4, %c0_28, %c0_29] : memref<1x4x2x8x2x8xf32, #tpu.memory_space<vmem>>, vector<1x1x1x1x2x8xf32>
    %17 = vector.shape_cast %16 : vector<1x1x1x1x2x8xf32> to vector<2x8xf32>
    %18 = arith.truncf %17 : vector<2x8xf32> to vector<2x8xbf16>
    %c0_30 = arith.constant 0 : index
    %c32 = arith.constant 32 : index
    %19 = vector.load %arg6[%c0_30, %c32] : memref<4x256xbf16, #tpu.memory_space<vmem>>, vector<2x8xbf16>
    tpu.vector_store %arg6[%c0_30, %c32], %18 {strides = array<i32>} : memref<4x256xbf16, #tpu.memory_space<vmem>>, vector<2x8xbf16>,
    %c0_31 = arith.constant 0 : index
    %c0_32 = arith.constant 0 : index
    %c0_33 = arith.constant 0 : index
    %c5 = arith.constant 5 : index
    %c0_34 = arith.constant 0 : index
    %c0_35 = arith.constant 0 : index
    %20 = vector.load %arg2[%c0_31, %c0_32, %c0_33, %c5, %c0_34, %c0_35] : memref<1x4x2x8x2x8xf32, #tpu.memory_space<vmem>>, vector<1x1x1x1x2x8xf32>
    %21 = vector.shape_cast %20 : vector<1x1x1x1x2x8xf32> to vector<2x8xf32>
    %22 = arith.truncf %21 : vector<2x8xf32> to vector<2x8xbf16>
    %c0_36 = arith.constant 0 : index
    %c40 = arith.constant 40 : index
    %23 = vector.load %arg6[%c0_36, %c40] : memref<4x256xbf16, #tpu.memory_space<vmem>>, vector<2x8xbf16>
    tpu.vector_store %arg6[%c0_36, %c40], %22 {strides = array<i32>} : memref<4x256xbf16, #tpu.memory_space<vmem>>, vector<2x8xbf16>,
    %c0_37 = arith.constant 0 : index
    %c0_38 = arith.constant 0 : index
    %c0_39 = arith.constant 0 : index
    %c6 = arith.constant 6 : index
    %c0_40 = arith.constant 0 : index
    %c0_41 = arith.constant 0 : index
    %24 = vector.load %arg2[%c0_37, %c0_38, %c0_39, %c6, %c0_40, %c0_41] : memref<1x4x2x8x2x8xf32, #tpu.memory_space<vmem>>, vector<1x1x1x1x2x8xf32>
    %25 = vector.shape_cast %24 : vector<1x1x1x1x2x8xf32> to vector<2x8xf32>
    %26 = arith.truncf %25 : vector<2x8xf32> to vector<2x8xbf16>
    %c0_42 = arith.constant 0 : index
    %c48 = arith.constant 48 : index
    %27 = vector.load %arg6[%c0_42, %c48] : memref<4x256xbf16, #tpu.memory_space<vmem>>, vector<2x8xbf16>
    tpu.vector_store %arg6[%c0_42, %c48], %26 {strides = array<i32>} : memref<4x256xbf16, #tpu.memory_space<vmem>>, vector<2x8xbf16>,
    %c0_43 = arith.constant 0 : index
    %c0_44 = arith.constant 0 : index
    %c0_45 = arith.constant 0 : index
    %c7 = arith.constant 7 : index
    %c0_46 = arith.constant 0 : index
    %c0_47 = arith.constant 0 : index
    %28 = vector.load %arg2[%c0_43, %c0_44, %c0_45, %c7, %c0_46, %c0_47] : memref<1x4x2x8x2x8xf32, #tpu.memory_space<vmem>>, vector<1x1x1x1x2x8xf32>
    %29 = vector.shape_cast %28 : vector<1x1x1x1x2x8xf32> to vector<2x8xf32>
    %30 = arith.truncf %29 : vector<2x8xf32> to vector<2x8xbf16>
    %c0_48 = arith.constant 0 : index
    %c56 = arith.constant 56 : index
    %31 = vector.load %arg6[%c0_48, %c56] : memref<4x256xbf16, #tpu.memory_space<vmem>>, vector<2x8xbf16>
    tpu.vector_store %arg6[%c0_48, %c56], %30 {strides = array<i32>} : memref<4x256xbf16, #tpu.memory_space<vmem>>, vector<2x8xbf16>,
    %c0_49 = arith.constant 0 : index
    %c1_50 = arith.constant 1 : index
    %c0_51 = arith.constant 0 : index
    %c0_52 = arith.constant 0 : index
    %c0_53 = arith.constant 0 : index
    %c0_54 = arith.constant 0 : index
    %32 = vector.load %arg2[%c0_49, %c1_50, %c0_51, %c0_52, %c0_53, %c0_54] : memref<1x4x2x8x2x8xf32, #tpu.memory_space<vmem>>, vector<1x1x1x1x2x8xf32>
    %33 = vector.shape_cast %32 : vector<1x1x1x1x2x8xf32> to vector<2x8xf32>
    %34 = arith.truncf %33 : vector<2x8xf32> to vector<2x8xbf16>
    %c0_55 = arith.constant 0 : index
    %c64 = arith.constant 64 : index
    %35 = vector.load %arg6[%c0_55, %c64] : memref<4x256xbf16, #tpu.memory_space<vmem>>, vector<2x8xbf16>
    tpu.vector_store %arg6[%c0_55, %c64], %34 {strides = array<i32>} : memref<4x256xbf16, #tpu.memory_space<vmem>>, vector<2x8xbf16>,
    %c0_56 = arith.constant 0 : index
    %c1_57 = arith.constant 1 : index
    %c0_58 = arith.constant 0 : index
    %c1_59 = arith.constant 1 : index
    %c0_60 = arith.constant 0 : index
    %c0_61 = arith.constant 0 : index
    %36 = vector.load %arg2[%c0_56, %c1_57, %c0_58, %c1_59, %c0_60, %c0_61] : memref<1x4x2x8x2x8xf32, #tpu.memory_space<vmem>>, vector<1x1x1x1x2x8xf32>
    %37 = vector.shape_cast %36 : vector<1x1x1x1x2x8xf32> to vector<2x8xf32>
    %38 = arith.truncf %37 : vector<2x8xf32> to vector<2x8xbf16>
    %c0_62 = arith.constant 0 : index
    %c72 = arith.constant 72 : index
    %39 = vector.load %arg6[%c0_62, %c72] : memref<4x256xbf16, #tpu.memory_space<vmem>>, vector<2x8xbf16>
    tpu.vector_store %arg6[%c0_62, %c72], %38 {strides = array<i32>} : memref<4x256xbf16, #tpu.memory_space<vmem>>, vector<2x8xbf16>,
    %c0_63 = arith.constant 0 : index
    %c1_64 = arith.constant 1 : index
    %c0_65 = arith.constant 0 : index
    %c2_66 = arith.constant 2 : index
    %c0_67 = arith.constant 0 : index
    %c0_68 = arith.constant 0 : index
    %40 = vector.load %arg2[%c0_63, %c1_64, %c0_65, %c2_66, %c0_67, %c0_68] : memref<1x4x2x8x2x8xf32, #tpu.memory_space<vmem>>, vector<1x1x1x1x2x8xf32>
    %41 = vector.shape_cast %40 : vector<1x1x1x1x2x8xf32> to vector<2x8xf32>
    %42 = arith.truncf %41 : vector<2x8xf32> to vector<2x8xbf16>
    %c0_69 = arith.constant 0 : index
    %c80 = arith.constant 80 : index
    %43 = vector.load %arg6[%c0_69, %c80] : memref<4x256xbf16, #tpu.memory_space<vmem>>, vector<2x8xbf16>
    tpu.vector_store %arg6[%c0_69, %c80], %42 {strides = array<i32>} : memref<4x256xbf16, #tpu.memory_space<vmem>>, vector<2x8xbf16>,
    %c0_70 = arith.constant 0 : index
    %c1_71 = arith.constant 1 : index
    %c0_72 = arith.constant 0 : index
    %c3_73 = arith.constant 3 : index
    %c0_74 = arith.constant 0 : index
    %c0_75 = arith.constant 0 : index
    %44 = vector.load %arg2[%c0_70, %c1_71, %c0_72, %c3_73, %c0_74, %c0_75] : memref<1x4x2x8x2x8xf32, #tpu.memory_space<vmem>>, vector<1x1x1x1x2x8xf32>
    %45 = vector.shape_cast %44 : vector<1x1x1x1x2x8xf32> to vector<2x8xf32>
    %46 = arith.truncf %45 : vector<2x8xf32> to vector<2x8xbf16>
    %c0_76 = arith.constant 0 : index
    %c88 = arith.constant 88 : index
    %47 = vector.load %arg6[%c0_76, %c88] : memref<4x256xbf16, #tpu.memory_space<vmem>>, vector<2x8xbf16>
    tpu.vector_store %arg6[%c0_76, %c88], %46 {strides = array<i32>} : memref<4x256xbf16, #tpu.memory_space<vmem>>, vector<2x8xbf16>,
    %c0_77 = arith.constant 0 : index
    %c1_78 = arith.constant 1 : index
    %c0_79 = arith.constant 0 : index
    %c4_80 = arith.constant 4 : index
    %c0_81 = arith.constant 0 : index
    %c0_82 = arith.constant 0 : index
    %48 = vector.load %arg2[%c0_77, %c1_78, %c0_79, %c4_80, %c0_81, %c0_82] : memref<1x4x2x8x2x8xf32, #tpu.memory_space<vmem>>, vector<1x1x1x1x2x8xf32>
    %49 = vector.shape_cast %48 : vector<1x1x1x1x2x8xf32> to vector<2x8xf32>
    %50 = arith.truncf %49 : vector<2x8xf32> to vector<2x8xbf16>
    %c0_83 = arith.constant 0 : index
    %c96 = arith.constant 96 : index
    %51 = vector.load %arg6[%c0_83, %c96] : memref<4x256xbf16, #tpu.memory_space<vmem>>, vector<2x8xbf16>
    tpu.vector_store %arg6[%c0_83, %c96], %50 {strides = array<i32>} : memref<4x256xbf16, #tpu.memory_space<vmem>>, vector<2x8xbf16>,
    %c0_84 = arith.constant 0 : index
    %c1_85 = arith.constant 1 : index
    %c0_86 = arith.constant 0 : index
    %c5_87 = arith.constant 5 : index
    %c0_88 = arith.constant 0 : index
    %c0_89 = arith.constant 0 : index
    %52 = vector.load %arg2[%c0_84, %c1_85, %c0_86, %c5_87, %c0_88, %c0_89] : memref<1x4x2x8x2x8xf32, #tpu.memory_space<vmem>>, vector<1x1x1x1x2x8xf32>
    %53 = vector.shape_cast %52 : vector<1x1x1x1x2x8xf32> to vector<2x8xf32>
    %54 = arith.truncf %53 : vector<2x8xf32> to vector<2x8xbf16>
    %c0_90 = arith.constant 0 : index
    %c104 = arith.constant 104 : index
    %55 = vector.load %arg6[%c0_90, %c104] : memref<4x256xbf16, #tpu.memory_space<vmem>>, vector<2x8xbf16>
    tpu.vector_store %arg6[%c0_90, %c104], %54 {strides = array<i32>} : memref<4x256xbf16, #tpu.memory_space<vmem>>, vector<2x8xbf16>,
    %c0_91 = arith.constant 0 : index
    %c1_92 = arith.constant 1 : index
    %c0_93 = arith.constant 0 : index
    %c6_94 = arith.constant 6 : index
    %c0_95 = arith.constant 0 : index
    %c0_96 = arith.constant 0 : index
    %56 = vector.load %arg2[%c0_91, %c1_92, %c0_93, %c6_94, %c0_95, %c0_96] : memref<1x4x2x8x2x8xf32, #tpu.memory_space<vmem>>, vector<1x1x1x1x2x8xf32>
    %57 = vector.shape_cast %56 : vector<1x1x1x1x2x8xf32> to vector<2x8xf32>
    %58 = arith.truncf %57 : vector<2x8xf32> to vector<2x8xbf16>
    %c0_97 = arith.constant 0 : index
    %c112 = arith.constant 112 : index
    %59 = vector.load %arg6[%c0_97, %c112] : memref<4x256xbf16, #tpu.memory_space<vmem>>, vector<2x8xbf16>
    tpu.vector_store %arg6[%c0_97, %c112], %58 {strides = array<i32>} : memref<4x256xbf16, #tpu.memory_space<vmem>>, vector<2x8xbf16>,
    %c0_98 = arith.constant 0 : index
    %c1_99 = arith.constant 1 : index
    %c0_100 = arith.constant 0 : index
    %c7_101 = arith.constant 7 : index
    %c0_102 = arith.constant 0 : index
    %c0_103 = arith.constant 0 : index
    %60 = vector.load %arg2[%c0_98, %c1_99, %c0_100, %c7_101, %c0_102, %c0_103] : memref<1x4x2x8x2x8xf32, #tpu.memory_space<vmem>>, vector<1x1x1x1x2x8xf32>
    %61 = vector.shape_cast %60 : vector<1x1x1x1x2x8xf32> to vector<2x8xf32>
    %62 = arith.truncf %61 : vector<2x8xf32> to vector<2x8xbf16>
    %c0_104 = arith.constant 0 : index
    %c120 = arith.constant 120 : index
    %63 = vector.load %arg6[%c0_104, %c120] : memref<4x256xbf16, #tpu.memory_space<vmem>>, vector<2x8xbf16>
    tpu.vector_store %arg6[%c0_104, %c120], %62 {strides = array<i32>} : memref<4x256xbf16, #tpu.memory_space<vmem>>, vector<2x8xbf16>,
    %c0_105 = arith.constant 0 : index
    %c2_106 = arith.constant 2 : index
    %c0_107 = arith.constant 0 : index
    %c0_108 = arith.constant 0 : index
    %c0_109 = arith.constant 0 : index
    %c0_110 = arith.constant 0 : index
    %64 = vector.load %arg2[%c0_105, %c2_106, %c0_107, %c0_108, %c0_109, %c0_110] : memref<1x4x2x8x2x8xf32, #tpu.memory_space<vmem>>, vector<1x1x1x1x2x8xf32>
    %65 = vector.shape_cast %64 : vector<1x1x1x1x2x8xf32> to vector<2x8xf32>
    %66 = arith.truncf %65 : vector<2x8xf32> to vector<2x8xbf16>
    %c0_111 = arith.constant 0 : index
    %c128 = arith.constant 128 : index
    %67 = vector.load %arg6[%c0_111, %c128] : memref<4x256xbf16, #tpu.memory_space<vmem>>, vector<2x8xbf16>
    tpu.vector_store %arg6[%c0_111, %c128], %66 {strides = array<i32>} : memref<4x256xbf16, #tpu.memory_space<vmem>>, vector<2x8xbf16>,
    %c0_112 = arith.constant 0 : index
    %c2_113 = arith.constant 2 : index
    %c0_114 = arith.constant 0 : index
    %c1_115 = arith.constant 1 : index
    %c0_116 = arith.constant 0 : index
    %c0_117 = arith.constant 0 : index
    %68 = vector.load %arg2[%c0_112, %c2_113, %c0_114, %c1_115, %c0_116, %c0_117] : memref<1x4x2x8x2x8xf32, #tpu.memory_space<vmem>>, vector<1x1x1x1x2x8xf32>
    %69 = vector.shape_cast %68 : vector<1x1x1x1x2x8xf32> to vector<2x8xf32>
    %70 = arith.truncf %69 : vector<2x8xf32> to vector<2x8xbf16>
    %c0_118 = arith.constant 0 : index
    %c136 = arith.constant 136 : index
    %71 = vector.load %arg6[%c0_118, %c136] : memref<4x256xbf16, #tpu.memory_space<vmem>>, vector<2x8xbf16>
    tpu.vector_store %arg6[%c0_118, %c136], %70 {strides = array<i32>} : memref<4x256xbf16, #tpu.memory_space<vmem>>, vector<2x8xbf16>,
    %c0_119 = arith.constant 0 : index
    %c2_120 = arith.constant 2 : index
    %c0_121 = arith.constant 0 : index
    %c2_122 = arith.constant 2 : index
    %c0_123 = arith.constant 0 : index
    %c0_124 = arith.constant 0 : index
    %72 = vector.load %arg2[%c0_119, %c2_120, %c0_121, %c2_122, %c0_123, %c0_124] : memref<1x4x2x8x2x8xf32, #tpu.memory_space<vmem>>, vector<1x1x1x1x2x8xf32>
    %73 = vector.shape_cast %72 : vector<1x1x1x1x2x8xf32> to vector<2x8xf32>
    %74 = arith.truncf %73 : vector<2x8xf32> to vector<2x8xbf16>
    %c0_125 = arith.constant 0 : index
    %c144 = arith.constant 144 : index
    %75 = vector.load %arg6[%c0_125, %c144] : memref<4x256xbf16, #tpu.memory_space<vmem>>, vector<2x8xbf16>
    tpu.vector_store %arg6[%c0_125, %c144], %74 {strides = array<i32>} : memref<4x256xbf16, #tpu.memory_space<vmem>>, vector<2x8xbf16>,
    %c0_126 = arith.constant 0 : index
    %c2_127 = arith.constant 2 : index
    %c0_128 = arith.constant 0 : index
    %c3_129 = arith.constant 3 : index
    %c0_130 = arith.constant 0 : index
    %c0_131 = arith.constant 0 : index
    %76 = vector.load %arg2[%c0_126, %c2_127, %c0_128, %c3_129, %c0_130, %c0_131] : memref<1x4x2x8x2x8xf32, #tpu.memory_space<vmem>>, vector<1x1x1x1x2x8xf32>
    %77 = vector.shape_cast %76 : vector<1x1x1x1x2x8xf32> to vector<2x8xf32>
    %78 = arith.truncf %77 : vector<2x8xf32> to vector<2x8xbf16>
    %c0_132 = arith.constant 0 : index
    %c152 = arith.constant 152 : index
    %79 = vector.load %arg6[%c0_132, %c152] : memref<4x256xbf16, #tpu.memory_space<vmem>>, vector<2x8xbf16>
    tpu.vector_store %arg6[%c0_132, %c152], %78 {strides = array<i32>} : memref<4x256xbf16, #tpu.memory_space<vmem>>, vector<2x8xbf16>,
    %c0_133 = arith.constant 0 : index
    %c2_134 = arith.constant 2 : index
    %c0_135 = arith.constant 0 : index
    %c4_136 = arith.constant 4 : index
    %c0_137 = arith.constant 0 : index
    %c0_138 = arith.constant 0 : index
    %80 = vector.load %arg2[%c0_133, %c2_134, %c0_135, %c4_136, %c0_137, %c0_138] : memref<1x4x2x8x2x8xf32, #tpu.memory_space<vmem>>, vector<1x1x1x1x2x8xf32>
    %81 = vector.shape_cast %80 : vector<1x1x1x1x2x8xf32> to vector<2x8xf32>
    %82 = arith.truncf %81 : vector<2x8xf32> to vector<2x8xbf16>
    %c0_139 = arith.constant 0 : index
    %c160 = arith.constant 160 : index
    %83 = vector.load %arg6[%c0_139, %c160] : memref<4x256xbf16, #tpu.memory_space<vmem>>, vector<2x8xbf16>
    tpu.vector_store %arg6[%c0_139, %c160], %82 {strides = array<i32>} : memref<4x256xbf16, #tpu.memory_space<vmem>>, vector<2x8xbf16>,
    %c0_140 = arith.constant 0 : index
    %c2_141 = arith.constant 2 : index
    %c0_142 = arith.constant 0 : index
    %c5_143 = arith.constant 5 : index
    %c0_144 = arith.constant 0 : index
    %c0_145 = arith.constant 0 : index
    %84 = vector.load %arg2[%c0_140, %c2_141, %c0_142, %c5_143, %c0_144, %c0_145] : memref<1x4x2x8x2x8xf32, #tpu.memory_space<vmem>>, vector<1x1x1x1x2x8xf32>
    %85 = vector.shape_cast %84 : vector<1x1x1x1x2x8xf32> to vector<2x8xf32>
    %86 = arith.truncf %85 : vector<2x8xf32> to vector<2x8xbf16>
    %c0_146 = arith.constant 0 : index
    %c168 = arith.constant 168 : index
    %87 = vector.load %arg6[%c0_146, %c168] : memref<4x256xbf16, #tpu.memory_space<vmem>>, vector<2x8xbf16>
    tpu.vector_store %arg6[%c0_146, %c168], %86 {strides = array<i32>} : memref<4x256xbf16, #tpu.memory_space<vmem>>, vector<2x8xbf16>,
    %c0_147 = arith.constant 0 : index
    %c2_148 = arith.constant 2 : index
    %c0_149 = arith.constant 0 : index
    %c6_150 = arith.constant 6 : index
    %c0_151 = arith.constant 0 : index
    %c0_152 = arith.constant 0 : index
    %88 = vector.load %arg2[%c0_147, %c2_148, %c0_149, %c6_150, %c0_151, %c0_152] : memref<1x4x2x8x2x8xf32, #tpu.memory_space<vmem>>, vector<1x1x1x1x2x8xf32>
    %89 = vector.shape_cast %88 : vector<1x1x1x1x2x8xf32> to vector<2x8xf32>
    %90 = arith.truncf %89 : vector<2x8xf32> to vector<2x8xbf16>
    %c0_153 = arith.constant 0 : index
    %c176 = arith.constant 176 : index
    %91 = vector.load %arg6[%c0_153, %c176] : memref<4x256xbf16, #tpu.memory_space<vmem>>, vector<2x8xbf16>
    tpu.vector_store %arg6[%c0_153, %c176], %90 {strides = array<i32>} : memref<4x256xbf16, #tpu.memory_space<vmem>>, vector<2x8xbf16>,
    %c0_154 = arith.constant 0 : index
    %c2_155 = arith.constant 2 : index
    %c0_156 = arith.constant 0 : index
    %c7_157 = arith.constant 7 : index
    %c0_158 = arith.constant 0 : index
    %c0_159 = arith.constant 0 : index
    %92 = vector.load %arg2[%c0_154, %c2_155, %c0_156, %c7_157, %c0_158, %c0_159] : memref<1x4x2x8x2x8xf32, #tpu.memory_space<vmem>>, vector<1x1x1x1x2x8xf32>
    %93 = vector.shape_cast %92 : vector<1x1x1x1x2x8xf32> to vector<2x8xf32>
    %94 = arith.truncf %93 : vector<2x8xf32> to vector<2x8xbf16>
    %c0_160 = arith.constant 0 : index
    %c184 = arith.constant 184 : index
    %95 = vector.load %arg6[%c0_160, %c184] : memref<4x256xbf16, #tpu.memory_space<vmem>>, vector<2x8xbf16>
    tpu.vector_store %arg6[%c0_160, %c184], %94 {strides = array<i32>} : memref<4x256xbf16, #tpu.memory_space<vmem>>, vector<2x8xbf16>,
    %c0_161 = arith.constant 0 : index
    %c3_162 = arith.constant 3 : index
    %c0_163 = arith.constant 0 : index
    %c0_164 = arith.constant 0 : index
    %c0_165 = arith.constant 0 : index
    %c0_166 = arith.constant 0 : index
    %96 = vector.load %arg2[%c0_161, %c3_162, %c0_163, %c0_164, %c0_165, %c0_166] : memref<1x4x2x8x2x8xf32, #tpu.memory_space<vmem>>, vector<1x1x1x1x2x8xf32>
    %97 = vector.shape_cast %96 : vector<1x1x1x1x2x8xf32> to vector<2x8xf32>
    %98 = arith.truncf %97 : vector<2x8xf32> to vector<2x8xbf16>
    %c0_167 = arith.constant 0 : index
    %c192 = arith.constant 192 : index
    %99 = vector.load %arg6[%c0_167, %c192] : memref<4x256xbf16, #tpu.memory_space<vmem>>, vector<2x8xbf16>
    tpu.vector_store %arg6[%c0_167, %c192], %98 {strides = array<i32>} : memref<4x256xbf16, #tpu.memory_space<vmem>>, vector<2x8xbf16>,
    %c0_168 = arith.constant 0 : index
    %c3_169 = arith.constant 3 : index
    %c0_170 = arith.constant 0 : index
    %c1_171 = arith.constant 1 : index
    %c0_172 = arith.constant 0 : index
    %c0_173 = arith.constant 0 : index
    %100 = vector.load %arg2[%c0_168, %c3_169, %c0_170, %c1_171, %c0_172, %c0_173] : memref<1x4x2x8x2x8xf32, #tpu.memory_space<vmem>>, vector<1x1x1x1x2x8xf32>
    %101 = vector.shape_cast %100 : vector<1x1x1x1x2x8xf32> to vector<2x8xf32>
    %102 = arith.truncf %101 : vector<2x8xf32> to vector<2x8xbf16>
    %c0_174 = arith.constant 0 : index
    %c200 = arith.constant 200 : index
    %103 = vector.load %arg6[%c0_174, %c200] : memref<4x256xbf16, #tpu.memory_space<vmem>>, vector<2x8xbf16>
    tpu.vector_store %arg6[%c0_174, %c200], %102 {strides = array<i32>} : memref<4x256xbf16, #tpu.memory_space<vmem>>, vector<2x8xbf16>,
    %c0_175 = arith.constant 0 : index
    %c3_176 = arith.constant 3 : index
    %c0_177 = arith.constant 0 : index
    %c2_178 = arith.constant 2 : index
    %c0_179 = arith.constant 0 : index
    %c0_180 = arith.constant 0 : index
    %104 = vector.load %arg2[%c0_175, %c3_176, %c0_177, %c2_178, %c0_179, %c0_180] : memref<1x4x2x8x2x8xf32, #tpu.memory_space<vmem>>, vector<1x1x1x1x2x8xf32>
    %105 = vector.shape_cast %104 : vector<1x1x1x1x2x8xf32> to vector<2x8xf32>
    %106 = arith.truncf %105 : vector<2x8xf32> to vector<2x8xbf16>
    %c0_181 = arith.constant 0 : index
    %c208 = arith.constant 208 : index
    %107 = vector.load %arg6[%c0_181, %c208] : memref<4x256xbf16, #tpu.memory_space<vmem>>, vector<2x8xbf16>
    tpu.vector_store %arg6[%c0_181, %c208], %106 {strides = array<i32>} : memref<4x256xbf16, #tpu.memory_space<vmem>>, vector<2x8xbf16>,
    %c0_182 = arith.constant 0 : index
    %c3_183 = arith.constant 3 : index
    %c0_184 = arith.constant 0 : index
    %c3_185 = arith.constant 3 : index
    %c0_186 = arith.constant 0 : index
    %c0_187 = arith.constant 0 : index
    %108 = vector.load %arg2[%c0_182, %c3_183, %c0_184, %c3_185, %c0_186, %c0_187] : memref<1x4x2x8x2x8xf32, #tpu.memory_space<vmem>>, vector<1x1x1x1x2x8xf32>
    %109 = vector.shape_cast %108 : vector<1x1x1x1x2x8xf32> to vector<2x8xf32>
    %110 = arith.truncf %109 : vector<2x8xf32> to vector<2x8xbf16>
    %c0_188 = arith.constant 0 : index
    %c216 = arith.constant 216 : index
    %111 = vector.load %arg6[%c0_188, %c216] : memref<4x256xbf16, #tpu.memory_space<vmem>>, vector<2x8xbf16>
    tpu.vector_store %arg6[%c0_188, %c216], %110 {strides = array<i32>} : memref<4x256xbf16, #tpu.memory_space<vmem>>, vector<2x8xbf16>,
    %c0_189 = arith.constant 0 : index
    %c3_190 = arith.constant 3 : index
    %c0_191 = arith.constant 0 : index
    %c4_192 = arith.constant 4 : index
    %c0_193 = arith.constant 0 : index
    %c0_194 = arith.constant 0 : index
    %112 = vector.load %arg2[%c0_189, %c3_190, %c0_191, %c4_192, %c0_193, %c0_194] : memref<1x4x2x8x2x8xf32, #tpu.memory_space<vmem>>, vector<1x1x1x1x2x8xf32>
    %113 = vector.shape_cast %112 : vector<1x1x1x1x2x8xf32> to vector<2x8xf32>
    %114 = arith.truncf %113 : vector<2x8xf32> to vector<2x8xbf16>
    %c0_195 = arith.constant 0 : index
    %c224 = arith.constant 224 : index
    %115 = vector.load %arg6[%c0_195, %c224] : memref<4x256xbf16, #tpu.memory_space<vmem>>, vector<2x8xbf16>
    tpu.vector_store %arg6[%c0_195, %c224], %114 {strides = array<i32>} : memref<4x256xbf16, #tpu.memory_space<vmem>>, vector<2x8xbf16>,
    %c0_196 = arith.constant 0 : index
    %c3_197 = arith.constant 3 : index
    %c0_198 = arith.constant 0 : index
    %c5_199 = arith.constant 5 : index
    %c0_200 = arith.constant 0 : index
    %c0_201 = arith.constant 0 : index
    %116 = vector.load %arg2[%c0_196, %c3_197, %c0_198, %c5_199, %c0_200, %c0_201] : memref<1x4x2x8x2x8xf32, #tpu.memory_space<vmem>>, vector<1x1x1x1x2x8xf32>
    %117 = vector.shape_cast %116 : vector<1x1x1x1x2x8xf32> to vector<2x8xf32>
    %118 = arith.truncf %117 : vector<2x8xf32> to vector<2x8xbf16>
    %c0_202 = arith.constant 0 : index
    %c232 = arith.constant 232 : index
    %119 = vector.load %arg6[%c0_202, %c232] : memref<4x256xbf16, #tpu.memory_space<vmem>>, vector<2x8xbf16>
    tpu.vector_store %arg6[%c0_202, %c232], %118 {strides = array<i32>} : memref<4x256xbf16, #tpu.memory_space<vmem>>, vector<2x8xbf16>,
    %c0_203 = arith.constant 0 : index
    %c3_204 = arith.constant 3 : index
    %c0_205 = arith.constant 0 : index
    %c6_206 = arith.constant 6 : index
    %c0_207 = arith.constant 0 : index
    %c0_208 = arith.constant 0 : index
    %120 = vector.load %arg2[%c0_203, %c3_204, %c0_205, %c6_206, %c0_207, %c0_208] : memref<1x4x2x8x2x8xf32, #tpu.memory_space<vmem>>, vector<1x1x1x1x2x8xf32>
    %121 = vector.shape_cast %120 : vector<1x1x1x1x2x8xf32> to vector<2x8xf32>
    %122 = arith.truncf %121 : vector<2x8xf32> to vector<2x8xbf16>
    %c0_209 = arith.constant 0 : index
    %c240 = arith.constant 240 : index
    %123 = vector.load %arg6[%c0_209, %c240] : memref<4x256xbf16, #tpu.memory_space<vmem>>, vector<2x8xbf16>
    tpu.vector_store %arg6[%c0_209, %c240], %122 {strides = array<i32>} : memref<4x256xbf16, #tpu.memory_space<vmem>>, vector<2x8xbf16>,
    %c0_210 = arith.constant 0 : index
    %c3_211 = arith.constant 3 : index
    %c0_212 = arith.constant 0 : index
    %c7_213 = arith.constant 7 : index
    %c0_214 = arith.constant 0 : index
    %c0_215 = arith.constant 0 : index
    %124 = vector.load %arg2[%c0_210, %c3_211, %c0_212, %c7_213, %c0_214, %c0_215] : memref<1x4x2x8x2x8xf32, #tpu.memory_space<vmem>>, vector<1x1x1x1x2x8xf32>
    %125 = vector.shape_cast %124 : vector<1x1x1x1x2x8xf32> to vector<2x8xf32>
    %126 = arith.truncf %125 : vector<2x8xf32> to vector<2x8xbf16>
    %c0_216 = arith.constant 0 : index
    %c248 = arith.constant 248 : index
    %127 = vector.load %arg6[%c0_216, %c248] : memref<4x256xbf16, #tpu.memory_space<vmem>>, vector<2x8xbf16>
    tpu.vector_store %arg6[%c0_216, %c248], %126 {strides = array<i32>} : memref<4x256xbf16, #tpu.memory_space<vmem>>, vector<2x8xbf16>,
    %c0_217 = arith.constant 0 : index
    %c0_218 = arith.constant 0 : index
    %c1_219 = arith.constant 1 : index
    %c0_220 = arith.constant 0 : index
    %c0_221 = arith.constant 0 : index
    %c0_222 = arith.constant 0 : index
    %128 = vector.load %arg2[%c0_217, %c0_218, %c1_219, %c0_220, %c0_221, %c0_222] : memref<1x4x2x8x2x8xf32, #tpu.memory_space<vmem>>, vector<1x1x1x1x2x8xf32>
    %129 = vector.shape_cast %128 : vector<1x1x1x1x2x8xf32> to vector<2x8xf32>
    %130 = arith.truncf %129 : vector<2x8xf32> to vector<2x8xbf16>
    %c2_223 = arith.constant 2 : index
    %c0_224 = arith.constant 0 : index
    %131 = vector.load %arg6[%c2_223, %c0_224] : memref<4x256xbf16, #tpu.memory_space<vmem>>, vector<2x8xbf16>
    tpu.vector_store %arg6[%c2_223, %c0_224], %130 {strides = array<i32>} : memref<4x256xbf16, #tpu.memory_space<vmem>>, vector<2x8xbf16>,
    %c0_225 = arith.constant 0 : index
    %c0_226 = arith.constant 0 : index
    %c1_227 = arith.constant 1 : index
    %c1_228 = arith.constant 1 : index
    %c0_229 = arith.constant 0 : index
    %c0_230 = arith.constant 0 : index
    %132 = vector.load %arg2[%c0_225, %c0_226, %c1_227, %c1_228, %c0_229, %c0_230] : memref<1x4x2x8x2x8xf32, #tpu.memory_space<vmem>>, vector<1x1x1x1x2x8xf32>
    %133 = vector.shape_cast %132 : vector<1x1x1x1x2x8xf32> to vector<2x8xf32>
    %134 = arith.truncf %133 : vector<2x8xf32> to vector<2x8xbf16>
    %c2_231 = arith.constant 2 : index
    %c8_232 = arith.constant 8 : index
    %135 = vector.load %arg6[%c2_231, %c8_232] : memref<4x256xbf16, #tpu.memory_space<vmem>>, vector<2x8xbf16>
    tpu.vector_store %arg6[%c2_231, %c8_232], %134 {strides = array<i32>} : memref<4x256xbf16, #tpu.memory_space<vmem>>, vector<2x8xbf16>,
    %c0_233 = arith.constant 0 : index
    %c0_234 = arith.constant 0 : index
    %c1_235 = arith.constant 1 : index
    %c2_236 = arith.constant 2 : index
    %c0_237 = arith.constant 0 : index
    %c0_238 = arith.constant 0 : index
    %136 = vector.load %arg2[%c0_233, %c0_234, %c1_235, %c2_236, %c0_237, %c0_238] : memref<1x4x2x8x2x8xf32, #tpu.memory_space<vmem>>, vector<1x1x1x1x2x8xf32>
    %137 = vector.shape_cast %136 : vector<1x1x1x1x2x8xf32> to vector<2x8xf32>
    %138 = arith.truncf %137 : vector<2x8xf32> to vector<2x8xbf16>
    %c2_239 = arith.constant 2 : index
    %c16_240 = arith.constant 16 : index
    %139 = vector.load %arg6[%c2_239, %c16_240] : memref<4x256xbf16, #tpu.memory_space<vmem>>, vector<2x8xbf16>
    tpu.vector_store %arg6[%c2_239, %c16_240], %138 {strides = array<i32>} : memref<4x256xbf16, #tpu.memory_space<vmem>>, vector<2x8xbf16>,
    %c0_241 = arith.constant 0 : index
    %c0_242 = arith.constant 0 : index
    %c1_243 = arith.constant 1 : index
    %c3_244 = arith.constant 3 : index
    %c0_245 = arith.constant 0 : index
    %c0_246 = arith.constant 0 : index
    %140 = vector.load %arg2[%c0_241, %c0_242, %c1_243, %c3_244, %c0_245, %c0_246] : memref<1x4x2x8x2x8xf32, #tpu.memory_space<vmem>>, vector<1x1x1x1x2x8xf32>
    %141 = vector.shape_cast %140 : vector<1x1x1x1x2x8xf32> to vector<2x8xf32>
    %142 = arith.truncf %141 : vector<2x8xf32> to vector<2x8xbf16>
    %c2_247 = arith.constant 2 : index
    %c24_248 = arith.constant 24 : index
    %143 = vector.load %arg6[%c2_247, %c24_248] : memref<4x256xbf16, #tpu.memory_space<vmem>>, vector<2x8xbf16>
    tpu.vector_store %arg6[%c2_247, %c24_248], %142 {strides = array<i32>} : memref<4x256xbf16, #tpu.memory_space<vmem>>, vector<2x8xbf16>,
    %c0_249 = arith.constant 0 : index
    %c0_250 = arith.constant 0 : index
    %c1_251 = arith.constant 1 : index
    %c4_252 = arith.constant 4 : index
    %c0_253 = arith.constant 0 : index
    %c0_254 = arith.constant 0 : index
    %144 = vector.load %arg2[%c0_249, %c0_250, %c1_251, %c4_252, %c0_253, %c0_254] : memref<1x4x2x8x2x8xf32, #tpu.memory_space<vmem>>, vector<1x1x1x1x2x8xf32>
    %145 = vector.shape_cast %144 : vector<1x1x1x1x2x8xf32> to vector<2x8xf32>
    %146 = arith.truncf %145 : vector<2x8xf32> to vector<2x8xbf16>
    %c2_255 = arith.constant 2 : index
    %c32_256 = arith.constant 32 : index
    %147 = vector.load %arg6[%c2_255, %c32_256] : memref<4x256xbf16, #tpu.memory_space<vmem>>, vector<2x8xbf16>
    tpu.vector_store %arg6[%c2_255, %c32_256], %146 {strides = array<i32>} : memref<4x256xbf16, #tpu.memory_space<vmem>>, vector<2x8xbf16>,
    %c0_257 = arith.constant 0 : index
    %c0_258 = arith.constant 0 : index
    %c1_259 = arith.constant 1 : index
    %c5_260 = arith.constant 5 : index
    %c0_261 = arith.constant 0 : index
    %c0_262 = arith.constant 0 : index
    %148 = vector.load %arg2[%c0_257, %c0_258, %c1_259, %c5_260, %c0_261, %c0_262] : memref<1x4x2x8x2x8xf32, #tpu.memory_space<vmem>>, vector<1x1x1x1x2x8xf32>
    %149 = vector.shape_cast %148 : vector<1x1x1x1x2x8xf32> to vector<2x8xf32>
    %150 = arith.truncf %149 : vector<2x8xf32> to vector<2x8xbf16>
    %c2_263 = arith.constant 2 : index
    %c40_264 = arith.constant 40 : index
    %151 = vector.load %arg6[%c2_263, %c40_264] : memref<4x256xbf16, #tpu.memory_space<vmem>>, vector<2x8xbf16>
    tpu.vector_store %arg6[%c2_263, %c40_264], %150 {strides = array<i32>} : memref<4x256xbf16, #tpu.memory_space<vmem>>, vector<2x8xbf16>,
    %c0_265 = arith.constant 0 : index
    %c0_266 = arith.constant 0 : index
    %c1_267 = arith.constant 1 : index
    %c6_268 = arith.constant 6 : index
    %c0_269 = arith.constant 0 : index
    %c0_270 = arith.constant 0 : index
    %152 = vector.load %arg2[%c0_265, %c0_266, %c1_267, %c6_268, %c0_269, %c0_270] : memref<1x4x2x8x2x8xf32, #tpu.memory_space<vmem>>, vector<1x1x1x1x2x8xf32>
    %153 = vector.shape_cast %152 : vector<1x1x1x1x2x8xf32> to vector<2x8xf32>
    %154 = arith.truncf %153 : vector<2x8xf32> to vector<2x8xbf16>
    %c2_271 = arith.constant 2 : index
    %c48_272 = arith.constant 48 : index
    %155 = vector.load %arg6[%c2_271, %c48_272] : memref<4x256xbf16, #tpu.memory_space<vmem>>, vector<2x8xbf16>
    tpu.vector_store %arg6[%c2_271, %c48_272], %154 {strides = array<i32>} : memref<4x256xbf16, #tpu.memory_space<vmem>>, vector<2x8xbf16>,
    %c0_273 = arith.constant 0 : index
    %c0_274 = arith.constant 0 : index
    %c1_275 = arith.constant 1 : index
    %c7_276 = arith.constant 7 : index
    %c0_277 = arith.constant 0 : index
    %c0_278 = arith.constant 0 : index
    %156 = vector.load %arg2[%c0_273, %c0_274, %c1_275, %c7_276, %c0_277, %c0_278] : memref<1x4x2x8x2x8xf32, #tpu.memory_space<vmem>>, vector<1x1x1x1x2x8xf32>
    %157 = vector.shape_cast %156 : vector<1x1x1x1x2x8xf32> to vector<2x8xf32>
    %158 = arith.truncf %157 : vector<2x8xf32> to vector<2x8xbf16>
    %c2_279 = arith.constant 2 : index
    %c56_280 = arith.constant 56 : index
    %159 = vector.load %arg6[%c2_279, %c56_280] : memref<4x256xbf16, #tpu.memory_space<vmem>>, vector<2x8xbf16>
    tpu.vector_store %arg6[%c2_279, %c56_280], %158 {strides = array<i32>} : memref<4x256xbf16, #tpu.memory_space<vmem>>, vector<2x8xbf16>,
    %c0_281 = arith.constant 0 : index
    %c1_282 = arith.constant 1 : index
    %c1_283 = arith.constant 1 : index
    %c0_284 = arith.constant 0 : index
    %c0_285 = arith.constant 0 : index
    %c0_286 = arith.constant 0 : index
    %160 = vector.load %arg2[%c0_281, %c1_282, %c1_283, %c0_284, %c0_285, %c0_286] : memref<1x4x2x8x2x8xf32, #tpu.memory_space<vmem>>, vector<1x1x1x1x2x8xf32>
    %161 = vector.shape_cast %160 : vector<1x1x1x1x2x8xf32> to vector<2x8xf32>
    %162 = arith.truncf %161 : vector<2x8xf32> to vector<2x8xbf16>
    %c2_287 = arith.constant 2 : index
    %c64_288 = arith.constant 64 : index
    %163 = vector.load %arg6[%c2_287, %c64_288] : memref<4x256xbf16, #tpu.memory_space<vmem>>, vector<2x8xbf16>
    tpu.vector_store %arg6[%c2_287, %c64_288], %162 {strides = array<i32>} : memref<4x256xbf16, #tpu.memory_space<vmem>>, vector<2x8xbf16>,
    %c0_289 = arith.constant 0 : index
    %c1_290 = arith.constant 1 : index
    %c1_291 = arith.constant 1 : index
    %c1_292 = arith.constant 1 : index
    %c0_293 = arith.constant 0 : index
    %c0_294 = arith.constant 0 : index
    %164 = vector.load %arg2[%c0_289, %c1_290, %c1_291, %c1_292, %c0_293, %c0_294] : memref<1x4x2x8x2x8xf32, #tpu.memory_space<vmem>>, vector<1x1x1x1x2x8xf32>
    %165 = vector.shape_cast %164 : vector<1x1x1x1x2x8xf32> to vector<2x8xf32>
    %166 = arith.truncf %165 : vector<2x8xf32> to vector<2x8xbf16>
    %c2_295 = arith.constant 2 : index
    %c72_296 = arith.constant 72 : index
    %167 = vector.load %arg6[%c2_295, %c72_296] : memref<4x256xbf16, #tpu.memory_space<vmem>>, vector<2x8xbf16>
    tpu.vector_store %arg6[%c2_295, %c72_296], %166 {strides = array<i32>} : memref<4x256xbf16, #tpu.memory_space<vmem>>, vector<2x8xbf16>,
    %c0_297 = arith.constant 0 : index
    %c1_298 = arith.constant 1 : index
    %c1_299 = arith.constant 1 : index
    %c2_300 = arith.constant 2 : index
    %c0_301 = arith.constant 0 : index
    %c0_302 = arith.constant 0 : index
    %168 = vector.load %arg2[%c0_297, %c1_298, %c1_299, %c2_300, %c0_301, %c0_302] : memref<1x4x2x8x2x8xf32, #tpu.memory_space<vmem>>, vector<1x1x1x1x2x8xf32>
    %169 = vector.shape_cast %168 : vector<1x1x1x1x2x8xf32> to vector<2x8xf32>
    %170 = arith.truncf %169 : vector<2x8xf32> to vector<2x8xbf16>
    %c2_303 = arith.constant 2 : index
    %c80_304 = arith.constant 80 : index
    %171 = vector.load %arg6[%c2_303, %c80_304] : memref<4x256xbf16, #tpu.memory_space<vmem>>, vector<2x8xbf16>
    tpu.vector_store %arg6[%c2_303, %c80_304], %170 {strides = array<i32>} : memref<4x256xbf16, #tpu.memory_space<vmem>>, vector<2x8xbf16>,
    %c0_305 = arith.constant 0 : index
    %c1_306 = arith.constant 1 : index
    %c1_307 = arith.constant 1 : index
    %c3_308 = arith.constant 3 : index
    %c0_309 = arith.constant 0 : index
    %c0_310 = arith.constant 0 : index
    %172 = vector.load %arg2[%c0_305, %c1_306, %c1_307, %c3_308, %c0_309, %c0_310] : memref<1x4x2x8x2x8xf32, #tpu.memory_space<vmem>>, vector<1x1x1x1x2x8xf32>
    %173 = vector.shape_cast %172 : vector<1x1x1x1x2x8xf32> to vector<2x8xf32>
    %174 = arith.truncf %173 : vector<2x8xf32> to vector<2x8xbf16>
    %c2_311 = arith.constant 2 : index
    %c88_312 = arith.constant 88 : index
    %175 = vector.load %arg6[%c2_311, %c88_312] : memref<4x256xbf16, #tpu.memory_space<vmem>>, vector<2x8xbf16>
    tpu.vector_store %arg6[%c2_311, %c88_312], %174 {strides = array<i32>} : memref<4x256xbf16, #tpu.memory_space<vmem>>, vector<2x8xbf16>,
    %c0_313 = arith.constant 0 : index
    %c1_314 = arith.constant 1 : index
    %c1_315 = arith.constant 1 : index
    %c4_316 = arith.constant 4 : index
    %c0_317 = arith.constant 0 : index
    %c0_318 = arith.constant 0 : index
    %176 = vector.load %arg2[%c0_313, %c1_314, %c1_315, %c4_316, %c0_317, %c0_318] : memref<1x4x2x8x2x8xf32, #tpu.memory_space<vmem>>, vector<1x1x1x1x2x8xf32>
    %177 = vector.shape_cast %176 : vector<1x1x1x1x2x8xf32> to vector<2x8xf32>
    %178 = arith.truncf %177 : vector<2x8xf32> to vector<2x8xbf16>
    %c2_319 = arith.constant 2 : index
    %c96_320 = arith.constant 96 : index
    %179 = vector.load %arg6[%c2_319, %c96_320] : memref<4x256xbf16, #tpu.memory_space<vmem>>, vector<2x8xbf16>
    tpu.vector_store %arg6[%c2_319, %c96_320], %178 {strides = array<i32>} : memref<4x256xbf16, #tpu.memory_space<vmem>>, vector<2x8xbf16>,
    %c0_321 = arith.constant 0 : index
    %c1_322 = arith.constant 1 : index
    %c1_323 = arith.constant 1 : index
    %c5_324 = arith.constant 5 : index
    %c0_325 = arith.constant 0 : index
    %c0_326 = arith.constant 0 : index
    %180 = vector.load %arg2[%c0_321, %c1_322, %c1_323, %c5_324, %c0_325, %c0_326] : memref<1x4x2x8x2x8xf32, #tpu.memory_space<vmem>>, vector<1x1x1x1x2x8xf32>
    %181 = vector.shape_cast %180 : vector<1x1x1x1x2x8xf32> to vector<2x8xf32>
    %182 = arith.truncf %181 : vector<2x8xf32> to vector<2x8xbf16>
    %c2_327 = arith.constant 2 : index
    %c104_328 = arith.constant 104 : index
    %183 = vector.load %arg6[%c2_327, %c104_328] : memref<4x256xbf16, #tpu.memory_space<vmem>>, vector<2x8xbf16>
    tpu.vector_store %arg6[%c2_327, %c104_328], %182 {strides = array<i32>} : memref<4x256xbf16, #tpu.memory_space<vmem>>, vector<2x8xbf16>,
    %c0_329 = arith.constant 0 : index
    %c1_330 = arith.constant 1 : index
    %c1_331 = arith.constant 1 : index
    %c6_332 = arith.constant 6 : index
    %c0_333 = arith.constant 0 : index
    %c0_334 = arith.constant 0 : index
    %184 = vector.load %arg2[%c0_329, %c1_330, %c1_331, %c6_332, %c0_333, %c0_334] : memref<1x4x2x8x2x8xf32, #tpu.memory_space<vmem>>, vector<1x1x1x1x2x8xf32>
    %185 = vector.shape_cast %184 : vector<1x1x1x1x2x8xf32> to vector<2x8xf32>
    %186 = arith.truncf %185 : vector<2x8xf32> to vector<2x8xbf16>
    %c2_335 = arith.constant 2 : index
    %c112_336 = arith.constant 112 : index
    %187 = vector.load %arg6[%c2_335, %c112_336] : memref<4x256xbf16, #tpu.memory_space<vmem>>, vector<2x8xbf16>
    tpu.vector_store %arg6[%c2_335, %c112_336], %186 {strides = array<i32>} : memref<4x256xbf16, #tpu.memory_space<vmem>>, vector<2x8xbf16>,
    %c0_337 = arith.constant 0 : index
    %c1_338 = arith.constant 1 : index
    %c1_339 = arith.constant 1 : index
    %c7_340 = arith.constant 7 : index
    %c0_341 = arith.constant 0 : index
    %c0_342 = arith.constant 0 : index
    %188 = vector.load %arg2[%c0_337, %c1_338, %c1_339, %c7_340, %c0_341, %c0_342] : memref<1x4x2x8x2x8xf32, #tpu.memory_space<vmem>>, vector<1x1x1x1x2x8xf32>
    %189 = vector.shape_cast %188 : vector<1x1x1x1x2x8xf32> to vector<2x8xf32>
    %190 = arith.truncf %189 : vector<2x8xf32> to vector<2x8xbf16>
    %c2_343 = arith.constant 2 : index
    %c120_344 = arith.constant 120 : index
    %191 = vector.load %arg6[%c2_343, %c120_344] : memref<4x256xbf16, #tpu.memory_space<vmem>>, vector<2x8xbf16>
    tpu.vector_store %arg6[%c2_343, %c120_344], %190 {strides = array<i32>} : memref<4x256xbf16, #tpu.memory_space<vmem>>, vector<2x8xbf16>,
    %c0_345 = arith.constant 0 : index
    %c2_346 = arith.constant 2 : index
    %c1_347 = arith.constant 1 : index
    %c0_348 = arith.constant 0 : index
    %c0_349 = arith.constant 0 : index
    %c0_350 = arith.constant 0 : index
    %192 = vector.load %arg2[%c0_345, %c2_346, %c1_347, %c0_348, %c0_349, %c0_350] : memref<1x4x2x8x2x8xf32, #tpu.memory_space<vmem>>, vector<1x1x1x1x2x8xf32>
    %193 = vector.shape_cast %192 : vector<1x1x1x1x2x8xf32> to vector<2x8xf32>
    %194 = arith.truncf %193 : vector<2x8xf32> to vector<2x8xbf16>
    %c2_351 = arith.constant 2 : index
    %c128_352 = arith.constant 128 : index
    %195 = vector.load %arg6[%c2_351, %c128_352] : memref<4x256xbf16, #tpu.memory_space<vmem>>, vector<2x8xbf16>
    tpu.vector_store %arg6[%c2_351, %c128_352], %194 {strides = array<i32>} : memref<4x256xbf16, #tpu.memory_space<vmem>>, vector<2x8xbf16>,
    %c0_353 = arith.constant 0 : index
    %c2_354 = arith.constant 2 : index
    %c1_355 = arith.constant 1 : index
    %c1_356 = arith.constant 1 : index
    %c0_357 = arith.constant 0 : index
    %c0_358 = arith.constant 0 : index
    %196 = vector.load %arg2[%c0_353, %c2_354, %c1_355, %c1_356, %c0_357, %c0_358] : memref<1x4x2x8x2x8xf32, #tpu.memory_space<vmem>>, vector<1x1x1x1x2x8xf32>
    %197 = vector.shape_cast %196 : vector<1x1x1x1x2x8xf32> to vector<2x8xf32>
    %198 = arith.truncf %197 : vector<2x8xf32> to vector<2x8xbf16>
    %c2_359 = arith.constant 2 : index
    %c136_360 = arith.constant 136 : index
    %199 = vector.load %arg6[%c2_359, %c136_360] : memref<4x256xbf16, #tpu.memory_space<vmem>>, vector<2x8xbf16>
    tpu.vector_store %arg6[%c2_359, %c136_360], %198 {strides = array<i32>} : memref<4x256xbf16, #tpu.memory_space<vmem>>, vector<2x8xbf16>,
    %c0_361 = arith.constant 0 : index
    %c2_362 = arith.constant 2 : index
    %c1_363 = arith.constant 1 : index
    %c2_364 = arith.constant 2 : index
    %c0_365 = arith.constant 0 : index
    %c0_366 = arith.constant 0 : index
    %200 = vector.load %arg2[%c0_361, %c2_362, %c1_363, %c2_364, %c0_365, %c0_366] : memref<1x4x2x8x2x8xf32, #tpu.memory_space<vmem>>, vector<1x1x1x1x2x8xf32>
    %201 = vector.shape_cast %200 : vector<1x1x1x1x2x8xf32> to vector<2x8xf32>
    %202 = arith.truncf %201 : vector<2x8xf32> to vector<2x8xbf16>
    %c2_367 = arith.constant 2 : index
    %c144_368 = arith.constant 144 : index
    %203 = vector.load %arg6[%c2_367, %c144_368] : memref<4x256xbf16, #tpu.memory_space<vmem>>, vector<2x8xbf16>
    tpu.vector_store %arg6[%c2_367, %c144_368], %202 {strides = array<i32>} : memref<4x256xbf16, #tpu.memory_space<vmem>>, vector<2x8xbf16>,
    %c0_369 = arith.constant 0 : index
    %c2_370 = arith.constant 2 : index
    %c1_371 = arith.constant 1 : index
    %c3_372 = arith.constant 3 : index
    %c0_373 = arith.constant 0 : index
    %c0_374 = arith.constant 0 : index
    %204 = vector.load %arg2[%c0_369, %c2_370, %c1_371, %c3_372, %c0_373, %c0_374] : memref<1x4x2x8x2x8xf32, #tpu.memory_space<vmem>>, vector<1x1x1x1x2x8xf32>
    %205 = vector.shape_cast %204 : vector<1x1x1x1x2x8xf32> to vector<2x8xf32>
    %206 = arith.truncf %205 : vector<2x8xf32> to vector<2x8xbf16>
    %c2_375 = arith.constant 2 : index
    %c152_376 = arith.constant 152 : index
    %207 = vector.load %arg6[%c2_375, %c152_376] : memref<4x256xbf16, #tpu.memory_space<vmem>>, vector<2x8xbf16>
    tpu.vector_store %arg6[%c2_375, %c152_376], %206 {strides = array<i32>} : memref<4x256xbf16, #tpu.memory_space<vmem>>, vector<2x8xbf16>,
    %c0_377 = arith.constant 0 : index
    %c2_378 = arith.constant 2 : index
    %c1_379 = arith.constant 1 : index
    %c4_380 = arith.constant 4 : index
    %c0_381 = arith.constant 0 : index
    %c0_382 = arith.constant 0 : index
    %208 = vector.load %arg2[%c0_377, %c2_378, %c1_379, %c4_380, %c0_381, %c0_382] : memref<1x4x2x8x2x8xf32, #tpu.memory_space<vmem>>, vector<1x1x1x1x2x8xf32>
    %209 = vector.shape_cast %208 : vector<1x1x1x1x2x8xf32> to vector<2x8xf32>
    %210 = arith.truncf %209 : vector<2x8xf32> to vector<2x8xbf16>
    %c2_383 = arith.constant 2 : index
    %c160_384 = arith.constant 160 : index
    %211 = vector.load %arg6[%c2_383, %c160_384] : memref<4x256xbf16, #tpu.memory_space<vmem>>, vector<2x8xbf16>
    tpu.vector_store %arg6[%c2_383, %c160_384], %210 {strides = array<i32>} : memref<4x256xbf16, #tpu.memory_space<vmem>>, vector<2x8xbf16>,
    %c0_385 = arith.constant 0 : index
    %c2_386 = arith.constant 2 : index
    %c1_387 = arith.constant 1 : index
    %c5_388 = arith.constant 5 : index
    %c0_389 = arith.constant 0 : index
    %c0_390 = arith.constant 0 : index
    %212 = vector.load %arg2[%c0_385, %c2_386, %c1_387, %c5_388, %c0_389, %c0_390] : memref<1x4x2x8x2x8xf32, #tpu.memory_space<vmem>>, vector<1x1x1x1x2x8xf32>
    %213 = vector.shape_cast %212 : vector<1x1x1x1x2x8xf32> to vector<2x8xf32>
    %214 = arith.truncf %213 : vector<2x8xf32> to vector<2x8xbf16>
    %c2_391 = arith.constant 2 : index
    %c168_392 = arith.constant 168 : index
    %215 = vector.load %arg6[%c2_391, %c168_392] : memref<4x256xbf16, #tpu.memory_space<vmem>>, vector<2x8xbf16>
    tpu.vector_store %arg6[%c2_391, %c168_392], %214 {strides = array<i32>} : memref<4x256xbf16, #tpu.memory_space<vmem>>, vector<2x8xbf16>,
    %c0_393 = arith.constant 0 : index
    %c2_394 = arith.constant 2 : index
    %c1_395 = arith.constant 1 : index
    %c6_396 = arith.constant 6 : index
    %c0_397 = arith.constant 0 : index
    %c0_398 = arith.constant 0 : index
    %216 = vector.load %arg2[%c0_393, %c2_394, %c1_395, %c6_396, %c0_397, %c0_398] : memref<1x4x2x8x2x8xf32, #tpu.memory_space<vmem>>, vector<1x1x1x1x2x8xf32>
    %217 = vector.shape_cast %216 : vector<1x1x1x1x2x8xf32> to vector<2x8xf32>
    %218 = arith.truncf %217 : vector<2x8xf32> to vector<2x8xbf16>
    %c2_399 = arith.constant 2 : index
    %c176_400 = arith.constant 176 : index
    %219 = vector.load %arg6[%c2_399, %c176_400] : memref<4x256xbf16, #tpu.memory_space<vmem>>, vector<2x8xbf16>
    tpu.vector_store %arg6[%c2_399, %c176_400], %218 {strides = array<i32>} : memref<4x256xbf16, #tpu.memory_space<vmem>>, vector<2x8xbf16>,
    %c0_401 = arith.constant 0 : index
    %c2_402 = arith.constant 2 : index
    %c1_403 = arith.constant 1 : index
    %c7_404 = arith.constant 7 : index
    %c0_405 = arith.constant 0 : index
    %c0_406 = arith.constant 0 : index
    %220 = vector.load %arg2[%c0_401, %c2_402, %c1_403, %c7_404, %c0_405, %c0_406] : memref<1x4x2x8x2x8xf32, #tpu.memory_space<vmem>>, vector<1x1x1x1x2x8xf32>
    %221 = vector.shape_cast %220 : vector<1x1x1x1x2x8xf32> to vector<2x8xf32>
    %222 = arith.truncf %221 : vector<2x8xf32> to vector<2x8xbf16>
    %c2_407 = arith.constant 2 : index
    %c184_408 = arith.constant 184 : index
    %223 = vector.load %arg6[%c2_407, %c184_408] : memref<4x256xbf16, #tpu.memory_space<vmem>>, vector<2x8xbf16>
    tpu.vector_store %arg6[%c2_407, %c184_408], %222 {strides = array<i32>} : memref<4x256xbf16, #tpu.memory_space<vmem>>, vector<2x8xbf16>,
    %c0_409 = arith.constant 0 : index
    %c3_410 = arith.constant 3 : index
    %c1_411 = arith.constant 1 : index
    %c0_412 = arith.constant 0 : index
    %c0_413 = arith.constant 0 : index
    %c0_414 = arith.constant 0 : index
    %224 = vector.load %arg2[%c0_409, %c3_410, %c1_411, %c0_412, %c0_413, %c0_414] : memref<1x4x2x8x2x8xf32, #tpu.memory_space<vmem>>, vector<1x1x1x1x2x8xf32>
    %225 = vector.shape_cast %224 : vector<1x1x1x1x2x8xf32> to vector<2x8xf32>
    %226 = arith.truncf %225 : vector<2x8xf32> to vector<2x8xbf16>
    %c2_415 = arith.constant 2 : index
    %c192_416 = arith.constant 192 : index
    %227 = vector.load %arg6[%c2_415, %c192_416] : memref<4x256xbf16, #tpu.memory_space<vmem>>, vector<2x8xbf16>
    tpu.vector_store %arg6[%c2_415, %c192_416], %226 {strides = array<i32>} : memref<4x256xbf16, #tpu.memory_space<vmem>>, vector<2x8xbf16>,
    %c0_417 = arith.constant 0 : index
    %c3_418 = arith.constant 3 : index
    %c1_419 = arith.constant 1 : index
    %c1_420 = arith.constant 1 : index
    %c0_421 = arith.constant 0 : index
    %c0_422 = arith.constant 0 : index
    %228 = vector.load %arg2[%c0_417, %c3_418, %c1_419, %c1_420, %c0_421, %c0_422] : memref<1x4x2x8x2x8xf32, #tpu.memory_space<vmem>>, vector<1x1x1x1x2x8xf32>
    %229 = vector.shape_cast %228 : vector<1x1x1x1x2x8xf32> to vector<2x8xf32>
    %230 = arith.truncf %229 : vector<2x8xf32> to vector<2x8xbf16>
    %c2_423 = arith.constant 2 : index
    %c200_424 = arith.constant 200 : index
    %231 = vector.load %arg6[%c2_423, %c200_424] : memref<4x256xbf16, #tpu.memory_space<vmem>>, vector<2x8xbf16>
    tpu.vector_store %arg6[%c2_423, %c200_424], %230 {strides = array<i32>} : memref<4x256xbf16, #tpu.memory_space<vmem>>, vector<2x8xbf16>,
    %c0_425 = arith.constant 0 : index
    %c3_426 = arith.constant 3 : index
    %c1_427 = arith.constant 1 : index
    %c2_428 = arith.constant 2 : index
    %c0_429 = arith.constant 0 : index
    %c0_430 = arith.constant 0 : index
    %232 = vector.load %arg2[%c0_425, %c3_426, %c1_427, %c2_428, %c0_429, %c0_430] : memref<1x4x2x8x2x8xf32, #tpu.memory_space<vmem>>, vector<1x1x1x1x2x8xf32>
    %233 = vector.shape_cast %232 : vector<1x1x1x1x2x8xf32> to vector<2x8xf32>
    %234 = arith.truncf %233 : vector<2x8xf32> to vector<2x8xbf16>
    %c2_431 = arith.constant 2 : index
    %c208_432 = arith.constant 208 : index
    %235 = vector.load %arg6[%c2_431, %c208_432] : memref<4x256xbf16, #tpu.memory_space<vmem>>, vector<2x8xbf16>
    tpu.vector_store %arg6[%c2_431, %c208_432], %234 {strides = array<i32>} : memref<4x256xbf16, #tpu.memory_space<vmem>>, vector<2x8xbf16>,
    %c0_433 = arith.constant 0 : index
    %c3_434 = arith.constant 3 : index
    %c1_435 = arith.constant 1 : index
    %c3_436 = arith.constant 3 : index
    %c0_437 = arith.constant 0 : index
    %c0_438 = arith.constant 0 : index
    %236 = vector.load %arg2[%c0_433, %c3_434, %c1_435, %c3_436, %c0_437, %c0_438] : memref<1x4x2x8x2x8xf32, #tpu.memory_space<vmem>>, vector<1x1x1x1x2x8xf32>
    %237 = vector.shape_cast %236 : vector<1x1x1x1x2x8xf32> to vector<2x8xf32>
    %238 = arith.truncf %237 : vector<2x8xf32> to vector<2x8xbf16>
    %c2_439 = arith.constant 2 : index
    %c216_440 = arith.constant 216 : index
    %239 = vector.load %arg6[%c2_439, %c216_440] : memref<4x256xbf16, #tpu.memory_space<vmem>>, vector<2x8xbf16>
    tpu.vector_store %arg6[%c2_439, %c216_440], %238 {strides = array<i32>} : memref<4x256xbf16, #tpu.memory_space<vmem>>, vector<2x8xbf16>,
    %c0_441 = arith.constant 0 : index
    %c3_442 = arith.constant 3 : index
    %c1_443 = arith.constant 1 : index
    %c4_444 = arith.constant 4 : index
    %c0_445 = arith.constant 0 : index
    %c0_446 = arith.constant 0 : index
    %240 = vector.load %arg2[%c0_441, %c3_442, %c1_443, %c4_444, %c0_445, %c0_446] : memref<1x4x2x8x2x8xf32, #tpu.memory_space<vmem>>, vector<1x1x1x1x2x8xf32>
    %241 = vector.shape_cast %240 : vector<1x1x1x1x2x8xf32> to vector<2x8xf32>
    %242 = arith.truncf %241 : vector<2x8xf32> to vector<2x8xbf16>
    %c2_447 = arith.constant 2 : index
    %c224_448 = arith.constant 224 : index
    %243 = vector.load %arg6[%c2_447, %c224_448] : memref<4x256xbf16, #tpu.memory_space<vmem>>, vector<2x8xbf16>
    tpu.vector_store %arg6[%c2_447, %c224_448], %242 {strides = array<i32>} : memref<4x256xbf16, #tpu.memory_space<vmem>>, vector<2x8xbf16>,
    %c0_449 = arith.constant 0 : index
    %c3_450 = arith.constant 3 : index
    %c1_451 = arith.constant 1 : index
    %c5_452 = arith.constant 5 : index
    %c0_453 = arith.constant 0 : index
    %c0_454 = arith.constant 0 : index
    %244 = vector.load %arg2[%c0_449, %c3_450, %c1_451, %c5_452, %c0_453, %c0_454] : memref<1x4x2x8x2x8xf32, #tpu.memory_space<vmem>>, vector<1x1x1x1x2x8xf32>
    %245 = vector.shape_cast %244 : vector<1x1x1x1x2x8xf32> to vector<2x8xf32>
    %246 = arith.truncf %245 : vector<2x8xf32> to vector<2x8xbf16>
    %c2_455 = arith.constant 2 : index
    %c232_456 = arith.constant 232 : index
    %247 = vector.load %arg6[%c2_455, %c232_456] : memref<4x256xbf16, #tpu.memory_space<vmem>>, vector<2x8xbf16>
    tpu.vector_store %arg6[%c2_455, %c232_456], %246 {strides = array<i32>} : memref<4x256xbf16, #tpu.memory_space<vmem>>, vector<2x8xbf16>,
    %c0_457 = arith.constant 0 : index
    %c3_458 = arith.constant 3 : index
    %c1_459 = arith.constant 1 : index
    %c6_460 = arith.constant 6 : index
    %c0_461 = arith.constant 0 : index
    %c0_462 = arith.constant 0 : index
    %248 = vector.load %arg2[%c0_457, %c3_458, %c1_459, %c6_460, %c0_461, %c0_462] : memref<1x4x2x8x2x8xf32, #tpu.memory_space<vmem>>, vector<1x1x1x1x2x8xf32>
    %249 = vector.shape_cast %248 : vector<1x1x1x1x2x8xf32> to vector<2x8xf32>
    %250 = arith.truncf %249 : vector<2x8xf32> to vector<2x8xbf16>
    %c2_463 = arith.constant 2 : index
    %c240_464 = arith.constant 240 : index
    %251 = vector.load %arg6[%c2_463, %c240_464] : memref<4x256xbf16, #tpu.memory_space<vmem>>, vector<2x8xbf16>
    tpu.vector_store %arg6[%c2_463, %c240_464], %250 {strides = array<i32>} : memref<4x256xbf16, #tpu.memory_space<vmem>>, vector<2x8xbf16>,
    %c0_465 = arith.constant 0 : index
    %c3_466 = arith.constant 3 : index
    %c1_467 = arith.constant 1 : index
    %c7_468 = arith.constant 7 : index
    %c0_469 = arith.constant 0 : index
    %c0_470 = arith.constant 0 : index
    %252 = vector.load %arg2[%c0_465, %c3_466, %c1_467, %c7_468, %c0_469, %c0_470] : memref<1x4x2x8x2x8xf32, #tpu.memory_space<vmem>>, vector<1x1x1x1x2x8xf32>
    %253 = vector.shape_cast %252 : vector<1x1x1x1x2x8xf32> to vector<2x8xf32>
    %254 = arith.truncf %253 : vector<2x8xf32> to vector<2x8xbf16>
    %c2_471 = arith.constant 2 : index
    %c248_472 = arith.constant 248 : index
    %255 = vector.load %arg6[%c2_471, %c248_472] : memref<4x256xbf16, #tpu.memory_space<vmem>>, vector<2x8xbf16>
    tpu.vector_store %arg6[%c2_471, %c248_472], %254 {strides = array<i32>} : memref<4x256xbf16, #tpu.memory_space<vmem>>, vector<2x8xbf16>,
    %c0_473 = arith.constant 0 : index
    %c0_474 = arith.constant 0 : index
    %256 = vector.load %arg6[%c0_473, %c0_474] : memref<4x256xbf16, #tpu.memory_space<vmem>>, vector<4x256xbf16>
    %c0_475 = arith.constant 0 : index
    %c0_476 = arith.constant 0 : index
    %257 = vector.load %arg3[%c0_475, %c0_476] : memref<256x128xbf16, #tpu.memory_space<vmem>>, vector<256x128xbf16>
    %cst = arith.constant dense<0.000000e+00> : vector<4x128xf32>
    %258 = tpu.matmul %256, %257, %cst {dimension_numbers = #tpu.dot_dimension_numbers<[1], [0], [0], [1], [0, 0, 1, 1], [], []>} : vector<4x256xbf16>, vector<256x128xbf16>, vector<4x128xf32> -> vector<4x128xf32>
    %c0_477 = arith.constant 0 : index
    %c0_478 = arith.constant 0 : index
    %259 = vector.load %arg4[%c0_477, %c0_478] : memref<1x128xf32, #tpu.memory_space<vmem>>, vector<1x128xf32>
    %260 = vector.broadcast %259 : vector<1x128xf32> to vector<4x128xf32>
    %261 = arith.addf %258, %260 : vector<4x128xf32>
    %cst_479 = arith.constant 0.000000e+00 : f32
    %262 = vector.broadcast %cst_479 : f32 to vector<4x128xf32>
    %263 = arith.maximumf %261, %262 : vector<4x128xf32>
    %264 = arith.truncf %263 : vector<4x128xf32> to vector<4x128xbf16>
    %c0_480 = arith.constant 0 : index
    %c0_481 = arith.constant 0 : index
    %c0_482 = arith.constant 0 : index
    %265 = vector.load %arg5[%c0_480, %c0_481, %c0_482] : memref<1x4x128xbf16, #tpu.memory_space<vmem>>, vector<1x4x128xbf16>
    %266 = vector.shape_cast %265 : vector<1x4x128xbf16> to vector<4x128xbf16>
    %267 = vector.shape_cast %264 : vector<4x128xbf16> to vector<1x4x128xbf16>
    tpu.vector_store %arg5[%c0_480, %c0_481, %c0_482], %267 {strides = array<i32>} : memref<1x4x128xbf16, #tpu.memory_space<vmem>>, vector<1x4x128xbf16>,
    return
  }
  func.func @transform_0(%arg0: i32, %arg1: i32) -> (i32, i32, i32, i32, i32, i32) {
    %c0_i32 = arith.constant 0 : i32
    %c0_i32_0 = arith.constant 0 : i32
    %c0_i32_1 = arith.constant 0 : i32
    %c0_i32_2 = arith.constant 0 : i32
    %c0_i32_3 = arith.constant 0 : i32
    return %arg0, %c0_i32, %arg1, %c0_i32_0, %c0_i32_1, %c0_i32_2 : i32, i32, i32, i32, i32, i32
  }
  func.func @transform_1(%arg0: i32, %arg1: i32) -> (i32, i32) {
    %c0_i32 = arith.constant 0 : i32
    %c0_i32_0 = arith.constant 0 : i32
    %c0_i32_1 = arith.constant 0 : i32
    return %c0_i32, %c0_i32_0 : i32, i32
  }
  func.func @transform_2(%arg0: i32, %arg1: i32) -> (i32, i32) {
    %c0_i32 = arith.constant 0 : i32
    %c0_i32_0 = arith.constant 0 : i32
    %c0_i32_1 = arith.constant 0 : i32
    return %c0_i32, %c0_i32_0 : i32, i32
  }
  func.func @transform_3(%arg0: i32, %arg1: i32) -> (i32, i32, i32) {
    %c0_i32 = arith.constant 0 : i32
    %c0_i32_0 = arith.constant 0 : i32
    return %arg0, %arg1, %c0_i32 : i32, i32, i32
  }
}

</mosaic_0001>

<llo_original>
// kernel: backbone_base_forward.1
$region0: #{backbone_base_forward.1}
  #allocation0 [shape = 'u32[]', space=smem, size = 0x4, offset = 0x4, fixed_abs, tag = 'smem constant byte address 0x4 - core index']
  #allocation1 [shape = 'u32[144,128]{1,0:T(1,128)}', space=vmem, size = 0x12000, scoped, tag = 'internal scratch']
  #allocation2 [shape = 'bf16[4,256]{1,0:T(4,128)(2,1)}', space=vmem, size = 0x800, scoped, tag = 'scratch operand']
  %s0 = inlined_call_operand.vmem [shape: f32[2,4,2,8,2,8], index: 0, kind: input, shape index: {}]
  %s1 = inlined_call_operand.vmem [shape: bf16[256,128], index: 1, kind: input, shape index: {}]
  %s2 = inlined_call_operand.vmem [shape: f32[1,128], index: 2, kind: input, shape index: {}]
  %s3 = inlined_call_operand.hbm [shape: bf16[2,4,128], index: 3, kind: output, shape index: {}]
  %s4 = sld [smem:[#allocation0]]
  $region45: #{backbone_base_forward.1} parent=0
    _
  %s6 = ssub.s32 1, %s4
  %s7 = scalar_select 0, %s6, %s4
  $region1: #{backbone_base_forward.1} parent=0
    #allocation3 [shape = 'u8[2048]{0}', space=vmem, size = 0x800, scoped, tag = 'output window, operand 0']
    #allocation4 [shape = 's32[2]{0}', space=sflag, size = 0x8, scoped, tag = 'scoped memory for backbone_base_forward.1']
    %8 = vsyncpa [#allocation4], 0
    %s9 = scalar_lea.sflag [#allocation4], 1
    %10 = vsyncpa %s9, 0
    loop: start=0, step=1, limit=4
    $region2: #{backbone_base_forward.1} parent=1 // loop_pre_header
      _
    $region3: #{backbone_base_forward.1} parent=1 // loop_header
      %s12 = sphi 0, %s16
      %p13 = scmp.ge.s32.totalorder %s12, 4
      %s19 = sphi 0, %s31
      %s20 = sphi 0, %s27
      %s21 = sphi 0, %s19
      %s22 = sphi 0, %s20
      %s23 = sphi 0, %s21
      %s24 = sphi 0, %s22
      %s36 = sphi 0, %s38
      %s39 = sphi 0, %s36
      %s40 = sphi 0, %s39
      %s56 = sphi 0, %s40
      %s60 = sphi 0, %s60
      %s62 = sphi 0, %s60
      %s63 = sphi 0, %s62
      %s77 = sphi 0, %s63
      %s81 = sphi 0, %s81
      %s83 = sphi 0, %s81
      %s84 = sphi 0, %s83
      %s98 = sphi 0, %s84
      %s106 = sphi 0, %s108
      %s109 = sphi 0, %s106
      %s110 = sphi 0, %s109
      %s126 = sphi 0, %s110
    $region4: #{backbone_base_forward.1} parent=1 // loop_header_branch
      %15 = sbr.rel (%p13) target = $region8
    $region5: #{backbone_base_forward.1} parent=1 // loop_body
      %s17 = ssub.s32 %s12, 1
      %s18 = ssub.s32 %s12, 2
      %s25 = sadd.s32 1, %s20
      %p26 = scmp.ge.s32.totalorder %s25, 1
      %s27 = scalar_select %p26, 0, %s25
      %s28 = sadd.s32 1, %s19
      %s29 = scalar_select %p26, %s28, %s19
      %p30 = scmp.ge.s32.totalorder %s29, 2
      %s31 = scalar_select %p30, 0, %s29
      %s32 = ssub.s32 %s19, %s31
      %s33 = ssub.s32 %s20, %s27
      %s34 = sor.u32 %s32, %s33
      %p35 = scmp.eq.s32.totalorder %s34, 0
      %s37 = sadd.s32 %s36, 1
      %s38 = scalar_select %p35, %s36, %s37
      %p41 = pneg %p35
      %p42 = scmp.eq.s32.totalorder %s12, 1
      %p43 = por %p41, %p42
      %p44 = scmp.ne.s32.totalorder %s36, %s39
      %p45 = scmp.eq.s32.totalorder %s12, 0
      %p46 = por %p44, %p45
      %p47 = scmp.ne.s32.totalorder %s36, %s39
      %p48 = scmp.eq.s32.totalorder %s17, 1
      %p49 = por %p47, %p48
      %p50 = scmp.ne.s32.totalorder %s39, %s40
      %p51 = scmp.eq.s32.totalorder %s17, 0
      %p52 = por %p50, %p51
      %p53 = scmp.ne.s32.totalorder %s39, %s40
      %p54 = scmp.eq.s32.totalorder %s18, 1
      %p55 = por %p53, %p54
      %p57 = scmp.ne.s32.totalorder %s40, %s56
      %p58 = scmp.eq.s32.totalorder %s18, 0
      %p59 = por %p57, %p58
      %s61 = sadd.s32 %s60, 1
      %p64 = scmp.eq.s32.totalorder %s12, 1
      %p65 = scmp.ne.s32.totalorder %s60, %s62
      %p66 = scmp.eq.s32.totalorder %s12, 0
      %p67 = por %p65, %p66
      %p68 = scmp.ne.s32.totalorder %s60, %s62
      %p69 = scmp.eq.s32.totalorder %s17, 1
      %p70 = por %p68, %p69
      %p71 = scmp.ne.s32.totalorder %s62, %s63
      %p72 = scmp.eq.s32.totalorder %s17, 0
      %p73 = por %p71, %p72
      %p74 = scmp.ne.s32.totalorder %s62, %s63
      %p75 = scmp.eq.s32.totalorder %s18, 1
      %p76 = por %p74, %p75
      %p78 = scmp.ne.s32.totalorder %s63, %s77
      %p79 = scmp.eq.s32.totalorder %s18, 0
      %p80 = por %p78, %p79
      %s82 = sadd.s32 %s81, 1
      %p85 = scmp.eq.s32.totalorder %s12, 1
      %p86 = scmp.ne.s32.totalorder %s81, %s83
      %p87 = scmp.eq.s32.totalorder %s12, 0
      %p88 = por %p86, %p87
      %p89 = scmp.ne.s32.totalorder %s81, %s83
      %p90 = scmp.eq.s32.totalorder %s17, 1
      %p91 = por %p89, %p90
      %p92 = scmp.ne.s32.totalorder %s83, %s84
      %p93 = scmp.eq.s32.totalorder %s17, 0
      %p94 = por %p92, %p93
      %p95 = scmp.ne.s32.totalorder %s83, %s84
      %p96 = scmp.eq.s32.totalorder %s18, 1
      %p97 = por %p95, %p96
      %p99 = scmp.ne.s32.totalorder %s84, %s98
      %p100 = scmp.eq.s32.totalorder %s18, 0
      %p101 = por %p99, %p100
      %s102 = ssub.s32 %s19, %s31
      %s103 = ssub.s32 %s20, %s27
      %s104 = sor.u32 %s102, %s103
      %p105 = scmp.eq.s32.totalorder %s104, 0
      %s107 = sadd.s32 %s106, 1
      %s108 = scalar_select %p105, %s106, %s107
      %p111 = pneg %p105
      %p112 = scmp.eq.s32.totalorder %s12, 1
      %p113 = por %p111, %p112
      %p114 = scmp.ne.s32.totalorder %s106, %s109
      %p115 = scmp.eq.s32.totalorder %s12, 0
      %p116 = por %p114, %p115
      %p117 = scmp.ne.s32.totalorder %s106, %s109
      %p118 = scmp.eq.s32.totalorder %s17, 1
      %p119 = por %p117, %p118
      %p120 = scmp.ne.s32.totalorder %s109, %s110
      %p121 = scmp.eq.s32.totalorder %s17, 0
      %p122 = por %p120, %p121
      %p123 = scmp.ne.s32.totalorder %s109, %s110
      %p124 = scmp.eq.s32.totalorder %s18, 1
      %p125 = por %p123, %p124
      %p127 = scmp.ne.s32.totalorder %s110, %s126
      %p128 = scmp.eq.s32.totalorder %s18, 0
      %p129 = por %p127, %p128
      %p130 = scmp.le.s32.totalorder 1, %s12
      %p131 = scmp.lt.s32.totalorder %s12, 3
      %p132 = pnand %p130, %p131
      %p133 = pneg %p132
      // Predicated region
      $region9: #{backbone_base_forward.1} parent=5 // pred_check
        _
      $region10: #{backbone_base_forward.1} parent=5 // pred_check_branch
        %135 = sbr.rel (%p132) target = $region12
      $region11: #{backbone_base_forward.1} parent=5 // pred_region
        %s136 = ssub.s32 %s12, 1
        // Predicated region
        $region13: #{backbone_base_forward.1} parent=11 // pred_check
          %p137 = pneg %p73
        $region14: #{backbone_base_forward.1} parent=11 // pred_check_branch
          %139 = sbr.rel (%p137) target = $region16
        $region15: #{backbone_base_forward.1} parent=11 // pred_region
          _
        $region16: #{backbone_base_forward.1} parent=11 // pred_fallthru
          _
        // Predicated region
        $region17: #{backbone_base_forward.1} parent=11 // pred_check
          %p140 = pneg %p94
        $region18: #{backbone_base_forward.1} parent=11 // pred_check_branch
          %142 = sbr.rel (%p140) target = $region20
        $region19: #{backbone_base_forward.1} parent=11 // pred_region
          _
        $region20: #{backbone_base_forward.1} parent=11 // pred_fallthru
          _
      $region12: #{backbone_base_forward.1} parent=5 // pred_fallthru
        _
      %p143 = scmp.lt.s32.totalorder %s12, 2
      // Predicated region
      $region21: #{backbone_base_forward.1} parent=5 // pred_check
        %p144 = pneg %p143
      $region22: #{backbone_base_forward.1} parent=5 // pred_check_branch
        %146 = sbr.rel (%p144) target = $region24
      $region23: #{backbone_base_forward.1} parent=5 // pred_region
        // Predicated region
        $region25: #{backbone_base_forward.1} parent=23 // pred_check
          %p147 = pneg %p46
        $region26: #{backbone_base_forward.1} parent=23 // pred_check_branch
          %149 = sbr.rel (%p147) target = $region28
        $region27: #{backbone_base_forward.1} parent=23 // pred_region
          %s150 = smul.u32 2, %s20
          %p151 = scmp.lt.s32.totalorder %s19, 1
          %s152 = scalar_select %p151, %s19, 1
          %p153 = scmp.lt.s32.totalorder %s150, 1
          %s154 = scalar_select %p153, %s150, 1
          %s155 = smul.addr %s154, 8
          %s156 = smul.addr %s152, 64
          %s157 = sadd.s32 %s155, %s156
          %s158 = smul.addr %s157, 2
          %s159 = scalar_lea.vmem %s0, %s158
          %s160 = smul.u32 2, %s20
        $region28: #{backbone_base_forward.1} parent=23 // pred_fallthru
          _
      $region24: #{backbone_base_forward.1} parent=5 // pred_fallthru
        _
      %p161 = scmp.le.s32.totalorder 1, %s12
      %p162 = scmp.lt.s32.totalorder %s12, 3
      %p163 = pnand %p161, %p162
      %p164 = pneg %p163
      // Predicated region
      $region29: #{backbone_base_forward.1} parent=5 // pred_check
        _
      $region30: #{backbone_base_forward.1} parent=5 // pred_check_branch
        %166 = sbr.rel (%p163) target = $region32
      $region31: #{backbone_base_forward.1} parent=5 // pred_region
        %s167 = ssub.s32 %s12, 1
        %s168 = smul.u32 2, %s22
        %p169 = scmp.lt.s32.totalorder %s21, 1
        %s170 = scalar_select %p169, %s21, 1
        %p171 = scmp.lt.s32.totalorder %s168, 1
        %s172 = scalar_select %p171, %s168, 1
        %s173 = smul.addr %s172, 8
        %s174 = smul.addr %s170, 64
        %s175 = sadd.s32 %s173, %s174
        %s176 = smul.addr %s175, 2
        %s177 = scalar_lea.vmem %s0, %s176
        %p178 = pneg %p52
        %p179 = pneg %p49
        %p180 = pneg %p73
        %p181 = pneg %p70
        %p182 = pneg %p94
        %p183 = pneg %p91
        %p184 = pneg %p122
        %p185 = pneg %p119
        %s186 = sand.u32 %s109, 1
        %s187 = scalar_lea.sflag [#allocation4], %s186
        %s188 = sand.u32 %s109, 1
        %s189 = smul.addr %s188, 2
        %s190 = scalar_lea.vmem [#allocation3], %s189
        %s191 = smul.u32 2, %s22
        %p192 = scmp.lt.s32.totalorder %s21, 1
        %s193 = scalar_select %p192, %s21, 1
        %p194 = scmp.lt.s32.totalorder %s191, 1
        %s195 = scalar_select %p194, %s191, 1
        %s196 = smul.addr %s195, 8
        %s197 = smul.addr %s193, 64
        %s198 = sadd.s32 %s196, %s197
        %s199 = smul.addr %s198, 2
        %s200 = scalar_lea.vmem %s0, %s199
        %s201 = smul.u32 2, %s22
        %v203 = vld [vmem:[%s200] sm:$0x3]
        %v204 = vpack.c.bf16 %v203, %v203
        %vm205 = vcmask 57344
        %206 = vst.msk [vmem:[#allocation2] sm:$0x1] %vm205, %v204
        %s207 = scalar_lea.vmem %s200, 2
        %v208 = vld [vmem:[%s207] sm:$0x3]
        %v209 = vpack.c.bf16 %v208, %v208
        %v212 = vunpack.c.l.s4 1983009808
        %v213 = vunpack.c.0.s8 %v212
        %v214 = vlaneseq
        %v215 = vshrl.u32 %v214, 7
        %v216 = vsub.s32 %v213, %v215
        %v217 = vrot.slane %v209, %v216
        %218 = vrot.lane.b32.xlu0 %v217, 8
        %v219 = vpop.permute.xlu0 %218
        %vm221 = vcmask 122944
        %222 = vst.msk [vmem:[#allocation2] sm:$0x1] %vm221, %v219
        %s223 = scalar_lea.vmem %s200, 4
        %v224 = vld [vmem:[%s223] sm:$0x3]
        %v225 = vpack.c.bf16 %v224, %v224
        %v228 = vunpack.c.l.s4 1983009808
        %v229 = vunpack.c.0.s8 %v228
        %v230 = vlaneseq
        %v231 = vshrl.u32 %v230, 7
        %v232 = vsub.s32 %v229, %v231
        %v233 = vrot.slane %v225, %v232
        %234 = vrot.lane.b32.xlu0 %v233, 16
        %v235 = vpop.permute.xlu0 %234
        %vm237 = vcmask 188544
        %238 = vst.msk [vmem:[#allocation2] sm:$0x1] %vm237, %v235
        %s239 = scalar_lea.vmem %s200, 6
        %v240 = vld [vmem:[%s239] sm:$0x3]
        %v241 = vpack.c.bf16 %v240, %v240
        %v244 = vunpack.c.l.s4 1983009808
        %v245 = vunpack.c.0.s8 %v244
        %v246 = vlaneseq
        %v247 = vshrl.u32 %v246, 7
        %v248 = vsub.s32 %v245, %v247
        %v249 = vrot.slane %v241, %v248
        %250 = vrot.lane.b32.xlu0 %v249, 24
        %v251 = vpop.permute.xlu0 %250
        %vm253 = vcmask 254144
        %254 = vst.msk [vmem:[#allocation2] sm:$0x1] %vm253, %v251
        %s255 = scalar_lea.vmem %s200, 8
        %v256 = vld [vmem:[%s255] sm:$0x3]
        %v257 = vpack.c.bf16 %v256, %v256
        %v260 = vunpack.c.l.s4 1983009808
        %v261 = vunpack.c.0.s8 %v260
        %v262 = vlaneseq
        %v263 = vshrl.u32 %v262, 7
        %v264 = vsub.s32 %v261, %v263
        %v265 = vrot.slane %v257, %v264
        %266 = vrot.lane.b32.xlu0 %v265, 32
        %v267 = vpop.permute.xlu0 %266
        %vm269 = vcmask 319744
        %270 = vst.msk [vmem:[#allocation2] sm:$0x1] %vm269, %v267
        %s271 = scalar_lea.vmem %s200, 10
        %v272 = vld [vmem:[%s271] sm:$0x3]
        %v273 = vpack.c.bf16 %v272, %v272
        %v276 = vunpack.c.l.s4 1983009808
        %v277 = vunpack.c.0.s8 %v276
        %v278 = vlaneseq
        %v279 = vshrl.u32 %v278, 7
        %v280 = vsub.s32 %v277, %v279
        %v281 = vrot.slane %v273, %v280
        %282 = vrot.lane.b32.xlu0 %v281, 40
        %v283 = vpop.permute.xlu0 %282
        %vm285 = vcmask 385344
        %286 = vst.msk [vmem:[#allocation2] sm:$0x1] %vm285, %v283
        %s287 = scalar_lea.vmem %s200, 12
        %v288 = vld [vmem:[%s287] sm:$0x3]
        %v289 = vpack.c.bf16 %v288, %v288
        %v292 = vunpack.c.l.s4 1983009808
        %v293 = vunpack.c.0.s8 %v292
        %v294 = vlaneseq
        %v295 = vshrl.u32 %v294, 7
        %v296 = vsub.s32 %v293, %v295
        %v297 = vrot.slane %v289, %v296
        %298 = vrot.lane.b32.xlu0 %v297, 48
        %v299 = vpop.permute.xlu0 %298
        %vm301 = vcmask 450944
        %302 = vst.msk [vmem:[#allocation2] sm:$0x1] %vm301, %v299
        %s303 = scalar_lea.vmem %s200, 14
        %v304 = vld [vmem:[%s303] sm:$0x3]
        %v305 = vpack.c.bf16 %v304, %v304
        %v308 = vunpack.c.l.s4 1983009808
        %v309 = vunpack.c.0.s8 %v308
        %v310 = vlaneseq
        %v311 = vshrl.u32 %v310, 7
        %v312 = vsub.s32 %v309, %v311
        %v313 = vrot.slane %v305, %v312
        %314 = vrot.lane.b32.xlu0 %v313, 56
        %v315 = vpop.permute.xlu0 %314
        %vm317 = vcmask 516544
        %318 = vst.msk [vmem:[#allocation2] sm:$0x1] %vm317, %v315
        %s319 = scalar_lea.vmem %s200, 32
        %v320 = vld [vmem:[%s319] sm:$0x3]
        %v321 = vpack.c.bf16 %v320, %v320
        %v324 = vunpack.c.l.s4 1983009808
        %v325 = vunpack.c.0.s8 %v324
        %v326 = vlaneseq
        %v327 = vshrl.u32 %v326, 7
        %v328 = vsub.s32 %v325, %v327
        %v329 = vrot.slane %v321, %v328
        %330 = vrot.lane.b32.xlu0 %v329, 64
        %v331 = vpop.permute.xlu0 %330
        %vm333 = vcmask 582144
        %334 = vst.msk [vmem:[#allocation2] sm:$0x1] %vm333, %v331
        %s335 = scalar_lea.vmem %s200, 34
        %v336 = vld [vmem:[%s335] sm:$0x3]
        %v337 = vpack.c.bf16 %v336, %v336
        %v340 = vunpack.c.l.s4 1983009808
        %v341 = vunpack.c.0.s8 %v340
        %v342 = vlaneseq
        %v343 = vshrl.u32 %v342, 7
        %v344 = vsub.s32 %v341, %v343
        %v345 = vrot.slane %v337, %v344
        %346 = vrot.lane.b32.xlu0 %v345, 72
        %v347 = vpop.permute.xlu0 %346
        %vm349 = vcmask 647744
        %350 = vst.msk [vmem:[#allocation2] sm:$0x1] %vm349, %v347
        %s351 = scalar_lea.vmem %s200, 36
        %v352 = vld [vmem:[%s351] sm:$0x3]
        %v353 = vpack.c.bf16 %v352, %v352
        %v356 = vunpack.c.l.s4 1983009808
        %v357 = vunpack.c.0.s8 %v356
        %v358 = vlaneseq
        %v359 = vshrl.u32 %v358, 7
        %v360 = vsub.s32 %v357, %v359
        %v361 = vrot.slane %v353, %v360
        %362 = vrot.lane.b32.xlu0 %v361, 80
        %v363 = vpop.permute.xlu0 %362
        %vm365 = vcmask 713344
        %366 = vst.msk [vmem:[#allocation2] sm:$0x1] %vm365, %v363
        %s367 = scalar_lea.vmem %s200, 38
        %v368 = vld [vmem:[%s367] sm:$0x3]
        %v369 = vpack.c.bf16 %v368, %v368
        %v372 = vunpack.c.l.s4 1983009808
        %v373 = vunpack.c.0.s8 %v372
        %v374 = vlaneseq
        %v375 = vshrl.u32 %v374, 7
        %v376 = vsub.s32 %v373, %v375
        %v377 = vrot.slane %v369, %v376
        %378 = vrot.lane.b32.xlu0 %v377, 88
        %v379 = vpop.permute.xlu0 %378
        %vm381 = vcmask 778944
        %382 = vst.msk [vmem:[#allocation2] sm:$0x1] %vm381, %v379
        %s383 = scalar_lea.vmem %s200, 40
        %v384 = vld [vmem:[%s383] sm:$0x3]
        %v385 = vpack.c.bf16 %v384, %v384
        %v388 = vunpack.c.l.s4 1983009808
        %v389 = vunpack.c.0.s8 %v388
        %v390 = vlaneseq
        %v391 = vshrl.u32 %v390, 7
        %v392 = vsub.s32 %v389, %v391
        %v393 = vrot.slane %v385, %v392
        %394 = vrot.lane.b32.xlu0 %v393, 96
        %v395 = vpop.permute.xlu0 %394
        %vm397 = vcmask 844544
        %398 = vst.msk [vmem:[#allocation2] sm:$0x1] %vm397, %v395
        %s399 = scalar_lea.vmem %s200, 42
        %v400 = vld [vmem:[%s399] sm:$0x3]
        %v401 = vpack.c.bf16 %v400, %v400
        %v404 = vunpack.c.l.s4 1983009808
        %v405 = vunpack.c.0.s8 %v404
        %v406 = vlaneseq
        %v407 = vshrl.u32 %v406, 7
        %v408 = vsub.s32 %v405, %v407
        %v409 = vrot.slane %v401, %v408
        %410 = vrot.lane.b32.xlu0 %v409, 104
        %v411 = vpop.permute.xlu0 %410
        %vm413 = vcmask 910144
        %414 = vst.msk [vmem:[#allocation2] sm:$0x1] %vm413, %v411
        %s415 = scalar_lea.vmem %s200, 44
        %v416 = vld [vmem:[%s415] sm:$0x3]
        %v417 = vpack.c.bf16 %v416, %v416
        %v420 = vunpack.c.l.s4 1983009808
        %v421 = vunpack.c.0.s8 %v420
        %v422 = vlaneseq
        %v423 = vshrl.u32 %v422, 7
        %v424 = vsub.s32 %v421, %v423
        %v425 = vrot.slane %v417, %v424
        %426 = vrot.lane.b32.xlu0 %v425, 112
        %v427 = vpop.permute.xlu0 %426
        %vm429 = vcmask 975744
        %430 = vst.msk [vmem:[#allocation2] sm:$0x1] %vm429, %v427
        %s431 = scalar_lea.vmem %s200, 46
        %v432 = vld [vmem:[%s431] sm:$0x3]
        %v433 = vpack.c.bf16 %v432, %v432
        %v436 = vunpack.c.l.s4 1983009808
        %v437 = vunpack.c.0.s8 %v436
        %v438 = vlaneseq
        %v439 = vshrl.u32 %v438, 7
        %v440 = vsub.s32 %v437, %v439
        %v441 = vrot.slane %v433, %v440
        %442 = vrot.lane.b32.xlu0 %v441, 120
        %v443 = vpop.permute.xlu0 %442
        %vm445 = vcmask 1041344
        %446 = vst.msk [vmem:[#allocation2] sm:$0x1] %vm445, %v443
        %s447 = scalar_lea.vmem %s200, 64
        %v448 = vld [vmem:[%s447] sm:$0x3]
        %v449 = vpack.c.bf16 %v448, %v448
        %450 = vst.msk [vmem:[#allocation2 + $0x2] sm:$0x1] %vm205, %v449
        %s451 = scalar_lea.vmem %s200, 66
        %v452 = vld [vmem:[%s451] sm:$0x3]
        %v453 = vpack.c.bf16 %v452, %v452
        %v456 = vunpack.c.l.s4 1983009808
        %v457 = vunpack.c.0.s8 %v456
        %v458 = vlaneseq
        %v459 = vshrl.u32 %v458, 7
        %v460 = vsub.s32 %v457, %v459
        %v461 = vrot.slane %v453, %v460
        %462 = vrot.lane.b32.xlu0 %v461, 8
        %v463 = vpop.permute.xlu0 %462
        %465 = vst.msk [vmem:[#allocation2 + $0x2] sm:$0x1] %vm221, %v463
        %s466 = scalar_lea.vmem %s200, 68
        %v467 = vld [vmem:[%s466] sm:$0x3]
        %v468 = vpack.c.bf16 %v467, %v467
        %v471 = vunpack.c.l.s4 1983009808
        %v472 = vunpack.c.0.s8 %v471
        %v473 = vlaneseq
        %v474 = vshrl.u32 %v473, 7
        %v475 = vsub.s32 %v472, %v474
        %v476 = vrot.slane %v468, %v475
        %477 = vrot.lane.b32.xlu0 %v476, 16
        %v478 = vpop.permute.xlu0 %477
        %480 = vst.msk [vmem:[#allocation2 + $0x2] sm:$0x1] %vm237, %v478
        %s481 = scalar_lea.vmem %s200, 70
        %v482 = vld [vmem:[%s481] sm:$0x3]
        %v483 = vpack.c.bf16 %v482, %v482
        %v486 = vunpack.c.l.s4 1983009808
        %v487 = vunpack.c.0.s8 %v486
        %v488 = vlaneseq
        %v489 = vshrl.u32 %v488, 7
        %v490 = vsub.s32 %v487, %v489
        %v491 = vrot.slane %v483, %v490
        %492 = vrot.lane.b32.xlu0 %v491, 24
        %v493 = vpop.permute.xlu0 %492
        %495 = vst.msk [vmem:[#allocation2 + $0x2] sm:$0x1] %vm253, %v493
        %s496 = scalar_lea.vmem %s200, 72
        %v497 = vld [vmem:[%s496] sm:$0x3]
        %v498 = vpack.c.bf16 %v497, %v497
        %v501 = vunpack.c.l.s4 1983009808
        %v502 = vunpack.c.0.s8 %v501
        %v503 = vlaneseq
        %v504 = vshrl.u32 %v503, 7
        %v505 = vsub.s32 %v502, %v504
        %v506 = vrot.slane %v498, %v505
        %507 = vrot.lane.b32.xlu0 %v506, 32
        %v508 = vpop.permute.xlu0 %507
        %510 = vst.msk [vmem:[#allocation2 + $0x2] sm:$0x1] %vm269, %v508
        %s511 = scalar_lea.vmem %s200, 74
        %v512 = vld [vmem:[%s511] sm:$0x3]
        %v513 = vpack.c.bf16 %v512, %v512
        %v516 = vunpack.c.l.s4 1983009808
        %v517 = vunpack.c.0.s8 %v516
        %v518 = vlaneseq
        %v519 = vshrl.u32 %v518, 7
        %v520 = vsub.s32 %v517, %v519
        %v521 = vrot.slane %v513, %v520
        %522 = vrot.lane.b32.xlu0 %v521, 40
        %v523 = vpop.permute.xlu0 %522
        %525 = vst.msk [vmem:[#allocation2 + $0x2] sm:$0x1] %vm285, %v523
        %s526 = scalar_lea.vmem %s200, 76
        %v527 = vld [vmem:[%s526] sm:$0x3]
        %v528 = vpack.c.bf16 %v527, %v527
        %v531 = vunpack.c.l.s4 1983009808
        %v532 = vunpack.c.0.s8 %v531
        %v533 = vlaneseq
        %v534 = vshrl.u32 %v533, 7
        %v535 = vsub.s32 %v532, %v534
        %v536 = vrot.slane %v528, %v535
        %537 = vrot.lane.b32.xlu0 %v536, 48
        %v538 = vpop.permute.xlu0 %537
        %540 = vst.msk [vmem:[#allocation2 + $0x2] sm:$0x1] %vm301, %v538
        %s541 = scalar_lea.vmem %s200, 78
        %v542 = vld [vmem:[%s541] sm:$0x3]
        %v543 = vpack.c.bf16 %v542, %v542
        %v546 = vunpack.c.l.s4 1983009808
        %v547 = vunpack.c.0.s8 %v546
        %v548 = vlaneseq
        %v549 = vshrl.u32 %v548, 7
        %v550 = vsub.s32 %v547, %v549
        %v551 = vrot.slane %v543, %v550
        %552 = vrot.lane.b32.xlu0 %v551, 56
        %v553 = vpop.permute.xlu0 %552
        %555 = vst.msk [vmem:[#allocation2 + $0x2] sm:$0x1] %vm317, %v553
        %s556 = scalar_lea.vmem %s200, 96
        %v557 = vld [vmem:[%s556] sm:$0x3]
        %v558 = vpack.c.bf16 %v557, %v557
        %v561 = vunpack.c.l.s4 1983009808
        %v562 = vunpack.c.0.s8 %v561
        %v563 = vlaneseq
        %v564 = vshrl.u32 %v563, 7
        %v565 = vsub.s32 %v562, %v564
        %v566 = vrot.slane %v558, %v565
        %567 = vrot.lane.b32.xlu0 %v566, 64
        %v568 = vpop.permute.xlu0 %567
        %570 = vst.msk [vmem:[#allocation2 + $0x2] sm:$0x1] %vm333, %v568
        %s571 = scalar_lea.vmem %s200, 98
        %v572 = vld [vmem:[%s571] sm:$0x3]
        %v573 = vpack.c.bf16 %v572, %v572
        %v576 = vunpack.c.l.s4 1983009808
        %v577 = vunpack.c.0.s8 %v576
        %v578 = vlaneseq
        %v579 = vshrl.u32 %v578, 7
        %v580 = vsub.s32 %v577, %v579
        %v581 = vrot.slane %v573, %v580
        %582 = vrot.lane.b32.xlu0 %v581, 72
        %v583 = vpop.permute.xlu0 %582
        %585 = vst.msk [vmem:[#allocation2 + $0x2] sm:$0x1] %vm349, %v583
        %s586 = scalar_lea.vmem %s200, 100
        %v587 = vld [vmem:[%s586] sm:$0x3]
        %v588 = vpack.c.bf16 %v587, %v587
        %v591 = vunpack.c.l.s4 1983009808
        %v592 = vunpack.c.0.s8 %v591
        %v593 = vlaneseq
        %v594 = vshrl.u32 %v593, 7
        %v595 = vsub.s32 %v592, %v594
        %v596 = vrot.slane %v588, %v595
        %597 = vrot.lane.b32.xlu0 %v596, 80
        %v598 = vpop.permute.xlu0 %597
        %600 = vst.msk [vmem:[#allocation2 + $0x2] sm:$0x1] %vm365, %v598
        %s601 = scalar_lea.vmem %s200, 102
        %v602 = vld [vmem:[%s601] sm:$0x3]
        %v603 = vpack.c.bf16 %v602, %v602
        %v606 = vunpack.c.l.s4 1983009808
        %v607 = vunpack.c.0.s8 %v606
        %v608 = vlaneseq
        %v609 = vshrl.u32 %v608, 7
        %v610 = vsub.s32 %v607, %v609
        %v611 = vrot.slane %v603, %v610
        %612 = vrot.lane.b32.xlu0 %v611, 88
        %v613 = vpop.permute.xlu0 %612
        %615 = vst.msk [vmem:[#allocation2 + $0x2] sm:$0x1] %vm381, %v613
        %s616 = scalar_lea.vmem %s200, 104
        %v617 = vld [vmem:[%s616] sm:$0x3]
        %v618 = vpack.c.bf16 %v617, %v617
        %v621 = vunpack.c.l.s4 1983009808
        %v622 = vunpack.c.0.s8 %v621
        %v623 = vlaneseq
        %v624 = vshrl.u32 %v623, 7
        %v625 = vsub.s32 %v622, %v624
        %v626 = vrot.slane %v618, %v625
        %627 = vrot.lane.b32.xlu0 %v626, 96
        %v628 = vpop.permute.xlu0 %627
        %630 = vst.msk [vmem:[#allocation2 + $0x2] sm:$0x1] %vm397, %v628
        %s631 = scalar_lea.vmem %s200, 106
        %v632 = vld [vmem:[%s631] sm:$0x3]
        %v633 = vpack.c.bf16 %v632, %v632
        %v636 = vunpack.c.l.s4 1983009808
        %v637 = vunpack.c.0.s8 %v636
        %v638 = vlaneseq
        %v639 = vshrl.u32 %v638, 7
        %v640 = vsub.s32 %v637, %v639
        %v641 = vrot.slane %v633, %v640
        %642 = vrot.lane.b32.xlu0 %v641, 104
        %v643 = vpop.permute.xlu0 %642
        %645 = vst.msk [vmem:[#allocation2 + $0x2] sm:$0x1] %vm413, %v643
        %s646 = scalar_lea.vmem %s200, 108
        %v647 = vld [vmem:[%s646] sm:$0x3]
        %v648 = vpack.c.bf16 %v647, %v647
        %v651 = vunpack.c.l.s4 1983009808
        %v652 = vunpack.c.0.s8 %v651
        %v653 = vlaneseq
        %v654 = vshrl.u32 %v653, 7
        %v655 = vsub.s32 %v652, %v654
        %v656 = vrot.slane %v648, %v655
        %657 = vrot.lane.b32.xlu0 %v656, 112
        %v658 = vpop.permute.xlu0 %657
        %660 = vst.msk [vmem:[#allocation2 + $0x2] sm:$0x1] %vm429, %v658
        %s661 = scalar_lea.vmem %s200, 110
        %v662 = vld [vmem:[%s661] sm:$0x3]
        %v663 = vpack.c.bf16 %v662, %v662
        %v666 = vunpack.c.l.s4 1983009808
        %v667 = vunpack.c.0.s8 %v666
        %v668 = vlaneseq
        %v669 = vshrl.u32 %v668, 7
        %v670 = vsub.s32 %v667, %v669
        %v671 = vrot.slane %v663, %v670
        %672 = vrot.lane.b32.xlu0 %v671, 120
        %v673 = vpop.permute.xlu0 %672
        %675 = vst.msk [vmem:[#allocation2 + $0x2] sm:$0x1] %vm445, %v673
        %s676 = scalar_lea.vmem %s200, 16
        %v677 = vld [vmem:[%s676] sm:$0x3]
        %v678 = vpack.c.bf16 %v677, %v677
        %v681 = vunpack.c.l.s4 1983009808
        %v682 = vunpack.c.0.s8 %v681
        %v683 = vlaneseq
        %v684 = vshrl.u32 %v683, 7
        %v685 = vsub.s32 %v682, %v684
        %v686 = vrot.slane %v678, %v685
        %v687 = vrot.slane %v686, 7
        %vm689 = vcmask 58369
        %690 = vst.msk [vmem:[#allocation2] sm:$0x2] %vm689, %v687
        %s691 = scalar_lea.vmem %s200, 18
        %v692 = vld [vmem:[%s691] sm:$0x3]
        %v693 = vpack.c.bf16 %v692, %v692
        %v696 = vunpack.c.l.s4 1983009808
        %v697 = vunpack.c.0.s8 %v696
        %v698 = vlaneseq
        %v699 = vshrl.u32 %v698, 7
        %v700 = vsub.s32 %v697, %v699
        %v701 = vrot.slane %v693, %v700
        %v702 = vrot.slane %v701, 7
        %703 = vrot.lane.b32.xlu0 %v702, 8
        %v704 = vpop.permute.xlu0 %703
        %vm706 = vcmask 123969
        %707 = vst.msk [vmem:[#allocation2] sm:$0x2] %vm706, %v704
        %s708 = scalar_lea.vmem %s200, 20
        %v709 = vld [vmem:[%s708] sm:$0x3]
        %v710 = vpack.c.bf16 %v709, %v709
        %v713 = vunpack.c.l.s4 1983009808
        %v714 = vunpack.c.0.s8 %v713
        %v715 = vlaneseq
        %v716 = vshrl.u32 %v715, 7
        %v717 = vsub.s32 %v714, %v716
        %v718 = vrot.slane %v710, %v717
        %v719 = vrot.slane %v718, 7
        %720 = vrot.lane.b32.xlu0 %v719, 16
        %v721 = vpop.permute.xlu0 %720
        %vm723 = vcmask 189569
        %724 = vst.msk [vmem:[#allocation2] sm:$0x2] %vm723, %v721
        %s725 = scalar_lea.vmem %s200, 22
        %v726 = vld [vmem:[%s725] sm:$0x3]
        %v727 = vpack.c.bf16 %v726, %v726
        %v730 = vunpack.c.l.s4 1983009808
        %v731 = vunpack.c.0.s8 %v730
        %v732 = vlaneseq
        %v733 = vshrl.u32 %v732, 7
        %v734 = vsub.s32 %v731, %v733
        %v735 = vrot.slane %v727, %v734
        %v736 = vrot.slane %v735, 7
        %737 = vrot.lane.b32.xlu0 %v736, 24
        %v738 = vpop.permute.xlu0 %737
        %vm740 = vcmask 255169
        %741 = vst.msk [vmem:[#allocation2] sm:$0x2] %vm740, %v738
        %s742 = scalar_lea.vmem %s200, 24
        %v743 = vld [vmem:[%s742] sm:$0x3]
        %v744 = vpack.c.bf16 %v743, %v743
        %v747 = vunpack.c.l.s4 1983009808
        %v748 = vunpack.c.0.s8 %v747
        %v749 = vlaneseq
        %v750 = vshrl.u32 %v749, 7
        %v751 = vsub.s32 %v748, %v750
        %v752 = vrot.slane %v744, %v751
        %v753 = vrot.slane %v752, 7
        %754 = vrot.lane.b32.xlu0 %v753, 32
        %v755 = vpop.permute.xlu0 %754
        %vm757 = vcmask 320769
        %758 = vst.msk [vmem:[#allocation2] sm:$0x2] %vm757, %v755
        %s759 = scalar_lea.vmem %s200, 26
        %v760 = vld [vmem:[%s759] sm:$0x3]
        %v761 = vpack.c.bf16 %v760, %v760
        %v764 = vunpack.c.l.s4 1983009808
        %v765 = vunpack.c.0.s8 %v764
        %v766 = vlaneseq
        %v767 = vshrl.u32 %v766, 7
        %v768 = vsub.s32 %v765, %v767
        %v769 = vrot.slane %v761, %v768
        %v770 = vrot.slane %v769, 7
        %771 = vrot.lane.b32.xlu0 %v770, 40
        %v772 = vpop.permute.xlu0 %771
        %vm774 = vcmask 386369
        %775 = vst.msk [vmem:[#allocation2] sm:$0x2] %vm774, %v772
        %s776 = scalar_lea.vmem %s200, 28
        %v777 = vld [vmem:[%s776] sm:$0x3]
        %v778 = vpack.c.bf16 %v777, %v777
        %v781 = vunpack.c.l.s4 1983009808
        %v782 = vunpack.c.0.s8 %v781
        %v783 = vlaneseq
        %v784 = vshrl.u32 %v783, 7
        %v785 = vsub.s32 %v782, %v784
        %v786 = vrot.slane %v778, %v785
        %v787 = vrot.slane %v786, 7
        %788 = vrot.lane.b32.xlu0 %v787, 48
        %v789 = vpop.permute.xlu0 %788
        %vm791 = vcmask 451969
        %792 = vst.msk [vmem:[#allocation2] sm:$0x2] %vm791, %v789
        %s793 = scalar_lea.vmem %s200, 30
        %v794 = vld [vmem:[%s793] sm:$0x3]
        %v795 = vpack.c.bf16 %v794, %v794
        %v798 = vunpack.c.l.s4 1983009808
        %v799 = vunpack.c.0.s8 %v798
        %v800 = vlaneseq
        %v801 = vshrl.u32 %v800, 7
        %v802 = vsub.s32 %v799, %v801
        %v803 = vrot.slane %v795, %v802
        %v804 = vrot.slane %v803, 7
        %805 = vrot.lane.b32.xlu0 %v804, 56
        %v806 = vpop.permute.xlu0 %805
        %vm808 = vcmask 517569
        %809 = vst.msk [vmem:[#allocation2] sm:$0x2] %vm808, %v806
        %s810 = scalar_lea.vmem %s200, 48
        %v811 = vld [vmem:[%s810] sm:$0x3]
        %v812 = vpack.c.bf16 %v811, %v811
        %v815 = vunpack.c.l.s4 1983009808
        %v816 = vunpack.c.0.s8 %v815
        %v817 = vlaneseq
        %v818 = vshrl.u32 %v817, 7
        %v819 = vsub.s32 %v816, %v818
        %v820 = vrot.slane %v812, %v819
        %v821 = vrot.slane %v820, 7
        %822 = vrot.lane.b32.xlu0 %v821, 64
        %v823 = vpop.permute.xlu0 %822
        %vm825 = vcmask 583169
        %826 = vst.msk [vmem:[#allocation2] sm:$0x2] %vm825, %v823
        %s827 = scalar_lea.vmem %s200, 50
        %v828 = vld [vmem:[%s827] sm:$0x3]
        %v829 = vpack.c.bf16 %v828, %v828
        %v832 = vunpack.c.l.s4 1983009808
        %v833 = vunpack.c.0.s8 %v832
        %v834 = vlaneseq
        %v835 = vshrl.u32 %v834, 7
        %v836 = vsub.s32 %v833, %v835
        %v837 = vrot.slane %v829, %v836
        %v838 = vrot.slane %v837, 7
        %839 = vrot.lane.b32.xlu0 %v838, 72
        %v840 = vpop.permute.xlu0 %839
        %vm842 = vcmask 648769
        %843 = vst.msk [vmem:[#allocation2] sm:$0x2] %vm842, %v840
        %s844 = scalar_lea.vmem %s200, 52
        %v845 = vld [vmem:[%s844] sm:$0x3]
        %v846 = vpack.c.bf16 %v845, %v845
        %v849 = vunpack.c.l.s4 1983009808
        %v850 = vunpack.c.0.s8 %v849
        %v851 = vlaneseq
        %v852 = vshrl.u32 %v851, 7
        %v853 = vsub.s32 %v850, %v852
        %v854 = vrot.slane %v846, %v853
        %v855 = vrot.slane %v854, 7
        %856 = vrot.lane.b32.xlu0 %v855, 80
        %v857 = vpop.permute.xlu0 %856
        %vm859 = vcmask 714369
        %860 = vst.msk [vmem:[#allocation2] sm:$0x2] %vm859, %v857
        %s861 = scalar_lea.vmem %s200, 54
        %v862 = vld [vmem:[%s861] sm:$0x3]
        %v863 = vpack.c.bf16 %v862, %v862
        %v866 = vunpack.c.l.s4 1983009808
        %v867 = vunpack.c.0.s8 %v866
        %v868 = vlaneseq
        %v869 = vshrl.u32 %v868, 7
        %v870 = vsub.s32 %v867, %v869
        %v871 = vrot.slane %v863, %v870
        %v872 = vrot.slane %v871, 7
        %873 = vrot.lane.b32.xlu0 %v872, 88
        %v874 = vpop.permute.xlu0 %873
        %vm876 = vcmask 779969
        %877 = vst.msk [vmem:[#allocation2] sm:$0x2] %vm876, %v874
        %s878 = scalar_lea.vmem %s200, 56
        %v879 = vld [vmem:[%s878] sm:$0x3]
        %v880 = vpack.c.bf16 %v879, %v879
        %v883 = vunpack.c.l.s4 1983009808
        %v884 = vunpack.c.0.s8 %v883
        %v885 = vlaneseq
        %v886 = vshrl.u32 %v885, 7
        %v887 = vsub.s32 %v884, %v886
        %v888 = vrot.slane %v880, %v887
        %v889 = vrot.slane %v888, 7
        %890 = vrot.lane.b32.xlu0 %v889, 96
        %v891 = vpop.permute.xlu0 %890
        %vm893 = vcmask 845569
        %894 = vst.msk [vmem:[#allocation2] sm:$0x2] %vm893, %v891
        %s895 = scalar_lea.vmem %s200, 58
        %v896 = vld [vmem:[%s895] sm:$0x3]
        %v897 = vpack.c.bf16 %v896, %v896
        %v900 = vunpack.c.l.s4 1983009808
        %v901 = vunpack.c.0.s8 %v900
        %v902 = vlaneseq
        %v903 = vshrl.u32 %v902, 7
        %v904 = vsub.s32 %v901, %v903
        %v905 = vrot.slane %v897, %v904
        %v906 = vrot.slane %v905, 7
        %907 = vrot.lane.b32.xlu0 %v906, 104
        %v908 = vpop.permute.xlu0 %907
        %vm910 = vcmask 911169
        %911 = vst.msk [vmem:[#allocation2] sm:$0x2] %vm910, %v908
        %s912 = scalar_lea.vmem %s200, 60
        %v913 = vld [vmem:[%s912] sm:$0x3]
        %v914 = vpack.c.bf16 %v913, %v913
        %v917 = vunpack.c.l.s4 1983009808
        %v918 = vunpack.c.0.s8 %v917
        %v919 = vlaneseq
        %v920 = vshrl.u32 %v919, 7
        %v921 = vsub.s32 %v918, %v920
        %v922 = vrot.slane %v914, %v921
        %v923 = vrot.slane %v922, 7
        %924 = vrot.lane.b32.xlu0 %v923, 112
        %v925 = vpop.permute.xlu0 %924
        %vm927 = vcmask 976769
        %928 = vst.msk [vmem:[#allocation2] sm:$0x2] %vm927, %v925
        %s929 = scalar_lea.vmem %s200, 62
        %v930 = vld [vmem:[%s929] sm:$0x3]
        %v931 = vpack.c.bf16 %v930, %v930
        %v934 = vunpack.c.l.s4 1983009808
        %v935 = vunpack.c.0.s8 %v934
        %v936 = vlaneseq
        %v937 = vshrl.u32 %v936, 7
        %v938 = vsub.s32 %v935, %v937
        %v939 = vrot.slane %v931, %v938
        %v940 = vrot.slane %v939, 7
        %941 = vrot.lane.b32.xlu0 %v940, 120
        %v942 = vpop.permute.xlu0 %941
        %vm944 = vcmask 1042369
        %945 = vst.msk [vmem:[#allocation2] sm:$0x2] %vm944, %v942
        %s946 = scalar_lea.vmem %s200, 80
        %v947 = vld [vmem:[%s946] sm:$0x3]
        %v948 = vpack.c.bf16 %v947, %v947
        %v951 = vunpack.c.l.s4 1983009808
        %v952 = vunpack.c.0.s8 %v951
        %v953 = vlaneseq
        %v954 = vshrl.u32 %v953, 7
        %v955 = vsub.s32 %v952, %v954
        %v956 = vrot.slane %v948, %v955
        %v957 = vrot.slane %v956, 7
        %959 = vst.msk [vmem:[#allocation2 + $0x2] sm:$0x2] %vm689, %v957
        %s960 = scalar_lea.vmem %s200, 82
        %v961 = vld [vmem:[%s960] sm:$0x3]
        %v962 = vpack.c.bf16 %v961, %v961
        %v965 = vunpack.c.l.s4 1983009808
        %v966 = vunpack.c.0.s8 %v965
        %v967 = vlaneseq
        %v968 = vshrl.u32 %v967, 7
        %v969 = vsub.s32 %v966, %v968
        %v970 = vrot.slane %v962, %v969
        %v971 = vrot.slane %v970, 7
        %972 = vrot.lane.b32.xlu0 %v971, 8
        %v973 = vpop.permute.xlu0 %972
        %975 = vst.msk [vmem:[#allocation2 + $0x2] sm:$0x2] %vm706, %v973
        %s976 = scalar_lea.vmem %s200, 84
        %v977 = vld [vmem:[%s976] sm:$0x3]
        %v978 = vpack.c.bf16 %v977, %v977
        %v981 = vunpack.c.l.s4 1983009808
        %v982 = vunpack.c.0.s8 %v981
        %v983 = vlaneseq
        %v984 = vshrl.u32 %v983, 7
        %v985 = vsub.s32 %v982, %v984
        %v986 = vrot.slane %v978, %v985
        %v987 = vrot.slane %v986, 7
        %988 = vrot.lane.b32.xlu0 %v987, 16
        %v989 = vpop.permute.xlu0 %988
        %991 = vst.msk [vmem:[#allocation2 + $0x2] sm:$0x2] %vm723, %v989
        %s992 = scalar_lea.vmem %s200, 86
        %v993 = vld [vmem:[%s992] sm:$0x3]
        %v994 = vpack.c.bf16 %v993, %v993
        %v997 = vunpack.c.l.s4 1983009808
        %v998 = vunpack.c.0.s8 %v997
        %v999 = vlaneseq
        %v1000 = vshrl.u32 %v999, 7
        %v1001 = vsub.s32 %v998, %v1000
        %v1002 = vrot.slane %v994, %v1001
        %v1003 = vrot.slane %v1002, 7
        %1004 = vrot.lane.b32.xlu0 %v1003, 24
        %v1005 = vpop.permute.xlu0 %1004
        %1007 = vst.msk [vmem:[#allocation2 + $0x2] sm:$0x2] %vm740, %v1005
        %s1008 = scalar_lea.vmem %s200, 88
        %v1009 = vld [vmem:[%s1008] sm:$0x3]
        %v1010 = vpack.c.bf16 %v1009, %v1009
        %v1013 = vunpack.c.l.s4 1983009808
        %v1014 = vunpack.c.0.s8 %v1013
        %v1015 = vlaneseq
        %v1016 = vshrl.u32 %v1015, 7
        %v1017 = vsub.s32 %v1014, %v1016
        %v1018 = vrot.slane %v1010, %v1017
        %v1019 = vrot.slane %v1018, 7
        %1020 = vrot.lane.b32.xlu0 %v1019, 32
        %v1021 = vpop.permute.xlu0 %1020
        %1023 = vst.msk [vmem:[#allocation2 + $0x2] sm:$0x2] %vm757, %v1021
        %s1024 = scalar_lea.vmem %s200, 90
        %v1025 = vld [vmem:[%s1024] sm:$0x3]
        %v1026 = vpack.c.bf16 %v1025, %v1025
        %v1029 = vunpack.c.l.s4 1983009808
        %v1030 = vunpack.c.0.s8 %v1029
        %v1031 = vlaneseq
        %v1032 = vshrl.u32 %v1031, 7
        %v1033 = vsub.s32 %v1030, %v1032
        %v1034 = vrot.slane %v1026, %v1033
        %v1035 = vrot.slane %v1034, 7
        %1036 = vrot.lane.b32.xlu0 %v1035, 40
        %v1037 = vpop.permute.xlu0 %1036
        %1039 = vst.msk [vmem:[#allocation2 + $0x2] sm:$0x2] %vm774, %v1037
        %s1040 = scalar_lea.vmem %s200, 92
        %v1041 = vld [vmem:[%s1040] sm:$0x3]
        %v1042 = vpack.c.bf16 %v1041, %v1041
        %v1045 = vunpack.c.l.s4 1983009808
        %v1046 = vunpack.c.0.s8 %v1045
        %v1047 = vlaneseq
        %v1048 = vshrl.u32 %v1047, 7
        %v1049 = vsub.s32 %v1046, %v1048
        %v1050 = vrot.slane %v1042, %v1049
        %v1051 = vrot.slane %v1050, 7
        %1052 = vrot.lane.b32.xlu0 %v1051, 48
        %v1053 = vpop.permute.xlu0 %1052
        %1055 = vst.msk [vmem:[#allocation2 + $0x2] sm:$0x2] %vm791, %v1053
        %s1056 = scalar_lea.vmem %s200, 94
        %v1057 = vld [vmem:[%s1056] sm:$0x3]
        %v1058 = vpack.c.bf16 %v1057, %v1057
        %v1061 = vunpack.c.l.s4 1983009808
        %v1062 = vunpack.c.0.s8 %v1061
        %v1063 = vlaneseq
        %v1064 = vshrl.u32 %v1063, 7
        %v1065 = vsub.s32 %v1062, %v1064
        %v1066 = vrot.slane %v1058, %v1065
        %v1067 = vrot.slane %v1066, 7
        %1068 = vrot.lane.b32.xlu0 %v1067, 56
        %v1069 = vpop.permute.xlu0 %1068
        %1071 = vst.msk [vmem:[#allocation2 + $0x2] sm:$0x2] %vm808, %v1069
        %s1072 = scalar_lea.vmem %s200, 112
        %v1073 = vld [vmem:[%s1072] sm:$0x3]
        %v1074 = vpack.c.bf16 %v1073, %v1073
        %v1077 = vunpack.c.l.s4 1983009808
        %v1078 = vunpack.c.0.s8 %v1077
        %v1079 = vlaneseq
        %v1080 = vshrl.u32 %v1079, 7
        %v1081 = vsub.s32 %v1078, %v1080
        %v1082 = vrot.slane %v1074, %v1081
        %v1083 = vrot.slane %v1082, 7
        %1084 = vrot.lane.b32.xlu0 %v1083, 64
        %v1085 = vpop.permute.xlu0 %1084
        %1087 = vst.msk [vmem:[#allocation2 + $0x2] sm:$0x2] %vm825, %v1085
        %s1088 = scalar_lea.vmem %s200, 114
        %v1089 = vld [vmem:[%s1088] sm:$0x3]
        %v1090 = vpack.c.bf16 %v1089, %v1089
        %v1093 = vunpack.c.l.s4 1983009808
        %v1094 = vunpack.c.0.s8 %v1093
        %v1095 = vlaneseq
        %v1096 = vshrl.u32 %v1095, 7
        %v1097 = vsub.s32 %v1094, %v1096
        %v1098 = vrot.slane %v1090, %v1097
        %v1099 = vrot.slane %v1098, 7
        %1100 = vrot.lane.b32.xlu0 %v1099, 72
        %v1101 = vpop.permute.xlu0 %1100
        %1103 = vst.msk [vmem:[#allocation2 + $0x2] sm:$0x2] %vm842, %v1101
        %s1104 = scalar_lea.vmem %s200, 116
        %v1105 = vld [vmem:[%s1104] sm:$0x3]
        %v1106 = vpack.c.bf16 %v1105, %v1105
        %v1109 = vunpack.c.l.s4 1983009808
        %v1110 = vunpack.c.0.s8 %v1109
        %v1111 = vlaneseq
        %v1112 = vshrl.u32 %v1111, 7
        %v1113 = vsub.s32 %v1110, %v1112
        %v1114 = vrot.slane %v1106, %v1113
        %v1115 = vrot.slane %v1114, 7
        %1116 = vrot.lane.b32.xlu0 %v1115, 80
        %v1117 = vpop.permute.xlu0 %1116
        %1119 = vst.msk [vmem:[#allocation2 + $0x2] sm:$0x2] %vm859, %v1117
        %s1120 = scalar_lea.vmem %s200, 118
        %v1121 = vld [vmem:[%s1120] sm:$0x3]
        %v1122 = vpack.c.bf16 %v1121, %v1121
        %v1125 = vunpack.c.l.s4 1983009808
        %v1126 = vunpack.c.0.s8 %v1125
        %v1127 = vlaneseq
        %v1128 = vshrl.u32 %v1127, 7
        %v1129 = vsub.s32 %v1126, %v1128
        %v1130 = vrot.slane %v1122, %v1129
        %v1131 = vrot.slane %v1130, 7
        %1132 = vrot.lane.b32.xlu0 %v1131, 88
        %v1133 = vpop.permute.xlu0 %1132
        %1135 = vst.msk [vmem:[#allocation2 + $0x2] sm:$0x2] %vm876, %v1133
        %s1136 = scalar_lea.vmem %s200, 120
        %v1137 = vld [vmem:[%s1136] sm:$0x3]
        %v1138 = vpack.c.bf16 %v1137, %v1137
        %v1141 = vunpack.c.l.s4 1983009808
        %v1142 = vunpack.c.0.s8 %v1141
        %v1143 = vlaneseq
        %v1144 = vshrl.u32 %v1143, 7
        %v1145 = vsub.s32 %v1142, %v1144
        %v1146 = vrot.slane %v1138, %v1145
        %v1147 = vrot.slane %v1146, 7
        %1148 = vrot.lane.b32.xlu0 %v1147, 96
        %v1149 = vpop.permute.xlu0 %1148
        %1151 = vst.msk [vmem:[#allocation2 + $0x2] sm:$0x2] %vm893, %v1149
        %s1152 = scalar_lea.vmem %s200, 122
        %v1153 = vld [vmem:[%s1152] sm:$0x3]
        %v1154 = vpack.c.bf16 %v1153, %v1153
        %v1157 = vunpack.c.l.s4 1983009808
        %v1158 = vunpack.c.0.s8 %v1157
        %v1159 = vlaneseq
        %v1160 = vshrl.u32 %v1159, 7
        %v1161 = vsub.s32 %v1158, %v1160
        %v1162 = vrot.slane %v1154, %v1161
        %v1163 = vrot.slane %v1162, 7
        %1164 = vrot.lane.b32.xlu0 %v1163, 104
        %v1165 = vpop.permute.xlu0 %1164
        %1167 = vst.msk [vmem:[#allocation2 + $0x2] sm:$0x2] %vm910, %v1165
        %s1168 = scalar_lea.vmem %s200, 124
        %v1169 = vld [vmem:[%s1168] sm:$0x3]
        %v1170 = vpack.c.bf16 %v1169, %v1169
        %v1173 = vunpack.c.l.s4 1983009808
        %v1174 = vunpack.c.0.s8 %v1173
        %v1175 = vlaneseq
        %v1176 = vshrl.u32 %v1175, 7
        %v1177 = vsub.s32 %v1174, %v1176
        %v1178 = vrot.slane %v1170, %v1177
        %v1179 = vrot.slane %v1178, 7
        %1180 = vrot.lane.b32.xlu0 %v1179, 112
        %v1181 = vpop.permute.xlu0 %1180
        %1183 = vst.msk [vmem:[#allocation2 + $0x2] sm:$0x2] %vm927, %v1181
        %s1184 = scalar_lea.vmem %s200, 126
        %v1185 = vld [vmem:[%s1184] sm:$0x3]
        %v1186 = vpack.c.bf16 %v1185, %v1185
        %v1189 = vunpack.c.l.s4 1983009808
        %v1190 = vunpack.c.0.s8 %v1189
        %v1191 = vlaneseq
        %v1192 = vshrl.u32 %v1191, 7
        %v1193 = vsub.s32 %v1190, %v1192
        %v1194 = vrot.slane %v1186, %v1193
        %v1195 = vrot.slane %v1194, 7
        %1196 = vrot.lane.b32.xlu0 %v1195, 120
        %v1197 = vpop.permute.xlu0 %1196
        %1199 = vst.msk [vmem:[#allocation2 + $0x2] sm:$0x2] %vm944, %v1197
        %v1200 = vld [vmem:[#allocation2] sm:$0xf]
        %v1201 = vld [vmem:[%s1] sm:$0xf]
        %v1202 = vld [vmem:[%s1 + $0x4] sm:$0xf]
        %v1203 = vld [vmem:[%s1 + $0x8] sm:$0xf]
        %v1204 = vld [vmem:[%s1 + $0xc] sm:$0xf]
        %v1205 = vld [vmem:[%s1 + $0x10] sm:$0xf]
        %v1206 = vld [vmem:[%s1 + $0x14] sm:$0xf]
        %v1207 = vld [vmem:[%s1 + $0x18] sm:$0xf]
        %v1208 = vld [vmem:[%s1 + $0x1c] sm:$0xf]
        %v1209 = vld [vmem:[%s1 + $0x20] sm:$0xf]
        %v1210 = vld [vmem:[%s1 + $0x24] sm:$0xf]
        %v1211 = vld [vmem:[%s1 + $0x28] sm:$0xf]
        %v1212 = vld [vmem:[%s1 + $0x2c] sm:$0xf]
        %v1213 = vld [vmem:[%s1 + $0x30] sm:$0xf]
        %v1214 = vld [vmem:[%s1 + $0x34] sm:$0xf]
        %v1215 = vld [vmem:[%s1 + $0x38] sm:$0xf]
        %v1216 = vld [vmem:[%s1 + $0x3c] sm:$0xf]
        %v1217 = vld [vmem:[%s1 + $0x40] sm:$0xf]
        %v1218 = vld [vmem:[%s1 + $0x44] sm:$0xf]
        %v1219 = vld [vmem:[%s1 + $0x48] sm:$0xf]
        %v1220 = vld [vmem:[%s1 + $0x4c] sm:$0xf]
        %v1221 = vld [vmem:[%s1 + $0x50] sm:$0xf]
        %v1222 = vld [vmem:[%s1 + $0x54] sm:$0xf]
        %v1223 = vld [vmem:[%s1 + $0x58] sm:$0xf]
        %v1224 = vld [vmem:[%s1 + $0x5c] sm:$0xf]
        %v1225 = vld [vmem:[%s1 + $0x60] sm:$0xf]
        %v1226 = vld [vmem:[%s1 + $0x64] sm:$0xf]
        %v1227 = vld [vmem:[%s1 + $0x68] sm:$0xf]
        %v1228 = vld [vmem:[%s1 + $0x6c] sm:$0xf]
        %v1229 = vld [vmem:[%s1 + $0x70] sm:$0xf]
        %v1230 = vld [vmem:[%s1 + $0x74] sm:$0xf]
        %v1231 = vld [vmem:[%s1 + $0x78] sm:$0xf]
        %v1232 = vld [vmem:[%s1 + $0x7c] sm:$0xf]
        %v1233 = vld [vmem:[%s2] sm:$0x1]
        %v1235 = vlaneseq
        %v1236 = vshrl.u32 %v1235, 7
        %v1237 = vsub.s32 0, %v1236
        %v1238 = vrot.slane %v1233, %v1237
        %v1242 = vunpack.c.l.s4 1983009808
        %v1243 = vunpack.c.0.s8 %v1242
        %v1244 = vlaneseq
        %v1245 = vshrl.u32 %v1244, 7
        %v1246 = vsub.s32 %v1243, %v1245
        %v1247 = vrot.slane %v1200, %v1246
        %v1248 = vcombine.high %v1247, %v1247
        %v1283 = vunpack.c.l.b16 %v1201
        %v1284 = vunpack.c.l.b16 %v1202
        %v1285 = vunpack.c.l.b16 %v1203
        %v1286 = vunpack.c.l.b16 %v1204
        %v1287 = vunpack.c.l.b16 %v1205
        %v1288 = vunpack.c.l.b16 %v1206
        %v1289 = vunpack.c.l.b16 %v1207
        %v1290 = vunpack.c.l.b16 %v1208
        %v1291 = vunpack.c.l.b16 %v1209
        %v1292 = vunpack.c.l.b16 %v1210
        %v1293 = vunpack.c.l.b16 %v1211
        %v1294 = vunpack.c.l.b16 %v1212
        %v1295 = vunpack.c.l.b16 %v1213
        %v1296 = vunpack.c.l.b16 %v1214
        %v1297 = vunpack.c.l.b16 %v1215
        %v1298 = vunpack.c.l.b16 %v1216
        %v1299 = vunpack.c.l.b16 %v1217
        %v1300 = vunpack.c.l.b16 %v1218
        %v1301 = vunpack.c.l.b16 %v1219
        %v1302 = vunpack.c.l.b16 %v1220
        %v1303 = vunpack.c.l.b16 %v1221
        %v1304 = vunpack.c.l.b16 %v1222
        %v1305 = vunpack.c.l.b16 %v1223
        %v1306 = vunpack.c.l.b16 %v1224
        %v1307 = vunpack.c.l.b16 %v1225
        %v1308 = vunpack.c.l.b16 %v1226
        %v1309 = vunpack.c.l.b16 %v1227
        %v1310 = vunpack.c.l.b16 %v1228
        %v1311 = vunpack.c.l.b16 %v1229
        %v1312 = vunpack.c.l.b16 %v1230
        %v1313 = vunpack.c.l.b16 %v1231
        %v1314 = vunpack.c.l.b16 %v1232
        %v1315 = vpack.c.b16 %v1284, %v1283
        %v1316 = vpack.c.b16 %v1286, %v1285
        %v1317 = vpack.c.b16 %v1288, %v1287
        %v1318 = vpack.c.b16 %v1290, %v1289
        %v1319 = vpack.c.b16 %v1292, %v1291
        %v1320 = vpack.c.b16 %v1294, %v1293
        %v1321 = vpack.c.b16 %v1296, %v1295
        %v1322 = vpack.c.b16 %v1298, %v1297
        %v1323 = vpack.c.b16 %v1300, %v1299
        %v1324 = vpack.c.b16 %v1302, %v1301
        %v1325 = vpack.c.b16 %v1304, %v1303
        %v1326 = vpack.c.b16 %v1306, %v1305
        %v1327 = vpack.c.b16 %v1308, %v1307
        %v1328 = vpack.c.b16 %v1310, %v1309
        %v1329 = vpack.c.b16 %v1312, %v1311
        %v1330 = vpack.c.b16 %v1314, %v1313
        %1347 = vmatprep.subr.bf16.mxu0 0
        %1348 = vmatpush1.bf16.msra.mxu0 %v1315
        %1349 = vmatprep.subr.bf16.mxu0 0
        %1350 = vmatpush1.bf16.msra.mxu0 %v1316
        %1351 = vmatprep.subr.bf16.mxu0 0
        %1352 = vmatpush1.bf16.msra.mxu0 %v1317
        %1353 = vmatprep.subr.bf16.mxu0 0
        %1354 = vmatpush1.bf16.msra.mxu0 %v1318
        %1355 = vmatprep.subr.bf16.mxu0 0
        %1356 = vmatpush1.bf16.msra.mxu0 %v1319
        %1357 = vmatprep.subr.bf16.mxu0 0
        %1358 = vmatpush1.bf16.msra.mxu0 %v1320
        %1359 = vmatprep.subr.bf16.mxu0 0
        %1360 = vmatpush1.bf16.msra.mxu0 %v1321
        %1361 = vmatprep.subr.bf16.mxu0 0
        %1362 = vmatpush1.bf16.msra.mxu0 %v1322
        %1363 = vmatprep.subr.bf16.mxu0 0
        %1364 = vmatpush1.bf16.msra.mxu0 %v1323
        %1365 = vmatprep.subr.bf16.mxu0 0
        %1366 = vmatpush1.bf16.msra.mxu0 %v1324
        %1367 = vmatprep.subr.bf16.mxu0 0
        %1368 = vmatpush1.bf16.msra.mxu0 %v1325
        %1369 = vmatprep.subr.bf16.mxu0 0
        %1370 = vmatpush1.bf16.msra.mxu0 %v1326
        %1371 = vmatprep.subr.bf16.mxu0 0
        %1372 = vmatpush1.bf16.msra.mxu0 %v1327
        %1373 = vmatprep.subr.bf16.mxu0 0
        %1374 = vmatpush1.bf16.msra.mxu0 %v1328
        %1375 = vmatprep.subr.bf16.mxu0 0
        %1376 = vmatpush1.bf16.msra.mxu0 %v1329
        %1377 = vmatprep.subr.bf16.mxu0 0
        %1378 = vmatpush1.bf16.msra.mxu0 %v1330
        %1379 = vmatprep.mubr.bf16.mxu0 %v1248
        %1380 = vmatmul.mubr.bf16.gmra.mrb[0].mxu0 %v1247
        %v1381 = vpop.f32.mrb[0].mxu0
        %v1382 = vadd.f32 %v1238, %v1381
        %v1383 = vpop.f32.mrb[0].mxu0
        %v1384 = vpop.f32.mrb[0].mxu0
        %v1385 = vpop.f32.mrb[0].mxu0
        %1386 = vdwg.mxu0
        %v1387 = vmax.f32 %v1382, 0.0
        %v1388 = vpack.c.bf16 %v1387, %v1387
        %1389 = vst [vmem:[%s190] sm:$0x3] %v1388
        %s1390 = sand.u32 %s109, 1
        %s1391 = scalar_lea.sflag [#allocation4], %s1390
        %s1392 = sand.u32 %s109, 1
        %s1393 = smul.addr %s1392, 2
        %s1394 = scalar_lea.vmem [#allocation3], %s1393
        // Predicated region
        $region33: #{backbone_base_forward.1} parent=31 // pred_check
          %p1395 = pneg %p119
        $region34: #{backbone_base_forward.1} parent=31 // pred_check_branch
          %1397 = sbr.rel (%p1395) target = $region36
        $region35: #{backbone_base_forward.1} parent=31 // pred_region
          %s1399 = ssub.s32 32, 32
          %1400 = vsyncadd %s1391, %s1399
          %s1401 = sadd.s32 %s22, %s21
          %s1402 = smul.addr %s1401, 32
          %s1403 = scalar_lea.hbm %s3, %s1402
          %s1405 = sshll.u32 %s1394, 4
          %s1406 = int_to_ptr.vmem [resolvable:$true] %s1405
          %1408 = dma.vmem_to_hbm [thread:$0]  %s1406, 32, %s1403, %s1391
        $region36: #{backbone_base_forward.1} parent=31 // pred_fallthru
          _
      $region32: #{backbone_base_forward.1} parent=5 // pred_fallthru
        _
      %p1409 = scmp.le.s32.totalorder 2, %s12
      // Predicated region
      $region37: #{backbone_base_forward.1} parent=5 // pred_check
        %p1410 = pneg %p1409
      $region38: #{backbone_base_forward.1} parent=5 // pred_check_branch
        %1412 = sbr.rel (%p1410) target = $region40
      $region39: #{backbone_base_forward.1} parent=5 // pred_region
        %s1413 = ssub.s32 %s12, 2
        // Predicated region
        $region41: #{backbone_base_forward.1} parent=39 // pred_check
          %p1414 = pneg %p125
        $region42: #{backbone_base_forward.1} parent=39 // pred_check_branch
          %1416 = sbr.rel (%p1414) target = $region44
        $region43: #{backbone_base_forward.1} parent=39 // pred_region
          %s1417 = sand.u32 %s110, 1
          %s1418 = scalar_lea.sflag [#allocation4], %s1417
          %s1419 = sand.u32 %s110, 1
          %s1420 = smul.addr %s1419, 2
          %s1421 = scalar_lea.vmem [#allocation3], %s1420
          %1422 = dma.done %s1418, 32
        $region44: #{backbone_base_forward.1} parent=39 // pred_fallthru
          _
      $region40: #{backbone_base_forward.1} parent=5 // pred_fallthru
        _
    $region6: #{backbone_base_forward.1} parent=1 // loop_footer
      %s16 = sadd.s32 1, %s12
    $region7: #{backbone_base_forward.1} parent=1 // loop_footer_branch
      %11 = sbr.rel target = $region3
    $region8: #{backbone_base_forward.1} parent=1 // loop_exit
      _
    %1423 = vsyncpa [#allocation4], 1
    %s1424 = scalar_lea.sflag [#allocation4], 1
    %1425 = vsyncpa %s1424, 1

// kernel: backbone_base_forward.1
$region0: #{backbone_base_forward.1}
  #allocation0 [shape = 'u32[]', space=smem, size = 0x4, offset = 0x4, fixed_abs, tag = 'smem constant byte address 0x4 - core index']
  #allocation1 [shape = 'u32[144,128]{1,0:T(1,128)}', space=vmem, size = 0x12000, scoped, tag = 'internal scratch']
  #allocation2 [shape = 'bf16[4,256]{1,0:T(4,128)(2,1)}', space=vmem, size = 0x800, scoped, tag = 'scratch operand']
  %s0 = inlined_call_operand.vmem [shape: f32[2,4,2,8,2,8], index: 0, kind: input, shape index: {}]
  %s1 = inlined_call_operand.vmem [shape: bf16[256,128], index: 1, kind: input, shape index: {}]
  %s2 = inlined_call_operand.vmem [shape: f32[1,128], index: 2, kind: input, shape index: {}]
  %s3 = inlined_call_operand.hbm [shape: bf16[2,4,128], index: 3, kind: output, shape index: {}]
  %s4 = sld [smem:[#allocation0]]
  $region45: #{backbone_base_forward.1} parent=0
    _
  %s6 = ssub.s32 1, %s4
  %s7 = scalar_select 0, %s6, %s4
  $region1: #{backbone_base_forward.1} parent=0
    #allocation3 [shape = 'u8[2048]{0}', space=vmem, size = 0x800, scoped, tag = 'output window, operand 0']
    #allocation4 [shape = 's32[2]{0}', space=sflag, size = 0x8, scoped, tag = 'scoped memory for backbone_base_forward.1']
    %8 = vsyncpa [#allocation4], 0
    %s9 = scalar_lea.sflag [#allocation4], 1
    %10 = vsyncpa %s9, 0
    loop: start=0, step=1, limit=4
    $region2: #{backbone_base_forward.1} parent=1 // loop_pre_header
      _
    $region3: #{backbone_base_forward.1} parent=1 // loop_header
      %s12 = sphi 0, %s16
      %p13 = scmp.ge.s32.totalorder %s12, 4
      %s19 = sphi 0, %s31
      %s20 = sphi 0, %s27
      %s21 = sphi 0, %s19
      %s22 = sphi 0, %s20
      %s23 = sphi 0, %s21
      %s24 = sphi 0, %s22
      %s36 = sphi 0, %s38
      %s39 = sphi 0, %s36
      %s40 = sphi 0, %s39
      %s56 = sphi 0, %s40
      %s60 = sphi 0, %s60
      %s62 = sphi 0, %s60
      %s63 = sphi 0, %s62
      %s77 = sphi 0, %s63
      %s81 = sphi 0, %s81
      %s83 = sphi 0, %s81
      %s84 = sphi 0, %s83
      %s98 = sphi 0, %s84
      %s106 = sphi 0, %s108
      %s109 = sphi 0, %s106
      %s110 = sphi 0, %s109
      %s126 = sphi 0, %s110
    $region4: #{backbone_base_forward.1} parent=1 // loop_header_branch
      %15 = sbr.rel (%p13) target = $region8
    $region5: #{backbone_base_forward.1} parent=1 // loop_body
      %s17 = ssub.s32 %s12, 1
      %s18 = ssub.s32 %s12, 2
      %s25 = sadd.s32 1, %s20
      %p26 = scmp.ge.s32.totalorder %s25, 1
      %s27 = scalar_select %p26, 0, %s25
      %s28 = sadd.s32 1, %s19
      %s29 = scalar_select %p26, %s28, %s19
      %p30 = scmp.ge.s32.totalorder %s29, 2
      %s31 = scalar_select %p30, 0, %s29
      %s32 = ssub.s32 %s19, %s31
      %s33 = ssub.s32 %s20, %s27
      %s34 = sor.u32 %s32, %s33
      %p35 = scmp.eq.s32.totalorder %s34, 0
      %s37 = sadd.s32 %s36, 1
      %s38 = scalar_select %p35, %s36, %s37
      %p41 = pneg %p35
      %p42 = scmp.eq.s32.totalorder %s12, 1
      %p43 = por %p41, %p42
      %p44 = scmp.ne.s32.totalorder %s36, %s39
      %p45 = scmp.eq.s32.totalorder %s12, 0
      %p46 = por %p44, %p45
      %p47 = scmp.ne.s32.totalorder %s36, %s39
      %p48 = scmp.eq.s32.totalorder %s17, 1
      %p49 = por %p47, %p48
      %p50 = scmp.ne.s32.totalorder %s39, %s40
      %p51 = scmp.eq.s32.totalorder %s17, 0
      %p52 = por %p50, %p51
      %p53 = scmp.ne.s32.totalorder %s39, %s40
      %p54 = scmp.eq.s32.totalorder %s18, 1
      %p55 = por %p53, %p54
      %p57 = scmp.ne.s32.totalorder %s40, %s56
      %p58 = scmp.eq.s32.totalorder %s18, 0
      %p59 = por %p57, %p58
      %s61 = sadd.s32 %s60, 1
      %p64 = scmp.eq.s32.totalorder %s12, 1
      %p65 = scmp.ne.s32.totalorder %s60, %s62
      %p66 = scmp.eq.s32.totalorder %s12, 0
      %p67 = por %p65, %p66
      %p68 = scmp.ne.s32.totalorder %s60, %s62
      %p69 = scmp.eq.s32.totalorder %s17, 1
      %p70 = por %p68, %p69
      %p71 = scmp.ne.s32.totalorder %s62, %s63
      %p72 = scmp.eq.s32.totalorder %s17, 0
      %p73 = por %p71, %p72
      %p74 = scmp.ne.s32.totalorder %s62, %s63
      %p75 = scmp.eq.s32.totalorder %s18, 1
      %p76 = por %p74, %p75
      %p78 = scmp.ne.s32.totalorder %s63, %s77
      %p79 = scmp.eq.s32.totalorder %s18, 0
      %p80 = por %p78, %p79
      %s82 = sadd.s32 %s81, 1
      %p85 = scmp.eq.s32.totalorder %s12, 1
      %p86 = scmp.ne.s32.totalorder %s81, %s83
      %p87 = scmp.eq.s32.totalorder %s12, 0
      %p88 = por %p86, %p87
      %p89 = scmp.ne.s32.totalorder %s81, %s83
      %p90 = scmp.eq.s32.totalorder %s17, 1
      %p91 = por %p89, %p90
      %p92 = scmp.ne.s32.totalorder %s83, %s84
      %p93 = scmp.eq.s32.totalorder %s17, 0
      %p94 = por %p92, %p93
      %p95 = scmp.ne.s32.totalorder %s83, %s84
      %p96 = scmp.eq.s32.totalorder %s18, 1
      %p97 = por %p95, %p96
      %p99 = scmp.ne.s32.totalorder %s84, %s98
      %p100 = scmp.eq.s32.totalorder %s18, 0
      %p101 = por %p99, %p100
      %s102 = ssub.s32 %s19, %s31
      %s103 = ssub.s32 %s20, %s27
      %s104 = sor.u32 %s102, %s103
      %p105 = scmp.eq.s32.totalorder %s104, 0
      %s107 = sadd.s32 %s106, 1
      %s108 = scalar_select %p105, %s106, %s107
      %p111 = pneg %p105
      %p112 = scmp.eq.s32.totalorder %s12, 1
      %p113 = por %p111, %p112
      %p114 = scmp.ne.s32.totalorder %s106, %s109
      %p115 = scmp.eq.s32.totalorder %s12, 0
      %p116 = por %p114, %p115
      %p117 = scmp.ne.s32.totalorder %s106, %s109
      %p118 = scmp.eq.s32.totalorder %s17, 1
      %p119 = por %p117, %p118
      %p120 = scmp.ne.s32.totalorder %s109, %s110
      %p121 = scmp.eq.s32.totalorder %s17, 0
      %p122 = por %p120, %p121
      %p123 = scmp.ne.s32.totalorder %s109, %s110
      %p124 = scmp.eq.s32.totalorder %s18, 1
      %p125 = por %p123, %p124
      %p127 = scmp.ne.s32.totalorder %s110, %s126
      %p128 = scmp.eq.s32.totalorder %s18, 0
      %p129 = por %p127, %p128
      %p130 = scmp.le.s32.totalorder 1, %s12
      %p131 = scmp.lt.s32.totalorder %s12, 3
      %p132 = pnand %p130, %p131
      %p133 = pneg %p132
      // Predicated region
      $region9: #{backbone_base_forward.1} parent=5 // pred_check
        _
      $region10: #{backbone_base_forward.1} parent=5 // pred_check_branch
        %135 = sbr.rel (%p132) target = $region12
      $region11: #{backbone_base_forward.1} parent=5 // pred_region
        %s136 = ssub.s32 %s12, 1
        // Predicated region
        $region13: #{backbone_base_forward.1} parent=11 // pred_check
          %p137 = pneg %p73
        $region14: #{backbone_base_forward.1} parent=11 // pred_check_branch
          %139 = sbr.rel (%p137) target = $region16
        $region15: #{backbone_base_forward.1} parent=11 // pred_region
          _
        $region16: #{backbone_base_forward.1} parent=11 // pred_fallthru
          _
        // Predicated region
        $region17: #{backbone_base_forward.1} parent=11 // pred_check
          %p140 = pneg %p94
        $region18: #{backbone_base_forward.1} parent=11 // pred_check_branch
          %142 = sbr.rel (%p140) target = $region20
        $region19: #{backbone_base_forward.1} parent=11 // pred_region
          _
        $region20: #{backbone_base_forward.1} parent=11 // pred_fallthru
          _
      $region12: #{backbone_base_forward.1} parent=5 // pred_fallthru
        _
      %p143 = scmp.lt.s32.totalorder %s12, 2
      // Predicated region
      $region21: #{backbone_base_forward.1} parent=5 // pred_check
        %p144 = pneg %p143
      $region22: #{backbone_base_forward.1} parent=5 // pred_check_branch
        %146 = sbr.rel (%p144) target = $region24
      $region23: #{backbone_base_forward.1} parent=5 // pred_region
        // Predicated region
        $region25: #{backbone_base_forward.1} parent=23 // pred_check
          %p147 = pneg %p46
        $region26: #{backbone_base_forward.1} parent=23 // pred_check_branch
          %149 = sbr.rel (%p147) target = $region28
        $region27: #{backbone_base_forward.1} parent=23 // pred_region
          %s150 = smul.u32 2, %s20
          %p151 = scmp.lt.s32.totalorder %s19, 1
          %s152 = scalar_select %p151, %s19, 1
          %p153 = scmp.lt.s32.totalorder %s150, 1
          %s154 = scalar_select %p153, %s150, 1
          %s155 = smul.addr %s154, 8
          %s156 = smul.addr %s152, 64
          %s157 = sadd.s32 %s155, %s156
          %s158 = smul.addr %s157, 2
          %s159 = scalar_lea.vmem %s0, %s158
          %s160 = smul.u32 2, %s20
        $region28: #{backbone_base_forward.1} parent=23 // pred_fallthru
          _
      $region24: #{backbone_base_forward.1} parent=5 // pred_fallthru
        _
      %p161 = scmp.le.s32.totalorder 1, %s12
      %p162 = scmp.lt.s32.totalorder %s12, 3
      %p163 = pnand %p161, %p162
      %p164 = pneg %p163
      // Predicated region
      $region29: #{backbone_base_forward.1} parent=5 // pred_check
        _
      $region30: #{backbone_base_forward.1} parent=5 // pred_check_branch
        %166 = sbr.rel (%p163) target = $region32
      $region31: #{backbone_base_forward.1} parent=5 // pred_region
        %s167 = ssub.s32 %s12, 1
        %s168 = smul.u32 2, %s22
        %p169 = scmp.lt.s32.totalorder %s21, 1
        %s170 = scalar_select %p169, %s21, 1
        %p171 = scmp.lt.s32.totalorder %s168, 1
        %s172 = scalar_select %p171, %s168, 1
        %s173 = smul.addr %s172, 8
        %s174 = smul.addr %s170, 64
        %s175 = sadd.s32 %s173, %s174
        %s176 = smul.addr %s175, 2
        %s177 = scalar_lea.vmem %s0, %s176
        %p178 = pneg %p52
        %p179 = pneg %p49
        %p180 = pneg %p73
        %p181 = pneg %p70
        %p182 = pneg %p94
        %p183 = pneg %p91
        %p184 = pneg %p122
        %p185 = pneg %p119
        %s186 = sand.u32 %s109, 1
        %s187 = scalar_lea.sflag [#allocation4], %s186
        %s188 = sand.u32 %s109, 1
        %s189 = smul.addr %s188, 2
        %s190 = scalar_lea.vmem [#allocation3], %s189
        %s191 = smul.u32 2, %s22
        %p192 = scmp.lt.s32.totalorder %s21, 1
        %s193 = scalar_select %p192, %s21, 1
        %p194 = scmp.lt.s32.totalorder %s191, 1
        %s195 = scalar_select %p194, %s191, 1
        %s196 = smul.addr %s195, 8
        %s197 = smul.addr %s193, 64
        %s198 = sadd.s32 %s196, %s197
        %s199 = smul.addr %s198, 2
        %s200 = scalar_lea.vmem %s0, %s199
        %s201 = smul.u32 2, %s22
        %v203 = vld [vmem:[%s200] sm:$0x3]
        %v204 = vpack.c.bf16 %v203, %v203
        %vm205 = vcmask 57344
        %206 = vst.msk [vmem:[#allocation2] sm:$0x1] %vm205, %v204
        %s207 = scalar_lea.vmem %s200, 2
        %v208 = vld [vmem:[%s207] sm:$0x3]
        %v209 = vpack.c.bf16 %v208, %v208
        %v212 = vunpack.c.l.s4 1983009808
        %v213 = vunpack.c.0.s8 %v212
        %v214 = vlaneseq
        %v215 = vshrl.u32 %v214, 7
        %v216 = vsub.s32 %v213, %v215
        %v217 = vrot.slane %v209, %v216
        %218 = vrot.lane.b32.xlu0 %v217, 8
        %v219 = vpop.permute.xlu0 %218
        %vm221 = vcmask 122944
        %222 = vst.msk [vmem:[#allocation2] sm:$0x1] %vm221, %v219
        %s223 = scalar_lea.vmem %s200, 4
        %v224 = vld [vmem:[%s223] sm:$0x3]
        %v225 = vpack.c.bf16 %v224, %v224
        %v228 = vunpack.c.l.s4 1983009808
        %v229 = vunpack.c.0.s8 %v228
        %v230 = vlaneseq
        %v231 = vshrl.u32 %v230, 7
        %v232 = vsub.s32 %v229, %v231
        %v233 = vrot.slane %v225, %v232
        %234 = vrot.lane.b32.xlu0 %v233, 16
        %v235 = vpop.permute.xlu0 %234
        %vm237 = vcmask 188544
        %238 = vst.msk [vmem:[#allocation2] sm:$0x1] %vm237, %v235
        %s239 = scalar_lea.vmem %s200, 6
        %v240 = vld [vmem:[%s239] sm:$0x3]
        %v241 = vpack.c.bf16 %v240, %v240
        %v244 = vunpack.c.l.s4 1983009808
        %v245 = vunpack.c.0.s8 %v244
        %v246 = vlaneseq
        %v247 = vshrl.u32 %v246, 7
        %v248 = vsub.s32 %v245, %v247
        %v249 = vrot.slane %v241, %v248
        %250 = vrot.lane.b32.xlu0 %v249, 24
        %v251 = vpop.permute.xlu0 %250
        %vm253 = vcmask 254144
        %254 = vst.msk [vmem:[#allocation2] sm:$0x1] %vm253, %v251
        %s255 = scalar_lea.vmem %s200, 8
        %v256 = vld [vmem:[%s255] sm:$0x3]
        %v257 = vpack.c.bf16 %v256, %v256
        %v260 = vunpack.c.l.s4 1983009808
        %v261 = vunpack.c.0.s8 %v260
        %v262 = vlaneseq
        %v263 = vshrl.u32 %v262, 7
        %v264 = vsub.s32 %v261, %v263
        %v265 = vrot.slane %v257, %v264
        %266 = vrot.lane.b32.xlu0 %v265, 32
        %v267 = vpop.permute.xlu0 %266
        %vm269 = vcmask 319744
        %270 = vst.msk [vmem:[#allocation2] sm:$0x1] %vm269, %v267
        %s271 = scalar_lea.vmem %s200, 10
        %v272 = vld [vmem:[%s271] sm:$0x3]
        %v273 = vpack.c.bf16 %v272, %v272
        %v276 = vunpack.c.l.s4 1983009808
        %v277 = vunpack.c.0.s8 %v276
        %v278 = vlaneseq
        %v279 = vshrl.u32 %v278, 7
        %v280 = vsub.s32 %v277, %v279
        %v281 = vrot.slane %v273, %v280
        %282 = vrot.lane.b32.xlu0 %v281, 40
        %v283 = vpop.permute.xlu0 %282
        %vm285 = vcmask 385344
        %286 = vst.msk [vmem:[#allocation2] sm:$0x1] %vm285, %v283
        %s287 = scalar_lea.vmem %s200, 12
        %v288 = vld [vmem:[%s287] sm:$0x3]
        %v289 = vpack.c.bf16 %v288, %v288
        %v292 = vunpack.c.l.s4 1983009808
        %v293 = vunpack.c.0.s8 %v292
        %v294 = vlaneseq
        %v295 = vshrl.u32 %v294, 7
        %v296 = vsub.s32 %v293, %v295
        %v297 = vrot.slane %v289, %v296
        %298 = vrot.lane.b32.xlu0 %v297, 48
        %v299 = vpop.permute.xlu0 %298
        %vm301 = vcmask 450944
        %302 = vst.msk [vmem:[#allocation2] sm:$0x1] %vm301, %v299
        %s303 = scalar_lea.vmem %s200, 14
        %v304 = vld [vmem:[%s303] sm:$0x3]
        %v305 = vpack.c.bf16 %v304, %v304
        %v308 = vunpack.c.l.s4 1983009808
        %v309 = vunpack.c.0.s8 %v308
        %v310 = vlaneseq
        %v311 = vshrl.u32 %v310, 7
        %v312 = vsub.s32 %v309, %v311
        %v313 = vrot.slane %v305, %v312
        %314 = vrot.lane.b32.xlu0 %v313, 56
        %v315 = vpop.permute.xlu0 %314
        %vm317 = vcmask 516544
        %318 = vst.msk [vmem:[#allocation2] sm:$0x1] %vm317, %v315
        %s319 = scalar_lea.vmem %s200, 32
        %v320 = vld [vmem:[%s319] sm:$0x3]
        %v321 = vpack.c.bf16 %v320, %v320
        %v324 = vunpack.c.l.s4 1983009808
        %v325 = vunpack.c.0.s8 %v324
        %v326 = vlaneseq
        %v327 = vshrl.u32 %v326, 7
        %v328 = vsub.s32 %v325, %v327
        %v329 = vrot.slane %v321, %v328
        %330 = vrot.lane.b32.xlu0 %v329, 64
        %v331 = vpop.permute.xlu0 %330
        %vm333 = vcmask 582144
        %334 = vst.msk [vmem:[#allocation2] sm:$0x1] %vm333, %v331
        %s335 = scalar_lea.vmem %s200, 34
        %v336 = vld [vmem:[%s335] sm:$0x3]
        %v337 = vpack.c.bf16 %v336, %v336
        %v340 = vunpack.c.l.s4 1983009808
        %v341 = vunpack.c.0.s8 %v340
        %v342 = vlaneseq
        %v343 = vshrl.u32 %v342, 7
        %v344 = vsub.s32 %v341, %v343
        %v345 = vrot.slane %v337, %v344
        %346 = vrot.lane.b32.xlu0 %v345, 72
        %v347 = vpop.permute.xlu0 %346
        %vm349 = vcmask 647744
        %350 = vst.msk [vmem:[#allocation2] sm:$0x1] %vm349, %v347
        %s351 = scalar_lea.vmem %s200, 36
        %v352 = vld [vmem:[%s351] sm:$0x3]
        %v353 = vpack.c.bf16 %v352, %v352
        %v356 = vunpack.c.l.s4 1983009808
        %v357 = vunpack.c.0.s8 %v356
        %v358 = vlaneseq
        %v359 = vshrl.u32 %v358, 7
        %v360 = vsub.s32 %v357, %v359
        %v361 = vrot.slane %v353, %v360
        %362 = vrot.lane.b32.xlu0 %v361, 80
        %v363 = vpop.permute.xlu0 %362
        %vm365 = vcmask 713344
        %366 = vst.msk [vmem:[#allocation2] sm:$0x1] %vm365, %v363
        %s367 = scalar_lea.vmem %s200, 38
        %v368 = vld [vmem:[%s367] sm:$0x3]
        %v369 = vpack.c.bf16 %v368, %v368
        %v372 = vunpack.c.l.s4 1983009808
        %v373 = vunpack.c.0.s8 %v372
        %v374 = vlaneseq
        %v375 = vshrl.u32 %v374, 7
        %v376 = vsub.s32 %v373, %v375
        %v377 = vrot.slane %v369, %v376
        %378 = vrot.lane.b32.xlu0 %v377, 88
        %v379 = vpop.permute.xlu0 %378
        %vm381 = vcmask 778944
        %382 = vst.msk [vmem:[#allocation2] sm:$0x1] %vm381, %v379
        %s383 = scalar_lea.vmem %s200, 40
        %v384 = vld [vmem:[%s383] sm:$0x3]
        %v385 = vpack.c.bf16 %v384, %v384
        %v388 = vunpack.c.l.s4 1983009808
        %v389 = vunpack.c.0.s8 %v388
        %v390 = vlaneseq
        %v391 = vshrl.u32 %v390, 7
        %v392 = vsub.s32 %v389, %v391
        %v393 = vrot.slane %v385, %v392
        %394 = vrot.lane.b32.xlu0 %v393, 96
        %v395 = vpop.permute.xlu0 %394
        %vm397 = vcmask 844544
        %398 = vst.msk [vmem:[#allocation2] sm:$0x1] %vm397, %v395
        %s399 = scalar_lea.vmem %s200, 42
        %v400 = vld [vmem:[%s399] sm:$0x3]
        %v401 = vpack.c.bf16 %v400, %v400
        %v404 = vunpack.c.l.s4 1983009808
        %v405 = vunpack.c.0.s8 %v404
        %v406 = vlaneseq
        %v407 = vshrl.u32 %v406, 7
        %v408 = vsub.s32 %v405, %v407
        %v409 = vrot.slane %v401, %v408
        %410 = vrot.lane.b32.xlu0 %v409, 104
        %v411 = vpop.permute.xlu0 %410
        %vm413 = vcmask 910144
        %414 = vst.msk [vmem:[#allocation2] sm:$0x1] %vm413, %v411
        %s415 = scalar_lea.vmem %s200, 44
        %v416 = vld [vmem:[%s415] sm:$0x3]
        %v417 = vpack.c.bf16 %v416, %v416
        %v420 = vunpack.c.l.s4 1983009808
        %v421 = vunpack.c.0.s8 %v420
        %v422 = vlaneseq
        %v423 = vshrl.u32 %v422, 7
        %v424 = vsub.s32 %v421, %v423
        %v425 = vrot.slane %v417, %v424
        %426 = vrot.lane.b32.xlu0 %v425, 112
        %v427 = vpop.permute.xlu0 %426
        %vm429 = vcmask 975744
        %430 = vst.msk [vmem:[#allocation2] sm:$0x1] %vm429, %v427
        %s431 = scalar_lea.vmem %s200, 46
        %v432 = vld [vmem:[%s431] sm:$0x3]
        %v433 = vpack.c.bf16 %v432, %v432
        %v436 = vunpack.c.l.s4 1983009808
        %v437 = vunpack.c.0.s8 %v436
        %v438 = vlaneseq
        %v439 = vshrl.u32 %v438, 7
        %v440 = vsub.s32 %v437, %v439
        %v441 = vrot.slane %v433, %v440
        %442 = vrot.lane.b32.xlu0 %v441, 120
        %v443 = vpop.permute.xlu0 %442
        %vm445 = vcmask 1041344
        %446 = vst.msk [vmem:[#allocation2] sm:$0x1] %vm445, %v443
        %s447 = scalar_lea.vmem %s200, 64
        %v448 = vld [vmem:[%s447] sm:$0x3]
        %v449 = vpack.c.bf16 %v448, %v448
        %450 = vst.msk [vmem:[#allocation2 + $0x2] sm:$0x1] %vm205, %v449
        %s451 = scalar_lea.vmem %s200, 66
        %v452 = vld [vmem:[%s451] sm:$0x3]
        %v453 = vpack.c.bf16 %v452, %v452
        %v456 = vunpack.c.l.s4 1983009808
        %v457 = vunpack.c.0.s8 %v456
        %v458 = vlaneseq
        %v459 = vshrl.u32 %v458, 7
        %v460 = vsub.s32 %v457, %v459
        %v461 = vrot.slane %v453, %v460
        %462 = vrot.lane.b32.xlu0 %v461, 8
        %v463 = vpop.permute.xlu0 %462
        %465 = vst.msk [vmem:[#allocation2 + $0x2] sm:$0x1] %vm221, %v463
        %s466 = scalar_lea.vmem %s200, 68
        %v467 = vld [vmem:[%s466] sm:$0x3]
        %v468 = vpack.c.bf16 %v467, %v467
        %v471 = vunpack.c.l.s4 1983009808
        %v472 = vunpack.c.0.s8 %v471
        %v473 = vlaneseq
        %v474 = vshrl.u32 %v473, 7
        %v475 = vsub.s32 %v472, %v474
        %v476 = vrot.slane %v468, %v475
        %477 = vrot.lane.b32.xlu0 %v476, 16
        %v478 = vpop.permute.xlu0 %477
        %480 = vst.msk [vmem:[#allocation2 + $0x2] sm:$0x1] %vm237, %v478
        %s481 = scalar_lea.vmem %s200, 70
        %v482 = vld [vmem:[%s481] sm:$0x3]
        %v483 = vpack.c.bf16 %v482, %v482
        %v486 = vunpack.c.l.s4 1983009808
        %v487 = vunpack.c.0.s8 %v486
        %v488 = vlaneseq
        %v489 = vshrl.u32 %v488, 7
        %v490 = vsub.s32 %v487, %v489
        %v491 = vrot.slane %v483, %v490
        %492 = vrot.lane.b32.xlu0 %v491, 24
        %v493 = vpop.permute.xlu0 %492
        %495 = vst.msk [vmem:[#allocation2 + $0x2] sm:$0x1] %vm253, %v493
        %s496 = scalar_lea.vmem %s200, 72
        %v497 = vld [vmem:[%s496] sm:$0x3]
        %v498 = vpack.c.bf16 %v497, %v497
        %v501 = vunpack.c.l.s4 1983009808
        %v502 = vunpack.c.0.s8 %v501
        %v503 = vlaneseq
        %v504 = vshrl.u32 %v503, 7
        %v505 = vsub.s32 %v502, %v504
        %v506 = vrot.slane %v498, %v505
        %507 = vrot.lane.b32.xlu0 %v506, 32
        %v508 = vpop.permute.xlu0 %507
        %510 = vst.msk [vmem:[#allocation2 + $0x2] sm:$0x1] %vm269, %v508
        %s511 = scalar_lea.vmem %s200, 74
        %v512 = vld [vmem:[%s511] sm:$0x3]
        %v513 = vpack.c.bf16 %v512, %v512
        %v516 = vunpack.c.l.s4 1983009808
        %v517 = vunpack.c.0.s8 %v516
        %v518 = vlaneseq
        %v519 = vshrl.u32 %v518, 7
        %v520 = vsub.s32 %v517, %v519
        %v521 = vrot.slane %v513, %v520
        %522 = vrot.lane.b32.xlu0 %v521, 40
        %v523 = vpop.permute.xlu0 %522
        %525 = vst.msk [vmem:[#allocation2 + $0x2] sm:$0x1] %vm285, %v523
        %s526 = scalar_lea.vmem %s200, 76
        %v527 = vld [vmem:[%s526] sm:$0x3]
        %v528 = vpack.c.bf16 %v527, %v527
        %v531 = vunpack.c.l.s4 1983009808
        %v532 = vunpack.c.0.s8 %v531
        %v533 = vlaneseq
        %v534 = vshrl.u32 %v533, 7
        %v535 = vsub.s32 %v532, %v534
        %v536 = vrot.slane %v528, %v535
        %537 = vrot.lane.b32.xlu0 %v536, 48
        %v538 = vpop.permute.xlu0 %537
        %540 = vst.msk [vmem:[#allocation2 + $0x2] sm:$0x1] %vm301, %v538
        %s541 = scalar_lea.vmem %s200, 78
        %v542 = vld [vmem:[%s541] sm:$0x3]
        %v543 = vpack.c.bf16 %v542, %v542
        %v546 = vunpack.c.l.s4 1983009808
        %v547 = vunpack.c.0.s8 %v546
        %v548 = vlaneseq
        %v549 = vshrl.u32 %v548, 7
        %v550 = vsub.s32 %v547, %v549
        %v551 = vrot.slane %v543, %v550
        %552 = vrot.lane.b32.xlu0 %v551, 56
        %v553 = vpop.permute.xlu0 %552
        %555 = vst.msk [vmem:[#allocation2 + $0x2] sm:$0x1] %vm317, %v553
        %s556 = scalar_lea.vmem %s200, 96
        %v557 = vld [vmem:[%s556] sm:$0x3]
        %v558 = vpack.c.bf16 %v557, %v557
        %v561 = vunpack.c.l.s4 1983009808
        %v562 = vunpack.c.0.s8 %v561
        %v563 = vlaneseq
        %v564 = vshrl.u32 %v563, 7
        %v565 = vsub.s32 %v562, %v564
        %v566 = vrot.slane %v558, %v565
        %567 = vrot.lane.b32.xlu0 %v566, 64
        %v568 = vpop.permute.xlu0 %567
        %570 = vst.msk [vmem:[#allocation2 + $0x2] sm:$0x1] %vm333, %v568
        %s571 = scalar_lea.vmem %s200, 98
        %v572 = vld [vmem:[%s571] sm:$0x3]
        %v573 = vpack.c.bf16 %v572, %v572
        %v576 = vunpack.c.l.s4 1983009808
        %v577 = vunpack.c.0.s8 %v576
        %v578 = vlaneseq
        %v579 = vshrl.u32 %v578, 7
        %v580 = vsub.s32 %v577, %v579
        %v581 = vrot.slane %v573, %v580
        %582 = vrot.lane.b32.xlu0 %v581, 72
        %v583 = vpop.permute.xlu0 %582
        %585 = vst.msk [vmem:[#allocation2 + $0x2] sm:$0x1] %vm349, %v583
        %s586 = scalar_lea.vmem %s200, 100
        %v587 = vld [vmem:[%s586] sm:$0x3]
        %v588 = vpack.c.bf16 %v587, %v587
        %v591 = vunpack.c.l.s4 1983009808
        %v592 = vunpack.c.0.s8 %v591
        %v593 = vlaneseq
        %v594 = vshrl.u32 %v593, 7
        %v595 = vsub.s32 %v592, %v594
        %v596 = vrot.slane %v588, %v595
        %597 = vrot.lane.b32.xlu0 %v596, 80
        %v598 = vpop.permute.xlu0 %597
        %600 = vst.msk [vmem:[#allocation2 + $0x2] sm:$0x1] %vm365, %v598
        %s601 = scalar_lea.vmem %s200, 102
        %v602 = vld [vmem:[%s601] sm:$0x3]
        %v603 = vpack.c.bf16 %v602, %v602
        %v606 = vunpack.c.l.s4 1983009808
        %v607 = vunpack.c.0.s8 %v606
        %v608 = vlaneseq
        %v609 = vshrl.u32 %v608, 7
        %v610 = vsub.s32 %v607, %v609
        %v611 = vrot.slane %v603, %v610
        %612 = vrot.lane.b32.xlu0 %v611, 88
        %v613 = vpop.permute.xlu0 %612
        %615 = vst.msk [vmem:[#allocation2 + $0x2] sm:$0x1] %vm381, %v613
        %s616 = scalar_lea.vmem %s200, 104
        %v617 = vld [vmem:[%s616] sm:$0x3]
        %v618 = vpack.c.bf16 %v617, %v617
        %v621 = vunpack.c.l.s4 1983009808
        %v622 = vunpack.c.0.s8 %v621
        %v623 = vlaneseq
        %v624 = vshrl.u32 %v623, 7
        %v625 = vsub.s32 %v622, %v624
        %v626 = vrot.slane %v618, %v625
        %627 = vrot.lane.b32.xlu0 %v626, 96
        %v628 = vpop.permute.xlu0 %627
        %630 = vst.msk [vmem:[#allocation2 + $0x2] sm:$0x1] %vm397, %v628
        %s631 = scalar_lea.vmem %s200, 106
        %v632 = vld [vmem:[%s631] sm:$0x3]
        %v633 = vpack.c.bf16 %v632, %v632
        %v636 = vunpack.c.l.s4 1983009808
        %v637 = vunpack.c.0.s8 %v636
        %v638 = vlaneseq
        %v639 = vshrl.u32 %v638, 7
        %v640 = vsub.s32 %v637, %v639
        %v641 = vrot.slane %v633, %v640
        %642 = vrot.lane.b32.xlu0 %v641, 104
        %v643 = vpop.permute.xlu0 %642
        %645 = vst.msk [vmem:[#allocation2 + $0x2] sm:$0x1] %vm413, %v643
        %s646 = scalar_lea.vmem %s200, 108
        %v647 = vld [vmem:[%s646] sm:$0x3]
        %v648 = vpack.c.bf16 %v647, %v647
        %v651 = vunpack.c.l.s4 1983009808
        %v652 = vunpack.c.0.s8 %v651
        %v653 = vlaneseq
        %v654 = vshrl.u32 %v653, 7
        %v655 = vsub.s32 %v652, %v654
        %v656 = vrot.slane %v648, %v655
        %657 = vrot.lane.b32.xlu0 %v656, 112
        %v658 = vpop.permute.xlu0 %657
        %660 = vst.msk [vmem:[#allocation2 + $0x2] sm:$0x1] %vm429, %v658
        %s661 = scalar_lea.vmem %s200, 110
        %v662 = vld [vmem:[%s661] sm:$0x3]
        %v663 = vpack.c.bf16 %v662, %v662
        %v666 = vunpack.c.l.s4 1983009808
        %v667 = vunpack.c.0.s8 %v666
        %v668 = vlaneseq
        %v669 = vshrl.u32 %v668, 7
        %v670 = vsub.s32 %v667, %v669
        %v671 = vrot.slane %v663, %v670
        %672 = vrot.lane.b32.xlu0 %v671, 120
        %v673 = vpop.permute.xlu0 %672
        %675 = vst.msk [vmem:[#allocation2 + $0x2] sm:$0x1] %vm445, %v673
        %s676 = scalar_lea.vmem %s200, 16
        %v677 = vld [vmem:[%s676] sm:$0x3]
        %v678 = vpack.c.bf16 %v677, %v677
        %v681 = vunpack.c.l.s4 1983009808
        %v682 = vunpack.c.0.s8 %v681
        %v683 = vlaneseq
        %v684 = vshrl.u32 %v683, 7
        %v685 = vsub.s32 %v682, %v684
        %v686 = vrot.slane %v678, %v685
        %v687 = vrot.slane %v686, 7
        %vm689 = vcmask 58369
        %690 = vst.msk [vmem:[#allocation2] sm:$0x2] %vm689, %v687
        %s691 = scalar_lea.vmem %s200, 18
        %v692 = vld [vmem:[%s691] sm:$0x3]
        %v693 = vpack.c.bf16 %v692, %v692
        %v696 = vunpack.c.l.s4 1983009808
        %v697 = vunpack.c.0.s8 %v696
        %v698 = vlaneseq
        %v699 = vshrl.u32 %v698, 7
        %v700 = vsub.s32 %v697, %v699
        %v701 = vrot.slane %v693, %v700
        %v702 = vrot.slane %v701, 7
        %703 = vrot.lane.b32.xlu0 %v702, 8
        %v704 = vpop.permute.xlu0 %703
        %vm706 = vcmask 123969
        %707 = vst.msk [vmem:[#allocation2] sm:$0x2] %vm706, %v704
        %s708 = scalar_lea.vmem %s200, 20
        %v709 = vld [vmem:[%s708] sm:$0x3]
        %v710 = vpack.c.bf16 %v709, %v709
        %v713 = vunpack.c.l.s4 1983009808
        %v714 = vunpack.c.0.s8 %v713
        %v715 = vlaneseq
        %v716 = vshrl.u32 %v715, 7
        %v717 = vsub.s32 %v714, %v716
        %v718 = vrot.slane %v710, %v717
        %v719 = vrot.slane %v718, 7
        %720 = vrot.lane.b32.xlu0 %v719, 16
        %v721 = vpop.permute.xlu0 %720
        %vm723 = vcmask 189569
        %724 = vst.msk [vmem:[#allocation2] sm:$0x2] %vm723, %v721
        %s725 = scalar_lea.vmem %s200, 22
        %v726 = vld [vmem:[%s725] sm:$0x3]
        %v727 = vpack.c.bf16 %v726, %v726
        %v730 = vunpack.c.l.s4 1983009808
        %v731 = vunpack.c.0.s8 %v730
        %v732 = vlaneseq
        %v733 = vshrl.u32 %v732, 7
        %v734 = vsub.s32 %v731, %v733
        %v735 = vrot.slane %v727, %v734
        %v736 = vrot.slane %v735, 7
        %737 = vrot.lane.b32.xlu0 %v736, 24
        %v738 = vpop.permute.xlu0 %737
        %vm740 = vcmask 255169
        %741 = vst.msk [vmem:[#allocation2] sm:$0x2] %vm740, %v738
        %s742 = scalar_lea.vmem %s200, 24
        %v743 = vld [vmem:[%s742] sm:$0x3]
        %v744 = vpack.c.bf16 %v743, %v743
        %v747 = vunpack.c.l.s4 1983009808
        %v748 = vunpack.c.0.s8 %v747
        %v749 = vlaneseq
        %v750 = vshrl.u32 %v749, 7
        %v751 = vsub.s32 %v748, %v750
        %v752 = vrot.slane %v744, %v751
        %v753 = vrot.slane %v752, 7
        %754 = vrot.lane.b32.xlu0 %v753, 32
        %v755 = vpop.permute.xlu0 %754
        %vm757 = vcmask 320769
        %758 = vst.msk [vmem:[#allocation2] sm:$0x2] %vm757, %v755
        %s759 = scalar_lea.vmem %s200, 26
        %v760 = vld [vmem:[%s759] sm:$0x3]
        %v761 = vpack.c.bf16 %v760, %v760
        %v764 = vunpack.c.l.s4 1983009808
        %v765 = vunpack.c.0.s8 %v764
        %v766 = vlaneseq
        %v767 = vshrl.u32 %v766, 7
        %v768 = vsub.s32 %v765, %v767
        %v769 = vrot.slane %v761, %v768
        %v770 = vrot.slane %v769, 7
        %771 = vrot.lane.b32.xlu0 %v770, 40
        %v772 = vpop.permute.xlu0 %771
        %vm774 = vcmask 386369
        %775 = vst.msk [vmem:[#allocation2] sm:$0x2] %vm774, %v772
        %s776 = scalar_lea.vmem %s200, 28
        %v777 = vld [vmem:[%s776] sm:$0x3]
        %v778 = vpack.c.bf16 %v777, %v777
        %v781 = vunpack.c.l.s4 1983009808
        %v782 = vunpack.c.0.s8 %v781
        %v783 = vlaneseq
        %v784 = vshrl.u32 %v783, 7
        %v785 = vsub.s32 %v782, %v784
        %v786 = vrot.slane %v778, %v785
        %v787 = vrot.slane %v786, 7
        %788 = vrot.lane.b32.xlu0 %v787, 48
        %v789 = vpop.permute.xlu0 %788
        %vm791 = vcmask 451969
        %792 = vst.msk [vmem:[#allocation2] sm:$0x2] %vm791, %v789
        %s793 = scalar_lea.vmem %s200, 30
        %v794 = vld [vmem:[%s793] sm:$0x3]
        %v795 = vpack.c.bf16 %v794, %v794
        %v798 = vunpack.c.l.s4 1983009808
        %v799 = vunpack.c.0.s8 %v798
        %v800 = vlaneseq
        %v801 = vshrl.u32 %v800, 7
        %v802 = vsub.s32 %v799, %v801
        %v803 = vrot.slane %v795, %v802
        %v804 = vrot.slane %v803, 7
        %805 = vrot.lane.b32.xlu0 %v804, 56
        %v806 = vpop.permute.xlu0 %805
        %vm808 = vcmask 517569
        %809 = vst.msk [vmem:[#allocation2] sm:$0x2] %vm808, %v806
        %s810 = scalar_lea.vmem %s200, 48
        %v811 = vld [vmem:[%s810] sm:$0x3]
        %v812 = vpack.c.bf16 %v811, %v811
        %v815 = vunpack.c.l.s4 1983009808
        %v816 = vunpack.c.0.s8 %v815
        %v817 = vlaneseq
        %v818 = vshrl.u32 %v817, 7
        %v819 = vsub.s32 %v816, %v818
        %v820 = vrot.slane %v812, %v819
        %v821 = vrot.slane %v820, 7
        %822 = vrot.lane.b32.xlu0 %v821, 64
        %v823 = vpop.permute.xlu0 %822
        %vm825 = vcmask 583169
        %826 = vst.msk [vmem:[#allocation2] sm:$0x2] %vm825, %v823
        %s827 = scalar_lea.vmem %s200, 50
        %v828 = vld [vmem:[%s827] sm:$0x3]
        %v829 = vpack.c.bf16 %v828, %v828
        %v832 = vunpack.c.l.s4 1983009808
        %v833 = vunpack.c.0.s8 %v832
        %v834 = vlaneseq
        %v835 = vshrl.u32 %v834, 7
        %v836 = vsub.s32 %v833, %v835
        %v837 = vrot.slane %v829, %v836
        %v838 = vrot.slane %v837, 7
        %839 = vrot.lane.b32.xlu0 %v838, 72
        %v840 = vpop.permute.xlu0 %839
        %vm842 = vcmask 648769
        %843 = vst.msk [vmem:[#allocation2] sm:$0x2] %vm842, %v840
        %s844 = scalar_lea.vmem %s200, 52
        %v845 = vld [vmem:[%s844] sm:$0x3]
        %v846 = vpack.c.bf16 %v845, %v845
        %v849 = vunpack.c.l.s4 1983009808
        %v850 = vunpack.c.0.s8 %v849
        %v851 = vlaneseq
        %v852 = vshrl.u32 %v851, 7
        %v853 = vsub.s32 %v850, %v852
        %v854 = vrot.slane %v846, %v853
        %v855 = vrot.slane %v854, 7
        %856 = vrot.lane.b32.xlu0 %v855, 80
        %v857 = vpop.permute.xlu0 %856
        %vm859 = vcmask 714369
        %860 = vst.msk [vmem:[#allocation2] sm:$0x2] %vm859, %v857
        %s861 = scalar_lea.vmem %s200, 54
        %v862 = vld [vmem:[%s861] sm:$0x3]
        %v863 = vpack.c.bf16 %v862, %v862
        %v866 = vunpack.c.l.s4 1983009808
        %v867 = vunpack.c.0.s8 %v866
        %v868 = vlaneseq
        %v869 = vshrl.u32 %v868, 7
        %v870 = vsub.s32 %v867, %v869
        %v871 = vrot.slane %v863, %v870
        %v872 = vrot.slane %v871, 7
        %873 = vrot.lane.b32.xlu0 %v872, 88
        %v874 = vpop.permute.xlu0 %873
        %vm876 = vcmask 779969
        %877 = vst.msk [vmem:[#allocation2] sm:$0x2] %vm876, %v874
        %s878 = scalar_lea.vmem %s200, 56
        %v879 = vld [vmem:[%s878] sm:$0x3]
        %v880 = vpack.c.bf16 %v879, %v879
        %v883 = vunpack.c.l.s4 1983009808
        %v884 = vunpack.c.0.s8 %v883
        %v885 = vlaneseq
        %v886 = vshrl.u32 %v885, 7
        %v887 = vsub.s32 %v884, %v886
        %v888 = vrot.slane %v880, %v887
        %v889 = vrot.slane %v888, 7
        %890 = vrot.lane.b32.xlu0 %v889, 96
        %v891 = vpop.permute.xlu0 %890
        %vm893 = vcmask 845569
        %894 = vst.msk [vmem:[#allocation2] sm:$0x2] %vm893, %v891
        %s895 = scalar_lea.vmem %s200, 58
        %v896 = vld [vmem:[%s895] sm:$0x3]
        %v897 = vpack.c.bf16 %v896, %v896
        %v900 = vunpack.c.l.s4 1983009808
        %v901 = vunpack.c.0.s8 %v900
        %v902 = vlaneseq
        %v903 = vshrl.u32 %v902, 7
        %v904 = vsub.s32 %v901, %v903
        %v905 = vrot.slane %v897, %v904
        %v906 = vrot.slane %v905, 7
        %907 = vrot.lane.b32.xlu0 %v906, 104
        %v908 = vpop.permute.xlu0 %907
        %vm910 = vcmask 911169
        %911 = vst.msk [vmem:[#allocation2] sm:$0x2] %vm910, %v908
        %s912 = scalar_lea.vmem %s200, 60
        %v913 = vld [vmem:[%s912] sm:$0x3]
        %v914 = vpack.c.bf16 %v913, %v913
        %v917 = vunpack.c.l.s4 1983009808
        %v918 = vunpack.c.0.s8 %v917
        %v919 = vlaneseq
        %v920 = vshrl.u32 %v919, 7
        %v921 = vsub.s32 %v918, %v920
        %v922 = vrot.slane %v914, %v921
        %v923 = vrot.slane %v922, 7
        %924 = vrot.lane.b32.xlu0 %v923, 112
        %v925 = vpop.permute.xlu0 %924
        %vm927 = vcmask 976769
        %928 = vst.msk [vmem:[#allocation2] sm:$0x2] %vm927, %v925
        %s929 = scalar_lea.vmem %s200, 62
        %v930 = vld [vmem:[%s929] sm:$0x3]
        %v931 = vpack.c.bf16 %v930, %v930
        %v934 = vunpack.c.l.s4 1983009808
        %v935 = vunpack.c.0.s8 %v934
        %v936 = vlaneseq
        %v937 = vshrl.u32 %v936, 7
        %v938 = vsub.s32 %v935, %v937
        %v939 = vrot.slane %v931, %v938
        %v940 = vrot.slane %v939, 7
        %941 = vrot.lane.b32.xlu0 %v940, 120
        %v942 = vpop.permute.xlu0 %941
        %vm944 = vcmask 1042369
        %945 = vst.msk [vmem:[#allocation2] sm:$0x2] %vm944, %v942
        %s946 = scalar_lea.vmem %s200, 80
        %v947 = vld [vmem:[%s946] sm:$0x3]
        %v948 = vpack.c.bf16 %v947, %v947
        %v951 = vunpack.c.l.s4 1983009808
        %v952 = vunpack.c.0.s8 %v951
        %v953 = vlaneseq
        %v954 = vshrl.u32 %v953, 7
        %v955 = vsub.s32 %v952, %v954
        %v956 = vrot.slane %v948, %v955
        %v957 = vrot.slane %v956, 7
        %959 = vst.msk [vmem:[#allocation2 + $0x2] sm:$0x2] %vm689, %v957
        %s960 = scalar_lea.vmem %s200, 82
        %v961 = vld [vmem:[%s960] sm:$0x3]
        %v962 = vpack.c.bf16 %v961, %v961
        %v965 = vunpack.c.l.s4 1983009808
        %v966 = vunpack.c.0.s8 %v965
        %v967 = vlaneseq
        %v968 = vshrl.u32 %v967, 7
        %v969 = vsub.s32 %v966, %v968
        %v970 = vrot.slane %v962, %v969
        %v971 = vrot.slane %v970, 7
        %972 = vrot.lane.b32.xlu0 %v971, 8
        %v973 = vpop.permute.xlu0 %972
        %975 = vst.msk [vmem:[#allocation2 + $0x2] sm:$0x2] %vm706, %v973
        %s976 = scalar_lea.vmem %s200, 84
        %v977 = vld [vmem:[%s976] sm:$0x3]
        %v978 = vpack.c.bf16 %v977, %v977
        %v981 = vunpack.c.l.s4 1983009808
        %v982 = vunpack.c.0.s8 %v981
        %v983 = vlaneseq
        %v984 = vshrl.u32 %v983, 7
        %v985 = vsub.s32 %v982, %v984
        %v986 = vrot.slane %v978, %v985
        %v987 = vrot.slane %v986, 7
        %988 = vrot.lane.b32.xlu0 %v987, 16
        %v989 = vpop.permute.xlu0 %988
        %991 = vst.msk [vmem:[#allocation2 + $0x2] sm:$0x2] %vm723, %v989
        %s992 = scalar_lea.vmem %s200, 86
        %v993 = vld [vmem:[%s992] sm:$0x3]
        %v994 = vpack.c.bf16 %v993, %v993
        %v997 = vunpack.c.l.s4 1983009808
        %v998 = vunpack.c.0.s8 %v997
        %v999 = vlaneseq
        %v1000 = vshrl.u32 %v999, 7
        %v1001 = vsub.s32 %v998, %v1000
        %v1002 = vrot.slane %v994, %v1001
        %v1003 = vrot.slane %v1002, 7
        %1004 = vrot.lane.b32.xlu0 %v1003, 24
        %v1005 = vpop.permute.xlu0 %1004
        %1007 = vst.msk [vmem:[#allocation2 + $0x2] sm:$0x2] %vm740, %v1005
        %s1008 = scalar_lea.vmem %s200, 88
        %v1009 = vld [vmem:[%s1008] sm:$0x3]
        %v1010 = vpack.c.bf16 %v1009, %v1009
        %v1013 = vunpack.c.l.s4 1983009808
        %v1014 = vunpack.c.0.s8 %v1013
        %v1015 = vlaneseq
        %v1016 = vshrl.u32 %v1015, 7
        %v1017 = vsub.s32 %v1014, %v1016
        %v1018 = vrot.slane %v1010, %v1017
        %v1019 = vrot.slane %v1018, 7
        %1020 = vrot.lane.b32.xlu0 %v1019, 32
        %v1021 = vpop.permute.xlu0 %1020
        %1023 = vst.msk [vmem:[#allocation2 + $0x2] sm:$0x2] %vm757, %v1021
        %s1024 = scalar_lea.vmem %s200, 90
        %v1025 = vld [vmem:[%s1024] sm:$0x3]
        %v1026 = vpack.c.bf16 %v1025, %v1025
        %v1029 = vunpack.c.l.s4 1983009808
        %v1030 = vunpack.c.0.s8 %v1029
        %v1031 = vlaneseq
        %v1032 = vshrl.u32 %v1031, 7
        %v1033 = vsub.s32 %v1030, %v1032
        %v1034 = vrot.slane %v1026, %v1033
        %v1035 = vrot.slane %v1034, 7
        %1036 = vrot.lane.b32.xlu0 %v1035, 40
        %v1037 = vpop.permute.xlu0 %1036
        %1039 = vst.msk [vmem:[#allocation2 + $0x2] sm:$0x2] %vm774, %v1037
        %s1040 = scalar_lea.vmem %s200, 92
        %v1041 = vld [vmem:[%s1040] sm:$0x3]
        %v1042 = vpack.c.bf16 %v1041, %v1041
        %v1045 = vunpack.c.l.s4 1983009808
        %v1046 = vunpack.c.0.s8 %v1045
        %v1047 = vlaneseq
        %v1048 = vshrl.u32 %v1047, 7
        %v1049 = vsub.s32 %v1046, %v1048
        %v1050 = vrot.slane %v1042, %v1049
        %v1051 = vrot.slane %v1050, 7
        %1052 = vrot.lane.b32.xlu0 %v1051, 48
        %v1053 = vpop.permute.xlu0 %1052
        %1055 = vst.msk [vmem:[#allocation2 + $0x2] sm:$0x2] %vm791, %v1053
        %s1056 = scalar_lea.vmem %s200, 94
        %v1057 = vld [vmem:[%s1056] sm:$0x3]
        %v1058 = vpack.c.bf16 %v1057, %v1057
        %v1061 = vunpack.c.l.s4 1983009808
        %v1062 = vunpack.c.0.s8 %v1061
        %v1063 = vlaneseq
        %v1064 = vshrl.u32 %v1063, 7
        %v1065 = vsub.s32 %v1062, %v1064
        %v1066 = vrot.slane %v1058, %v1065
        %v1067 = vrot.slane %v1066, 7
        %1068 = vrot.lane.b32.xlu0 %v1067, 56
        %v1069 = vpop.permute.xlu0 %1068
        %1071 = vst.msk [vmem:[#allocation2 + $0x2] sm:$0x2] %vm808, %v1069
        %s1072 = scalar_lea.vmem %s200, 112
        %v1073 = vld [vmem:[%s1072] sm:$0x3]
        %v1074 = vpack.c.bf16 %v1073, %v1073
        %v1077 = vunpack.c.l.s4 1983009808
        %v1078 = vunpack.c.0.s8 %v1077
        %v1079 = vlaneseq
        %v1080 = vshrl.u32 %v1079, 7
        %v1081 = vsub.s32 %v1078, %v1080
        %v1082 = vrot.slane %v1074, %v1081
        %v1083 = vrot.slane %v1082, 7
        %1084 = vrot.lane.b32.xlu0 %v1083, 64
        %v1085 = vpop.permute.xlu0 %1084
        %1087 = vst.msk [vmem:[#allocation2 + $0x2] sm:$0x2] %vm825, %v1085
        %s1088 = scalar_lea.vmem %s200, 114
        %v1089 = vld [vmem:[%s1088] sm:$0x3]
        %v1090 = vpack.c.bf16 %v1089, %v1089
        %v1093 = vunpack.c.l.s4 1983009808
        %v1094 = vunpack.c.0.s8 %v1093
        %v1095 = vlaneseq
        %v1096 = vshrl.u32 %v1095, 7
        %v1097 = vsub.s32 %v1094, %v1096
        %v1098 = vrot.slane %v1090, %v1097
        %v1099 = vrot.slane %v1098, 7
        %1100 = vrot.lane.b32.xlu0 %v1099, 72
        %v1101 = vpop.permute.xlu0 %1100
        %1103 = vst.msk [vmem:[#allocation2 + $0x2] sm:$0x2] %vm842, %v1101
        %s1104 = scalar_lea.vmem %s200, 116
        %v1105 = vld [vmem:[%s1104] sm:$0x3]
        %v1106 = vpack.c.bf16 %v1105, %v1105
        %v1109 = vunpack.c.l.s4 1983009808
        %v1110 = vunpack.c.0.s8 %v1109
        %v1111 = vlaneseq
        %v1112 = vshrl.u32 %v1111, 7
        %v1113 = vsub.s32 %v1110, %v1112
        %v1114 = vrot.slane %v1106, %v1113
        %v1115 = vrot.slane %v1114, 7
        %1116 = vrot.lane.b32.xlu0 %v1115, 80
        %v1117 = vpop.permute.xlu0 %1116
        %1119 = vst.msk [vmem:[#allocation2 + $0x2] sm:$0x2] %vm859, %v1117
        %s1120 = scalar_lea.vmem %s200, 118
        %v1121 = vld [vmem:[%s1120] sm:$0x3]
        %v1122 = vpack.c.bf16 %v1121, %v1121
        %v1125 = vunpack.c.l.s4 1983009808
        %v1126 = vunpack.c.0.s8 %v1125
        %v1127 = vlaneseq
        %v1128 = vshrl.u32 %v1127, 7
        %v1129 = vsub.s32 %v1126, %v1128
        %v1130 = vrot.slane %v1122, %v1129
        %v1131 = vrot.slane %v1130, 7
        %1132 = vrot.lane.b32.xlu0 %v1131, 88
        %v1133 = vpop.permute.xlu0 %1132
        %1135 = vst.msk [vmem:[#allocation2 + $0x2] sm:$0x2] %vm876, %v1133
        %s1136 = scalar_lea.vmem %s200, 120
        %v1137 = vld [vmem:[%s1136] sm:$0x3]
        %v1138 = vpack.c.bf16 %v1137, %v1137
        %v1141 = vunpack.c.l.s4 1983009808
        %v1142 = vunpack.c.0.s8 %v1141
        %v1143 = vlaneseq
        %v1144 = vshrl.u32 %v1143, 7
        %v1145 = vsub.s32 %v1142, %v1144
        %v1146 = vrot.slane %v1138, %v1145
        %v1147 = vrot.slane %v1146, 7
        %1148 = vrot.lane.b32.xlu0 %v1147, 96
        %v1149 = vpop.permute.xlu0 %1148
        %1151 = vst.msk [vmem:[#allocation2 + $0x2] sm:$0x2] %vm893, %v1149
        %s1152 = scalar_lea.vmem %s200, 122
        %v1153 = vld [vmem:[%s1152] sm:$0x3]
        %v1154 = vpack.c.bf16 %v1153, %v1153
        %v1157 = vunpack.c.l.s4 1983009808
        %v1158 = vunpack.c.0.s8 %v1157
        %v1159 = vlaneseq
        %v1160 = vshrl.u32 %v1159, 7
        %v1161 = vsub.s32 %v1158, %v1160
        %v1162 = vrot.slane %v1154, %v1161
        %v1163 = vrot.slane %v1162, 7
        %1164 = vrot.lane.b32.xlu0 %v1163, 104
        %v1165 = vpop.permute.xlu0 %1164
        %1167 = vst.msk [vmem:[#allocation2 + $0x2] sm:$0x2] %vm910, %v1165
        %s1168 = scalar_lea.vmem %s200, 124
        %v1169 = vld [vmem:[%s1168] sm:$0x3]
        %v1170 = vpack.c.bf16 %v1169, %v1169
        %v1173 = vunpack.c.l.s4 1983009808
        %v1174 = vunpack.c.0.s8 %v1173
        %v1175 = vlaneseq
        %v1176 = vshrl.u32 %v1175, 7
        %v1177 = vsub.s32 %v1174, %v1176
        %v1178 = vrot.slane %v1170, %v1177
        %v1179 = vrot.slane %v1178, 7
        %1180 = vrot.lane.b32.xlu0 %v1179, 112
        %v1181 = vpop.permute.xlu0 %1180
        %1183 = vst.msk [vmem:[#allocation2 + $0x2] sm:$0x2] %vm927, %v1181
        %s1184 = scalar_lea.vmem %s200, 126
        %v1185 = vld [vmem:[%s1184] sm:$0x3]
        %v1186 = vpack.c.bf16 %v1185, %v1185
        %v1189 = vunpack.c.l.s4 1983009808
        %v1190 = vunpack.c.0.s8 %v1189
        %v1191 = vlaneseq
        %v1192 = vshrl.u32 %v1191, 7
        %v1193 = vsub.s32 %v1190, %v1192
        %v1194 = vrot.slane %v1186, %v1193
        %v1195 = vrot.slane %v1194, 7
        %1196 = vrot.lane.b32.xlu0 %v1195, 120
        %v1197 = vpop.permute.xlu0 %1196
        %1199 = vst.msk [vmem:[#allocation2 + $0x2] sm:$0x2] %vm944, %v1197
        %v1200 = vld [vmem:[#allocation2] sm:$0xf]
        %v1201 = vld [vmem:[%s1] sm:$0xf]
        %v1202 = vld [vmem:[%s1 + $0x4] sm:$0xf]
        %v1203 = vld [vmem:[%s1 + $0x8] sm:$0xf]
        %v1204 = vld [vmem:[%s1 + $0xc] sm:$0xf]
        %v1205 = vld [vmem:[%s1 + $0x10] sm:$0xf]
        %v1206 = vld [vmem:[%s1 + $0x14] sm:$0xf]
        %v1207 = vld [vmem:[%s1 + $0x18] sm:$0xf]
        %v1208 = vld [vmem:[%s1 + $0x1c] sm:$0xf]
        %v1209 = vld [vmem:[%s1 + $0x20] sm:$0xf]
        %v1210 = vld [vmem:[%s1 + $0x24] sm:$0xf]
        %v1211 = vld [vmem:[%s1 + $0x28] sm:$0xf]
        %v1212 = vld [vmem:[%s1 + $0x2c] sm:$0xf]
        %v1213 = vld [vmem:[%s1 + $0x30] sm:$0xf]
        %v1214 = vld [vmem:[%s1 + $0x34] sm:$0xf]
        %v1215 = vld [vmem:[%s1 + $0x38] sm:$0xf]
        %v1216 = vld [vmem:[%s1 + $0x3c] sm:$0xf]
        %v1217 = vld [vmem:[%s1 + $0x40] sm:$0xf]
        %v1218 = vld [vmem:[%s1 + $0x44] sm:$0xf]
        %v1219 = vld [vmem:[%s1 + $0x48] sm:$0xf]
        %v1220 = vld [vmem:[%s1 + $0x4c] sm:$0xf]
        %v1221 = vld [vmem:[%s1 + $0x50] sm:$0xf]
        %v1222 = vld [vmem:[%s1 + $0x54] sm:$0xf]
        %v1223 = vld [vmem:[%s1 + $0x58] sm:$0xf]
        %v1224 = vld [vmem:[%s1 + $0x5c] sm:$0xf]
        %v1225 = vld [vmem:[%s1 + $0x60] sm:$0xf]
        %v1226 = vld [vmem:[%s1 + $0x64] sm:$0xf]
        %v1227 = vld [vmem:[%s1 + $0x68] sm:$0xf]
        %v1228 = vld [vmem:[%s1 + $0x6c] sm:$0xf]
        %v1229 = vld [vmem:[%s1 + $0x70] sm:$0xf]
        %v1230 = vld [vmem:[%s1 + $0x74] sm:$0xf]
        %v1231 = vld [vmem:[%s1 + $0x78] sm:$0xf]
        %v1232 = vld [vmem:[%s1 + $0x7c] sm:$0xf]
        %v1233 = vld [vmem:[%s2] sm:$0x1]
        %v1235 = vlaneseq
        %v1236 = vshrl.u32 %v1235, 7
        %v1237 = vsub.s32 0, %v1236
        %v1238 = vrot.slane %v1233, %v1237
        %v1242 = vunpack.c.l.s4 1983009808
        %v1243 = vunpack.c.0.s8 %v1242
        %v1244 = vlaneseq
        %v1245 = vshrl.u32 %v1244, 7
        %v1246 = vsub.s32 %v1243, %v1245
        %v1247 = vrot.slane %v1200, %v1246
        %v1248 = vcombine.high %v1247, %v1247
        %v1283 = vunpack.c.l.b16 %v1201
        %v1284 = vunpack.c.l.b16 %v1202
        %v1285 = vunpack.c.l.b16 %v1203
        %v1286 = vunpack.c.l.b16 %v1204
        %v1287 = vunpack.c.l.b16 %v1205
        %v1288 = vunpack.c.l.b16 %v1206
        %v1289 = vunpack.c.l.b16 %v1207
        %v1290 = vunpack.c.l.b16 %v1208
        %v1291 = vunpack.c.l.b16 %v1209
        %v1292 = vunpack.c.l.b16 %v1210
        %v1293 = vunpack.c.l.b16 %v1211
        %v1294 = vunpack.c.l.b16 %v1212
        %v1295 = vunpack.c.l.b16 %v1213
        %v1296 = vunpack.c.l.b16 %v1214
        %v1297 = vunpack.c.l.b16 %v1215
        %v1298 = vunpack.c.l.b16 %v1216
        %v1299 = vunpack.c.l.b16 %v1217
        %v1300 = vunpack.c.l.b16 %v1218
        %v1301 = vunpack.c.l.b16 %v1219
        %v1302 = vunpack.c.l.b16 %v1220
        %v1303 = vunpack.c.l.b16 %v1221
        %v1304 = vunpack.c.l.b16 %v1222
        %v1305 = vunpack.c.l.b16 %v1223
        %v1306 = vunpack.c.l.b16 %v1224
        %v1307 = vunpack.c.l.b16 %v1225
        %v1308 = vunpack.c.l.b16 %v1226
        %v1309 = vunpack.c.l.b16 %v1227
        %v1310 = vunpack.c.l.b16 %v1228
        %v1311 = vunpack.c.l.b16 %v1229
        %v1312 = vunpack.c.l.b16 %v1230
        %v1313 = vunpack.c.l.b16 %v1231
        %v1314 = vunpack.c.l.b16 %v1232
        %v1315 = vpack.c.b16 %v1284, %v1283
        %v1316 = vpack.c.b16 %v1286, %v1285
        %v1317 = vpack.c.b16 %v1288, %v1287
        %v1318 = vpack.c.b16 %v1290, %v1289
        %v1319 = vpack.c.b16 %v1292, %v1291
        %v1320 = vpack.c.b16 %v1294, %v1293
        %v1321 = vpack.c.b16 %v1296, %v1295
        %v1322 = vpack.c.b16 %v1298, %v1297
        %v1323 = vpack.c.b16 %v1300, %v1299
        %v1324 = vpack.c.b16 %v1302, %v1301
        %v1325 = vpack.c.b16 %v1304, %v1303
        %v1326 = vpack.c.b16 %v1306, %v1305
        %v1327 = vpack.c.b16 %v1308, %v1307
        %v1328 = vpack.c.b16 %v1310, %v1309
        %v1329 = vpack.c.b16 %v1312, %v1311
        %v1330 = vpack.c.b16 %v1314, %v1313
        %1347 = vmatprep.subr.bf16.mxu0 0
        %1348 = vmatpush1.bf16.msra.mxu0 %v1315
        %1349 = vmatprep.subr.bf16.mxu0 0
        %1350 = vmatpush1.bf16.msra.mxu0 %v1316
        %1351 = vmatprep.subr.bf16.mxu0 0
        %1352 = vmatpush1.bf16.msra.mxu0 %v1317
        %1353 = vmatprep.subr.bf16.mxu0 0
        %1354 = vmatpush1.bf16.msra.mxu0 %v1318
        %1355 = vmatprep.subr.bf16.mxu0 0
        %1356 = vmatpush1.bf16.msra.mxu0 %v1319
        %1357 = vmatprep.subr.bf16.mxu0 0
        %1358 = vmatpush1.bf16.msra.mxu0 %v1320
        %1359 = vmatprep.subr.bf16.mxu0 0
        %1360 = vmatpush1.bf16.msra.mxu0 %v1321
        %1361 = vmatprep.subr.bf16.mxu0 0
        %1362 = vmatpush1.bf16.msra.mxu0 %v1322
        %1363 = vmatprep.subr.bf16.mxu0 0
        %1364 = vmatpush1.bf16.msra.mxu0 %v1323
        %1365 = vmatprep.subr.bf16.mxu0 0
        %1366 = vmatpush1.bf16.msra.mxu0 %v1324
        %1367 = vmatprep.subr.bf16.mxu0 0
        %1368 = vmatpush1.bf16.msra.mxu0 %v1325
        %1369 = vmatprep.subr.bf16.mxu0 0
        %1370 = vmatpush1.bf16.msra.mxu0 %v1326
        %1371 = vmatprep.subr.bf16.mxu0 0
        %1372 = vmatpush1.bf16.msra.mxu0 %v1327
        %1373 = vmatprep.subr.bf16.mxu0 0
        %1374 = vmatpush1.bf16.msra.mxu0 %v1328
        %1375 = vmatprep.subr.bf16.mxu0 0
        %1376 = vmatpush1.bf16.msra.mxu0 %v1329
        %1377 = vmatprep.subr.bf16.mxu0 0
        %1378 = vmatpush1.bf16.msra.mxu0 %v1330
        %1379 = vmatprep.mubr.bf16.mxu0 %v1248
        %1380 = vmatmul.mubr.bf16.gmra.mrb[0].mxu0 %v1247
        %v1381 = vpop.f32.mrb[0].mxu0
        %v1382 = vadd.f32 %v1238, %v1381
        %v1383 = vpop.f32.mrb[0].mxu0
        %v1384 = vpop.f32.mrb[0].mxu0
        %v1385 = vpop.f32.mrb[0].mxu0
        %1386 = vdwg.mxu0
        %v1387 = vmax.f32 %v1382, 0.0
        %v1388 = vpack.c.bf16 %v1387, %v1387
        %1389 = vst [vmem:[%s190] sm:$0x3] %v1388
        %s1390 = sand.u32 %s109, 1
        %s1391 = scalar_lea.sflag [#allocation4], %s1390
        %s1392 = sand.u32 %s109, 1
        %s1393 = smul.addr %s1392, 2
        %s1394 = scalar_lea.vmem [#allocation3], %s1393
        // Predicated region
        $region33: #{backbone_base_forward.1} parent=31 // pred_check
          %p1395 = pneg %p119
        $region34: #{backbone_base_forward.1} parent=31 // pred_check_branch
          %1397 = sbr.rel (%p1395) target = $region36
        $region35: #{backbone_base_forward.1} parent=31 // pred_region
          %s1399 = ssub.s32 32, 32
          %1400 = vsyncadd %s1391, %s1399
          %s1401 = sadd.s32 %s22, %s21
          %s1402 = smul.addr %s1401, 32
          %s1403 = scalar_lea.hbm %s3, %s1402
          %s1405 = sshll.u32 %s1394, 4
          %s1406 = int_to_ptr.vmem [resolvable:$true] %s1405
          %1408 = dma.vmem_to_hbm [thread:$0]  %s1406, 32, %s1403, %s1391
        $region36: #{backbone_base_forward.1} parent=31 // pred_fallthru
          _
      $region32: #{backbone_base_forward.1} parent=5 // pred_fallthru
        _
      %p1409 = scmp.le.s32.totalorder 2, %s12
      // Predicated region
      $region37: #{backbone_base_forward.1} parent=5 // pred_check
        %p1410 = pneg %p1409
      $region38: #{backbone_base_forward.1} parent=5 // pred_check_branch
        %1412 = sbr.rel (%p1410) target = $region40
      $region39: #{backbone_base_forward.1} parent=5 // pred_region
        %s1413 = ssub.s32 %s12, 2
        // Predicated region
        $region41: #{backbone_base_forward.1} parent=39 // pred_check
          %p1414 = pneg %p125
        $region42: #{backbone_base_forward.1} parent=39 // pred_check_branch
          %1416 = sbr.rel (%p1414) target = $region44
        $region43: #{backbone_base_forward.1} parent=39 // pred_region
          %s1417 = sand.u32 %s110, 1
          %s1418 = scalar_lea.sflag [#allocation4], %s1417
          %s1419 = sand.u32 %s110, 1
          %s1420 = smul.addr %s1419, 2
          %s1421 = scalar_lea.vmem [#allocation3], %s1420
          %1422 = dma.done %s1418, 32
        $region44: #{backbone_base_forward.1} parent=39 // pred_fallthru
          _
      $region40: #{backbone_base_forward.1} parent=5 // pred_fallthru
        _
    $region6: #{backbone_base_forward.1} parent=1 // loop_footer
      %s16 = sadd.s32 1, %s12
    $region7: #{backbone_base_forward.1} parent=1 // loop_footer_branch
      %11 = sbr.rel target = $region3
    $region8: #{backbone_base_forward.1} parent=1 // loop_exit
      _
    %1423 = vsyncpa [#allocation4], 1
    %s1424 = scalar_lea.sflag [#allocation4], 1
    %1425 = vsyncpa %s1424, 1

</llo_original>
